<compile_context>
chip_gen: v7x
topology: tpu7x:2x2x1
jax: 0.10.0
libtpu: 0.0.40
codegen_flags: <defaults>
</compile_context>

<pallas_src>
import math

import jax
import jax.numpy as jnp
from jax.experimental import pallas as pl
from jax.experimental.pallas import tpu as pltpu

HIDDEN = 180          # SkipConnMLP hidden_size
HIDDEN_PAD = 256      # lane-padded hidden (zero columns/rows; exact same math)
NUM_LAYERS = 6        # SkipConnMLP num_layers
IN_SIZE = 2           # cat([min_sdf_val, dists], -1)
OUT_SIZE = 1
NEG_SLOPE = 0.01      # torch nn.LeakyReLU default
PACK_C = 16           # packed per-point input channels: pts(3) pom(3) sdf(1) spec(3) pad(6)


def _leaky(x):
    # max(x, 0.01*x) == LeakyReLU(x) for slope < 1; 2 VALU ops/elem vs 3 for where().
    return jnp.maximum(x, NEG_SLOPE * x)


def _shadow_kernel(inp_ref, w_in_ref, b_in_ref, w_skip_ref,
                   wh_ref, bh_ref, w_out_ref, b_out_ref, out_ref):
    x = inp_ref[...]                                   # (T, 16) f32, single DMA
    pts = x[:, 0:3]
    pom = x[:, 3:6]
    sdf = x[:, 6:7]
    spec = x[:, 7:10]

    # distance ||pts - point_of_min||_2, keepdim
    diff = pts - pom
    dists = jnp.sqrt(jnp.sum(diff * diff, axis=-1, keepdims=True))   # (T, 1)

    # SkipConnMLP with skip=999: only hidden layer 0 concatenates the raw 2-dim
    # input; that concat is folded into a rank-1 VPU update (off the MXU).
    skip = sdf * w_skip_ref[0:1, :] + dists * w_skip_ref[1:2, :]      # (T, 256) f32

    # init linear: [sdf, dists] @ W_in + b_in as two rank-1 broadcast multiplies
    # (a 2-wide MXU matmul would waste a full pass).
    h = sdf * w_in_ref[0:1, :] + dists * w_in_ref[1:2, :] + b_in_ref[...]
    h = _leaky(h).astype(jnp.bfloat16)                  # carry activations in bf16

    for i in range(NUM_LAYERS):
        # bf16 operands -> native MXU rate; f32 accumulation keeps precision.
        z = jnp.dot(h, wh_ref[i], preferred_element_type=jnp.float32) + bh_ref[i]
        if i == 0:
            z = z + skip
        h = _leaky(z)                                   # f32 epilogue (v5e-safe)
        if i + 1 < NUM_LAYERS:
            h = h.astype(jnp.bfloat16)                  # half the ld/st bytes/layer

    # output head (256 -> 1) as a lane reduction (XLU), then sigmoid attenuation
    logit = jnp.sum(h * w_out_ref[...], axis=-1, keepdims=True) + b_out_ref[...]
    att = jax.nn.sigmoid(logit)                         # (T, 1)
    out_ref[...] = spec * att                           # (T, 3)


def _pick_tile(n):
    # Large tiles amortize the ~0.35 us per-grid-step overhead; prefer >= 4 grid
    # steps so v7x's two TensorCores both get balanced work on the parallel axis.
    for t in (2048, 1024, 512, 256):
        if pl.cdiv(n, t) >= 4:
            return t
    return 128


def _vmem_limit_bytes():
    # v7x has 64 MiB physical VMEM per TC (vs 128 MiB on v5e/v6e): budget lower there.
    try:
        kind = jax.devices()[0].device_kind.lower()
    except Exception:  # pragma: no cover - defensive for odd environments
        kind = ""
    if "v7" in kind or "7x" in kind:
        return 40 * 1024 * 1024
    return 64 * 1024 * 1024


def _prepare_params(params):
    """Zero-pad hidden dim 180->256 and cast the big hidden weights to bf16 (glue)."""
    w_in, b_in, w_skip, wh, bh, w_out, b_out = params
    pad = HIDDEN_PAD - HIDDEN

    def padl(a):  # pad last (lane) dim with zeros
        return jnp.pad(a, [(0, 0)] * (a.ndim - 1) + [(0, pad)])

    w_in_p = padl(w_in).astype(jnp.float32)                       # (2, 256)
    b_in_p = padl(b_in).astype(jnp.float32)                       # (1, 256)
    w_skip_p = padl(w_skip).astype(jnp.float32)                   # (2, 256)
    wh_p = jnp.pad(wh, ((0, 0), (0, pad), (0, pad))).astype(jnp.bfloat16)  # (6,256,256)
    bh_p = padl(bh).astype(jnp.float32)                           # (6, 1, 256)
    w_out_p = padl(w_out).astype(jnp.float32)                     # (1, 256)
    b_out_p = b_out.astype(jnp.float32)                           # (1, 1)
    return (w_in_p, b_in_p, w_skip_p, wh_p, bh_p, w_out_p, b_out_p)


def approx_smooth_shadow_attenuate(pts, point_of_min, min_sdf_val, spectrum, params):
    """spectrum * sigmoid(MLP([min_sdf_val, ||pts - point_of_min||]))  -- Pallas."""
    n = pts.shape[0]

    # Pack the four narrow per-point tensors into one (N, 16) slab -> one DMA/step.
    packed = jnp.concatenate(
        [pts, point_of_min, min_sdf_val, spectrum,
         jnp.zeros((n, PACK_C - 10), jnp.float32)], axis=-1).astype(jnp.float32)

    tile_n = _pick_tile(n)
    steps = pl.cdiv(n, tile_n)
    if steps > 1 and steps % 2 == 1:
        steps += 1        # even step count keeps both v7x TensorCores busy
    n_pad = steps * tile_n
    if n_pad != n:
        # padded rows are all zeros -> finite through sqrt/sigmoid, sliced off below
        packed = jnp.pad(packed, ((0, n_pad - n), (0, 0)))

    w_in, b_in, w_skip, wh, bh, w_out, b_out = _prepare_params(params)

    def row_spec(c):
        return pl.BlockSpec((tile_n, c), lambda i: (i, 0))

    def full_spec(shape):
        nd = len(shape)
        return pl.BlockSpec(shape, lambda i, _nd=nd: (0,) * _nd)

    out = pl.pallas_call(
        _shadow_kernel,
        out_shape=jax.ShapeDtypeStruct((n_pad, 3), jnp.float32),
        grid_spec=pltpu.PrefetchScalarGridSpec(
            num_scalar_prefetch=0,
            grid=(n_pad // tile_n,),
            in_specs=[
                row_spec(PACK_C),                         # packed per-point inputs
                full_spec(w_in.shape), full_spec(b_in.shape),
                full_spec(w_skip.shape),
                full_spec(wh.shape), full_spec(bh.shape),
                full_spec(w_out.shape), full_spec(b_out.shape),
            ],
            out_specs=pl.BlockSpec((tile_n, 3), lambda i: (i, 0)),
        ),
        compiler_params=pltpu.CompilerParams(
            dimension_semantics=("parallel",),
            vmem_limit_bytes=_vmem_limit_bytes()),
    )(packed, w_in, b_in, w_skip, wh, bh, w_out, b_out)
    return out[:n]


# ---------------- parameter init (deterministic, xavier uniform) ----------------
def init_params(key):
    def xavier(k, shape, fan_in, fan_out):
        a = math.sqrt(6.0 / (fan_in + fan_out))
        return jax.random.uniform(k, shape, jnp.float32, -a, a)

    ks = jax.random.split(key, 4)
    w_in = xavier(ks[0], (IN_SIZE, HIDDEN), IN_SIZE, HIDDEN)
    b_in = jnp.zeros((1, HIDDEN), jnp.float32)
    # hidden layer 0 of SkipConnMLP is Linear(HIDDEN + IN_SIZE -> HIDDEN); its
    # weight is split into wh[0] (HIDDEN,HIDDEN) plus w_skip (IN_SIZE,HIDDEN).
    w_skip = xavier(ks[1], (IN_SIZE, HIDDEN), HIDDEN + IN_SIZE, HIDDEN)
    wh = xavier(ks[2], (NUM_LAYERS, HIDDEN, HIDDEN), HIDDEN, HIDDEN)
    bh = jnp.zeros((NUM_LAYERS, 1, HIDDEN), jnp.float32)
    w_out = xavier(ks[3], (1, HIDDEN), HIDDEN, OUT_SIZE)
    b_out = jnp.zeros((1, 1), jnp.float32)
    return (w_in, b_in, w_skip, wh, bh, w_out, b_out)


# ---------------- plain-JAX stubs for the external callables (glue) -------------
def lights_fn(pts, mask=None):
    """Synthetic point light: returns (dir, dist, spectrum)."""
    light_pos = jnp.array([1.5, 2.0, 1.0], jnp.float32)
    to_light = light_pos - pts
    dist = jnp.linalg.norm(to_light, axis=-1, keepdims=True)
    direction = to_light / dist
    intensity = jnp.array([10.0, 8.0, 6.0], jnp.float32)
    spectrum = intensity / jnp.maximum(dist * dist, 1e-6)
    return direction, dist, spectrum


def isect_fn(r_o, r_d, near, far, eps):
    """Synthetic sphere-SDF ray march standing in for the external isect_fn."""
    n_steps = 16
    ts = jnp.linspace(near, far, n_steps).astype(jnp.float32)            # (S,)
    pos = r_o[:, None, :] + ts[None, :, None] * r_d[:, None, :]          # (N,S,3)
    sdf = jnp.linalg.norm(pos, axis=-1) - 0.5                            # (N,S)
    idx = jnp.argmin(sdf, axis=-1)
    min_sdf_val = jnp.min(sdf, axis=-1, keepdims=True)                   # (N,1)
    point_of_min = jnp.take_along_axis(pos, idx[:, None, None], axis=1)[:, 0, :]
    visible = min_sdf_val[:, 0] > eps
    return visible, min_sdf_val, point_of_min


def approximate_smooth_shadow_forward(pts, params, latent=None, mask=None):
    """Mirrors ApproximateSmoothShadow.forward (mask=None path)."""
    # TODO(synk): boolean-mask indexing (pts[mask]) yields dynamic shapes; only the mask=None path is implemented.
    direction, dist, spectrum = lights_fn(pts, mask=mask)
    # original does `dist.max().item()` (host sync); keep it traced instead.
    far = jnp.max(dist)
    _visible, min_sdf_val, point_of_min = isect_fn(
        r_o=pts, r_d=direction, near=0.002, far=far, eps=0.001)
    spec_att = approx_smooth_shadow_attenuate(
        pts, point_of_min, min_sdf_val, spectrum, params)
    return direction, spec_att


# ------- pure-JAX reference of the MLP (mirrors the kernel's bf16 dot operands) ---
def _mlp_ref(x, params):
    w_in, b_in, w_skip, wh, bh, w_out, b_out = params
    h = _leaky(x @ w_in + b_in).astype(jnp.bfloat16)
    for i in range(NUM_LAYERS):
        z = jnp.dot(h, wh[i].astype(jnp.bfloat16),
                    preferred_element_type=jnp.float32) + bh[i]
        if i == 0:
            z = z + x @ w_skip
        h = _leaky(z)
        if i + 1 < NUM_LAYERS:
            h = h.astype(jnp.bfloat16)
    return h @ w_out.T + b_out


if __name__ == "__main__":
    key = jax.random.PRNGKey(0)
    kp, kx = jax.random.split(key)
    params = init_params(kp)

    N = 256
    pts = jax.random.uniform(kx, (N, 3), jnp.float32, -1.0, 1.0)

    direction, spec_att = approximate_smooth_shadow_forward(pts, params)
    spec_att = jax.block_until_ready(spec_att)

    # sanity check against a plain-JAX reference of the same (bf16-dot) math
    _, dist, spectrum = lights_fn(pts)
    far = jnp.max(dist)
    _, min_sdf_val, point_of_min = isect_fn(
        r_o=pts, r_d=direction, near=0.002, far=far, eps=0.001)
    dists = jnp.linalg.norm(pts - point_of_min, axis=-1, keepdims=True)
    att_ref = jax.nn.sigmoid(
        _mlp_ref(jnp.concatenate([min_sdf_val, dists], axis=-1), params))
    ref = spectrum * att_ref
    assert jnp.allclose(spec_att, ref, atol=2e-3, rtol=2e-3), \
        float(jnp.max(jnp.abs(spec_att - ref)))

    print("KERNEL_OK")
</pallas_src>

<mosaic_0001>
module attributes {stable_mosaic.version = 11 : i64} {
  func.func @_shadow_kernel(%arg0: i32, %arg1: memref<128x16xf32, #tpu.memory_space<vmem>>, %arg2: memref<2x256xf32, #tpu.memory_space<vmem>>, %arg3: memref<1x256xf32, #tpu.memory_space<vmem>>, %arg4: memref<2x256xf32, #tpu.memory_space<vmem>>, %arg5: memref<6x256x256xbf16, #tpu.memory_space<vmem>>, %arg6: memref<6x1x256xf32, #tpu.memory_space<vmem>>, %arg7: memref<1x256xf32, #tpu.memory_space<vmem>>, %arg8: memref<1x1xf32, #tpu.memory_space<vmem>>, %arg9: memref<128x3xf32, #tpu.memory_space<vmem>>) attributes {dimension_semantics = [#tpu.dimension_semantics<parallel>], iteration_bounds = array<i64: 2>, scalar_prefetch = 0 : i64, scratch_operands = 0 : i64, tpu.core_type = #tpu.core_type<tc>, window_params = [{transform_indices = @transform_0, window_bounds = array<i64: 128, 16>}, {pipeline_mode = #tpu.pipeline_mode<synchronous>, transform_indices = @transform_1, window_bounds = array<i64: 2, 256>}, {pipeline_mode = #tpu.pipeline_mode<synchronous>, transform_indices = @transform_2, window_bounds = array<i64: 1, 256>}, {pipeline_mode = #tpu.pipeline_mode<synchronous>, transform_indices = @transform_3, window_bounds = array<i64: 2, 256>}, {pipeline_mode = #tpu.pipeline_mode<synchronous>, transform_indices = @transform_4, window_bounds = array<i64: 6, 256, 256>}, {pipeline_mode = #tpu.pipeline_mode<synchronous>, transform_indices = @transform_5, window_bounds = array<i64: 6, 1, 256>}, {pipeline_mode = #tpu.pipeline_mode<synchronous>, transform_indices = @transform_6, window_bounds = array<i64: 1, 256>}, {pipeline_mode = #tpu.pipeline_mode<synchronous>, transform_indices = @transform_7, window_bounds = array<i64: 1, 1>}, {transform_indices = @transform_8, window_bounds = array<i64: 128, 3>}]} {
    %c0 = arith.constant 0 : index
    %c0_0 = arith.constant 0 : index
    %0 = vector.load %arg1[%c0, %c0_0] : memref<128x16xf32, #tpu.memory_space<vmem>>, vector<128x16xf32>
    %1 = vector.extract_strided_slice %0 {offsets = [0, 0], sizes = [128, 3], strides = [1, 1]} : vector<128x16xf32> to vector<128x3xf32>
    %2 = vector.extract_strided_slice %0 {offsets = [0, 3], sizes = [128, 3], strides = [1, 1]} : vector<128x16xf32> to vector<128x3xf32>
    %3 = vector.extract_strided_slice %0 {offsets = [0, 6], sizes = [128, 1], strides = [1, 1]} : vector<128x16xf32> to vector<128x1xf32>
    %4 = vector.extract_strided_slice %0 {offsets = [0, 7], sizes = [128, 3], strides = [1, 1]} : vector<128x16xf32> to vector<128x3xf32>
    %5 = arith.subf %1, %2 : vector<128x3xf32>
    %6 = arith.mulf %5, %5 : vector<128x3xf32>
    %cst = arith.constant dense<0.000000e+00> : vector<128xf32>
    %7 = vector.multi_reduction <add>, %6, %cst [1] : vector<128x3xf32> to vector<128xf32>
    %8 = vector.shape_cast %7 : vector<128xf32> to vector<128x1xf32>
    %9 = math.sqrt %8 : vector<128x1xf32>
    %c0_1 = arith.constant 0 : index
    %c0_2 = arith.constant 0 : index
    %10 = vector.load %arg4[%c0_1, %c0_2] : memref<2x256xf32, #tpu.memory_space<vmem>>, vector<1x256xf32>
    %11 = vector.broadcast %3 : vector<128x1xf32> to vector<128x256xf32>
    %12 = vector.broadcast %10 : vector<1x256xf32> to vector<128x256xf32>
    %13 = arith.mulf %11, %12 : vector<128x256xf32>
    %c1 = arith.constant 1 : index
    %c0_3 = arith.constant 0 : index
    %14 = vector.load %arg4[%c1, %c0_3] : memref<2x256xf32, #tpu.memory_space<vmem>>, vector<1x256xf32>
    %15 = vector.broadcast %9 : vector<128x1xf32> to vector<128x256xf32>
    %16 = vector.broadcast %14 : vector<1x256xf32> to vector<128x256xf32>
    %17 = arith.mulf %15, %16 : vector<128x256xf32>
    %18 = arith.addf %13, %17 : vector<128x256xf32>
    %c0_4 = arith.constant 0 : index
    %c0_5 = arith.constant 0 : index
    %19 = vector.load %arg2[%c0_4, %c0_5] : memref<2x256xf32, #tpu.memory_space<vmem>>, vector<1x256xf32>
    %20 = vector.broadcast %3 : vector<128x1xf32> to vector<128x256xf32>
    %21 = vector.broadcast %19 : vector<1x256xf32> to vector<128x256xf32>
    %22 = arith.mulf %20, %21 : vector<128x256xf32>
    %c1_6 = arith.constant 1 : index
    %c0_7 = arith.constant 0 : index
    %23 = vector.load %arg2[%c1_6, %c0_7] : memref<2x256xf32, #tpu.memory_space<vmem>>, vector<1x256xf32>
    %24 = vector.broadcast %9 : vector<128x1xf32> to vector<128x256xf32>
    %25 = vector.broadcast %23 : vector<1x256xf32> to vector<128x256xf32>
    %26 = arith.mulf %24, %25 : vector<128x256xf32>
    %27 = arith.addf %22, %26 : vector<128x256xf32>
    %c0_8 = arith.constant 0 : index
    %c0_9 = arith.constant 0 : index
    %28 = vector.load %arg3[%c0_8, %c0_9] : memref<1x256xf32, #tpu.memory_space<vmem>>, vector<1x256xf32>
    %29 = vector.broadcast %28 : vector<1x256xf32> to vector<128x256xf32>
    %30 = arith.addf %27, %29 : vector<128x256xf32>
    %cst_10 = arith.constant 0.00999999977 : f32
    %31 = vector.broadcast %cst_10 : f32 to vector<128x256xf32>
    %32 = arith.mulf %31, %30 : vector<128x256xf32>
    %33 = arith.maximumf %30, %32 : vector<128x256xf32>
    %34 = arith.truncf %33 : vector<128x256xf32> to vector<128x256xbf16>
    %c0_11 = arith.constant 0 : index
    %c0_12 = arith.constant 0 : index
    %c0_13 = arith.constant 0 : index
    %35 = vector.load %arg5[%c0_11, %c0_12, %c0_13] : memref<6x256x256xbf16, #tpu.memory_space<vmem>>, vector<1x256x256xbf16>
    %36 = vector.shape_cast %35 : vector<1x256x256xbf16> to vector<256x256xbf16>
    %cst_14 = arith.constant dense<0.000000e+00> : vector<128x256xf32>
    %37 = tpu.matmul %34, %36, %cst_14 {dimension_numbers = #tpu.dot_dimension_numbers<[1], [0], [0], [1], [0, 0, 1, 1], [], []>} : vector<128x256xbf16>, vector<256x256xbf16>, vector<128x256xf32> -> vector<128x256xf32>
    %c0_15 = arith.constant 0 : index
    %c0_16 = arith.constant 0 : index
    %c0_17 = arith.constant 0 : index
    %38 = vector.load %arg6[%c0_15, %c0_16, %c0_17] : memref<6x1x256xf32, #tpu.memory_space<vmem>>, vector<1x1x256xf32>
    %39 = vector.shape_cast %38 : vector<1x1x256xf32> to vector<1x256xf32>
    %40 = vector.broadcast %39 : vector<1x256xf32> to vector<128x256xf32>
    %41 = arith.addf %37, %40 : vector<128x256xf32>
    %42 = arith.addf %41, %18 : vector<128x256xf32>
    %cst_18 = arith.constant 0.00999999977 : f32
    %43 = vector.broadcast %cst_18 : f32 to vector<128x256xf32>
    %44 = arith.mulf %43, %42 : vector<128x256xf32>
    %45 = arith.maximumf %42, %44 : vector<128x256xf32>
    %46 = arith.truncf %45 : vector<128x256xf32> to vector<128x256xbf16>
    %c1_19 = arith.constant 1 : index
    %c0_20 = arith.constant 0 : index
    %c0_21 = arith.constant 0 : index
    %47 = vector.load %arg5[%c1_19, %c0_20, %c0_21] : memref<6x256x256xbf16, #tpu.memory_space<vmem>>, vector<1x256x256xbf16>
    %48 = vector.shape_cast %47 : vector<1x256x256xbf16> to vector<256x256xbf16>
    %cst_22 = arith.constant dense<0.000000e+00> : vector<128x256xf32>
    %49 = tpu.matmul %46, %48, %cst_22 {dimension_numbers = #tpu.dot_dimension_numbers<[1], [0], [0], [1], [0, 0, 1, 1], [], []>} : vector<128x256xbf16>, vector<256x256xbf16>, vector<128x256xf32> -> vector<128x256xf32>
    %c1_23 = arith.constant 1 : index
    %c0_24 = arith.constant 0 : index
    %c0_25 = arith.constant 0 : index
    %50 = vector.load %arg6[%c1_23, %c0_24, %c0_25] : memref<6x1x256xf32, #tpu.memory_space<vmem>>, vector<1x1x256xf32>
    %51 = vector.shape_cast %50 : vector<1x1x256xf32> to vector<1x256xf32>
    %52 = vector.broadcast %51 : vector<1x256xf32> to vector<128x256xf32>
    %53 = arith.addf %49, %52 : vector<128x256xf32>
    %cst_26 = arith.constant 0.00999999977 : f32
    %54 = vector.broadcast %cst_26 : f32 to vector<128x256xf32>
    %55 = arith.mulf %54, %53 : vector<128x256xf32>
    %56 = arith.maximumf %53, %55 : vector<128x256xf32>
    %57 = arith.truncf %56 : vector<128x256xf32> to vector<128x256xbf16>
    %c2 = arith.constant 2 : index
    %c0_27 = arith.constant 0 : index
    %c0_28 = arith.constant 0 : index
    %58 = vector.load %arg5[%c2, %c0_27, %c0_28] : memref<6x256x256xbf16, #tpu.memory_space<vmem>>, vector<1x256x256xbf16>
    %59 = vector.shape_cast %58 : vector<1x256x256xbf16> to vector<256x256xbf16>
    %cst_29 = arith.constant dense<0.000000e+00> : vector<128x256xf32>
    %60 = tpu.matmul %57, %59, %cst_29 {dimension_numbers = #tpu.dot_dimension_numbers<[1], [0], [0], [1], [0, 0, 1, 1], [], []>} : vector<128x256xbf16>, vector<256x256xbf16>, vector<128x256xf32> -> vector<128x256xf32>
    %c2_30 = arith.constant 2 : index
    %c0_31 = arith.constant 0 : index
    %c0_32 = arith.constant 0 : index
    %61 = vector.load %arg6[%c2_30, %c0_31, %c0_32] : memref<6x1x256xf32, #tpu.memory_space<vmem>>, vector<1x1x256xf32>
    %62 = vector.shape_cast %61 : vector<1x1x256xf32> to vector<1x256xf32>
    %63 = vector.broadcast %62 : vector<1x256xf32> to vector<128x256xf32>
    %64 = arith.addf %60, %63 : vector<128x256xf32>
    %cst_33 = arith.constant 0.00999999977 : f32
    %65 = vector.broadcast %cst_33 : f32 to vector<128x256xf32>
    %66 = arith.mulf %65, %64 : vector<128x256xf32>
    %67 = arith.maximumf %64, %66 : vector<128x256xf32>
    %68 = arith.truncf %67 : vector<128x256xf32> to vector<128x256xbf16>
    %c3 = arith.constant 3 : index
    %c0_34 = arith.constant 0 : index
    %c0_35 = arith.constant 0 : index
    %69 = vector.load %arg5[%c3, %c0_34, %c0_35] : memref<6x256x256xbf16, #tpu.memory_space<vmem>>, vector<1x256x256xbf16>
    %70 = vector.shape_cast %69 : vector<1x256x256xbf16> to vector<256x256xbf16>
    %cst_36 = arith.constant dense<0.000000e+00> : vector<128x256xf32>
    %71 = tpu.matmul %68, %70, %cst_36 {dimension_numbers = #tpu.dot_dimension_numbers<[1], [0], [0], [1], [0, 0, 1, 1], [], []>} : vector<128x256xbf16>, vector<256x256xbf16>, vector<128x256xf32> -> vector<128x256xf32>
    %c3_37 = arith.constant 3 : index
    %c0_38 = arith.constant 0 : index
    %c0_39 = arith.constant 0 : index
    %72 = vector.load %arg6[%c3_37, %c0_38, %c0_39] : memref<6x1x256xf32, #tpu.memory_space<vmem>>, vector<1x1x256xf32>
    %73 = vector.shape_cast %72 : vector<1x1x256xf32> to vector<1x256xf32>
    %74 = vector.broadcast %73 : vector<1x256xf32> to vector<128x256xf32>
    %75 = arith.addf %71, %74 : vector<128x256xf32>
    %cst_40 = arith.constant 0.00999999977 : f32
    %76 = vector.broadcast %cst_40 : f32 to vector<128x256xf32>
    %77 = arith.mulf %76, %75 : vector<128x256xf32>
    %78 = arith.maximumf %75, %77 : vector<128x256xf32>
    %79 = arith.truncf %78 : vector<128x256xf32> to vector<128x256xbf16>
    %c4 = arith.constant 4 : index
    %c0_41 = arith.constant 0 : index
    %c0_42 = arith.constant 0 : index
    %80 = vector.load %arg5[%c4, %c0_41, %c0_42] : memref<6x256x256xbf16, #tpu.memory_space<vmem>>, vector<1x256x256xbf16>
    %81 = vector.shape_cast %80 : vector<1x256x256xbf16> to vector<256x256xbf16>
    %cst_43 = arith.constant dense<0.000000e+00> : vector<128x256xf32>
    %82 = tpu.matmul %79, %81, %cst_43 {dimension_numbers = #tpu.dot_dimension_numbers<[1], [0], [0], [1], [0, 0, 1, 1], [], []>} : vector<128x256xbf16>, vector<256x256xbf16>, vector<128x256xf32> -> vector<128x256xf32>
    %c4_44 = arith.constant 4 : index
    %c0_45 = arith.constant 0 : index
    %c0_46 = arith.constant 0 : index
    %83 = vector.load %arg6[%c4_44, %c0_45, %c0_46] : memref<6x1x256xf32, #tpu.memory_space<vmem>>, vector<1x1x256xf32>
    %84 = vector.shape_cast %83 : vector<1x1x256xf32> to vector<1x256xf32>
    %85 = vector.broadcast %84 : vector<1x256xf32> to vector<128x256xf32>
    %86 = arith.addf %82, %85 : vector<128x256xf32>
    %cst_47 = arith.constant 0.00999999977 : f32
    %87 = vector.broadcast %cst_47 : f32 to vector<128x256xf32>
    %88 = arith.mulf %87, %86 : vector<128x256xf32>
    %89 = arith.maximumf %86, %88 : vector<128x256xf32>
    %90 = arith.truncf %89 : vector<128x256xf32> to vector<128x256xbf16>
    %c5 = arith.constant 5 : index
    %c0_48 = arith.constant 0 : index
    %c0_49 = arith.constant 0 : index
    %91 = vector.load %arg5[%c5, %c0_48, %c0_49] : memref<6x256x256xbf16, #tpu.memory_space<vmem>>, vector<1x256x256xbf16>
    %92 = vector.shape_cast %91 : vector<1x256x256xbf16> to vector<256x256xbf16>
    %cst_50 = arith.constant dense<0.000000e+00> : vector<128x256xf32>
    %93 = tpu.matmul %90, %92, %cst_50 {dimension_numbers = #tpu.dot_dimension_numbers<[1], [0], [0], [1], [0, 0, 1, 1], [], []>} : vector<128x256xbf16>, vector<256x256xbf16>, vector<128x256xf32> -> vector<128x256xf32>
    %c5_51 = arith.constant 5 : index
    %c0_52 = arith.constant 0 : index
    %c0_53 = arith.constant 0 : index
    %94 = vector.load %arg6[%c5_51, %c0_52, %c0_53] : memref<6x1x256xf32, #tpu.memory_space<vmem>>, vector<1x1x256xf32>
    %95 = vector.shape_cast %94 : vector<1x1x256xf32> to vector<1x256xf32>
    %96 = vector.broadcast %95 : vector<1x256xf32> to vector<128x256xf32>
    %97 = arith.addf %93, %96 : vector<128x256xf32>
    %cst_54 = arith.constant 0.00999999977 : f32
    %98 = vector.broadcast %cst_54 : f32 to vector<128x256xf32>
    %99 = arith.mulf %98, %97 : vector<128x256xf32>
    %100 = arith.maximumf %97, %99 : vector<128x256xf32>
    %c0_55 = arith.constant 0 : index
    %c0_56 = arith.constant 0 : index
    %101 = vector.load %arg7[%c0_55, %c0_56] : memref<1x256xf32, #tpu.memory_space<vmem>>, vector<1x256xf32>
    %102 = vector.broadcast %101 : vector<1x256xf32> to vector<128x256xf32>
    %103 = arith.mulf %100, %102 : vector<128x256xf32>
    %cst_57 = arith.constant dense<0.000000e+00> : vector<128xf32>
    %104 = vector.multi_reduction <add>, %103, %cst_57 [1] : vector<128x256xf32> to vector<128xf32>
    %105 = vector.shape_cast %104 : vector<128xf32> to vector<128x1xf32>
    %c0_58 = arith.constant 0 : index
    %c0_59 = arith.constant 0 : index
    %106 = vector.load %arg8[%c0_58, %c0_59] : memref<1x1xf32, #tpu.memory_space<vmem>>, vector<1x1xf32>
    %107 = vector.broadcast %106 : vector<1x1xf32> to vector<128x1xf32>
    %108 = arith.addf %105, %107 : vector<128x1xf32>
    %109 = arith.negf %108 : vector<128x1xf32>
    %110 = math.exp %109 : vector<128x1xf32>
    %cst_60 = arith.constant 1.000000e+00 : f32
    %111 = vector.broadcast %cst_60 : f32 to vector<128x1xf32>
    %112 = arith.addf %111, %110 : vector<128x1xf32>
    %113 = arith.divf %111, %112 : vector<128x1xf32>
    %114 = vector.broadcast %113 : vector<128x1xf32> to vector<128x3xf32>
    %115 = arith.mulf %4, %114 : vector<128x3xf32>
    %c0_61 = arith.constant 0 : index
    %c0_62 = arith.constant 0 : index
    %116 = vector.load %arg9[%c0_61, %c0_62] : memref<128x3xf32, #tpu.memory_space<vmem>>, vector<128x3xf32>
    tpu.vector_store %arg9[%c0_61, %c0_62], %115 {strides = array<i32>} : memref<128x3xf32, #tpu.memory_space<vmem>>, vector<128x3xf32>,
    return
  }
  func.func @transform_0(%arg0: i32) -> (i32, i32) {
    %c0_i32 = arith.constant 0 : i32
    %c0_i32_0 = arith.constant 0 : i32
    return %arg0, %c0_i32 : i32, i32
  }
  func.func @transform_1(%arg0: i32) -> (i32, i32) {
    %c0_i32 = arith.constant 0 : i32
    %c0_i32_0 = arith.constant 0 : i32
    %c0_i32_1 = arith.constant 0 : i32
    return %c0_i32, %c0_i32_0 : i32, i32
  }
  func.func @transform_2(%arg0: i32) -> (i32, i32) {
    %c0_i32 = arith.constant 0 : i32
    %c0_i32_0 = arith.constant 0 : i32
    %c0_i32_1 = arith.constant 0 : i32
    return %c0_i32, %c0_i32_0 : i32, i32
  }
  func.func @transform_3(%arg0: i32) -> (i32, i32) {
    %c0_i32 = arith.constant 0 : i32
    %c0_i32_0 = arith.constant 0 : i32
    %c0_i32_1 = arith.constant 0 : i32
    return %c0_i32, %c0_i32_0 : i32, i32
  }
  func.func @transform_4(%arg0: i32) -> (i32, i32, i32) {
    %c0_i32 = arith.constant 0 : i32
    %c0_i32_0 = arith.constant 0 : i32
    %c0_i32_1 = arith.constant 0 : i32
    %c0_i32_2 = arith.constant 0 : i32
    return %c0_i32, %c0_i32_0, %c0_i32_1 : i32, i32, i32
  }
  func.func @transform_5(%arg0: i32) -> (i32, i32, i32) {
    %c0_i32 = arith.constant 0 : i32
    %c0_i32_0 = arith.constant 0 : i32
    %c0_i32_1 = arith.constant 0 : i32
    %c0_i32_2 = arith.constant 0 : i32
    return %c0_i32, %c0_i32_0, %c0_i32_1 : i32, i32, i32
  }
  func.func @transform_6(%arg0: i32) -> (i32, i32) {
    %c0_i32 = arith.constant 0 : i32
    %c0_i32_0 = arith.constant 0 : i32
    %c0_i32_1 = arith.constant 0 : i32
    return %c0_i32, %c0_i32_0 : i32, i32
  }
  func.func @transform_7(%arg0: i32) -> (i32, i32) {
    %c0_i32 = arith.constant 0 : i32
    %c0_i32_0 = arith.constant 0 : i32
    %c0_i32_1 = arith.constant 0 : i32
    return %c0_i32, %c0_i32_0 : i32, i32
  }
  func.func @transform_8(%arg0: i32) -> (i32, i32) {
    %c0_i32 = arith.constant 0 : i32
    %c0_i32_0 = arith.constant 0 : i32
    return %arg0, %c0_i32 : i32, i32
  }
}

</mosaic_0001>

<llo_original>
// kernel: tpu_custom_call.1
$region0: #{tpu_custom_call.1}
  #allocation0 [shape = 'u32[]', space=smem, size = 0x4, offset = 0x4, fixed_abs, tag = 'smem constant byte address 0x4 - core index']
  #allocation1 [shape = 'u32[144,128]{1,0:T(1,128)}', space=vmem, size = 0x12000, scoped, tag = 'internal scratch']
  #allocation2 [shape = 'f32[1,1]{1,0:T(1,128)S(1)}', space=vmem, size = 0x200, scoped, tag = 'scoped memory for tpu_custom_call.1']
  %s0 = inlined_call_operand.hbm [shape: f32[256,16], index: 0, kind: input, shape index: {}]
  %s1 = inlined_call_operand.hbm [shape: f32[2,256], index: 1, kind: input, shape index: {}]
  %s2 = inlined_call_operand.hbm [shape: f32[1,256], index: 2, kind: input, shape index: {}]
  %s3 = inlined_call_operand.hbm [shape: f32[2,256], index: 3, kind: input, shape index: {}]
  %s4 = inlined_call_operand.hbm [shape: bf16[6,256,256], index: 4, kind: input, shape index: {}]
  %s5 = inlined_call_operand.hbm [shape: f32[6,1,256], index: 5, kind: input, shape index: {}]
  %s6 = inlined_call_operand.hbm [shape: f32[1,256], index: 6, kind: input, shape index: {}]
  %s7 = inlined_call_operand.<no memory space> [shape: f32[1,1], index: 7, kind: input, shape index: {}]
  %s8 = inlined_call_operand.hbm [shape: f32[256,3], index: 8, kind: output, shape index: {}]
  %s9 = sld [smem:[#allocation0]]
  $region93: #{tpu_custom_call.1} parent=0
    _
  %s11 = ssub.s32 1, %s9
  %s12 = scalar_select 0, %s11, %s9
  %v13 = vstv %s7
  %14 = vst [vmem:[#allocation2] sm:$0x1] %v13
  $region1: #{tpu_custom_call.1} parent=0
    #allocation3 [shape = 'u8[131072]{0}', space=vmem, size = 0x20000, scoped, tag = 'input window, operand 0']
    #allocation4 [shape = 's32[2]{0}', space=sflag, size = 0x8, scoped, tag = 'scoped memory for tpu_custom_call.1']
    #allocation5 [shape = 's32[2]{0}', space=sflag, size = 0x8, scoped, tag = 'scoped memory for tpu_custom_call.1']
    #allocation6 [shape = 'u8[2048]{0}', space=vmem, size = 0x800, scoped, tag = 'input window, operand 1, single buffered']
    #allocation7 [shape = 's32[1]{0}', space=sflag, size = 0x4, scoped, tag = 'scoped memory for tpu_custom_call.1']
    #allocation8 [shape = 'u8[1024]{0}', space=vmem, size = 0x400, scoped, tag = 'input window, operand 2, single buffered']
    #allocation9 [shape = 'u8[2048]{0}', space=vmem, size = 0x800, scoped, tag = 'input window, operand 3, single buffered']
    #allocation10 [shape = 's32[1]{0}', space=sflag, size = 0x4, scoped, tag = 'scoped memory for tpu_custom_call.1']
    #allocation11 [shape = 'u8[786432]{0}', space=vmem, size = 0xc0000, scoped, tag = 'input window, operand 4, single buffered']
    #allocation12 [shape = 'u8[6144]{0}', space=vmem, size = 0x1800, scoped, tag = 'input window, operand 5, single buffered']
    #allocation13 [shape = 's32[1]{0}', space=sflag, size = 0x4, scoped, tag = 'scoped memory for tpu_custom_call.1']
    #allocation14 [shape = 'u8[1024]{0}', space=vmem, size = 0x400, scoped, tag = 'input window, operand 6, single buffered']
    #allocation15 [shape = 'u8[131072]{0}', space=vmem, size = 0x20000, scoped, tag = 'output window, operand 0']
    %15 = vsyncpa [#allocation4], 0
    %s16 = scalar_lea.sflag [#allocation4], 1
    %17 = vsyncpa %s16, 0
    %18 = vsyncpa [#allocation7], 0
    %19 = vsyncpa [#allocation10], 0
    %20 = vsyncpa [#allocation13], 0
    %21 = vsyncpa [#allocation5], 0
    %s22 = scalar_lea.sflag [#allocation5], 1
    %23 = vsyncpa %s22, 0
    loop: start=0, step=1, limit=4
    $region2: #{tpu_custom_call.1} parent=1 // loop_pre_header
      _
    $region3: #{tpu_custom_call.1} parent=1 // loop_header
      %s25 = sphi 0, %s29
      %p26 = scmp.ge.s32.totalorder %s25, 4
      %s35 = sphi 0, %s37
      %s38 = sphi 0, %s35
      %s39 = sphi 0, %s38
      %s55 = sphi 0, %s39
      %s59 = sphi 0, %s59
      %s61 = sphi 0, %s59
      %s62 = sphi 0, %s61
      %s76 = sphi 0, %s62
      %s80 = sphi 0, %s80
      %s82 = sphi 0, %s80
      %s83 = sphi 0, %s82
      %s97 = sphi 0, %s83
      %s101 = sphi 0, %s101
      %s103 = sphi 0, %s101
      %s104 = sphi 0, %s103
      %s118 = sphi 0, %s104
      %s122 = sphi 0, %s122
      %s124 = sphi 0, %s122
      %s125 = sphi 0, %s124
      %s139 = sphi 0, %s125
      %s143 = sphi 0, %s143
      %s145 = sphi 0, %s143
      %s146 = sphi 0, %s145
      %s160 = sphi 0, %s146
      %s164 = sphi 0, %s164
      %s166 = sphi 0, %s164
      %s167 = sphi 0, %s166
      %s181 = sphi 0, %s167
      %s185 = sphi 0, %s185
      %s187 = sphi 0, %s185
      %s188 = sphi 0, %s187
      %s202 = sphi 0, %s188
      %s208 = sphi 0, %s210
      %s211 = sphi 0, %s208
      %s212 = sphi 0, %s211
      %s228 = sphi 0, %s212
    $region4: #{tpu_custom_call.1} parent=1 // loop_header_branch
      %28 = sbr.rel (%p26) target = $region8
    $region5: #{tpu_custom_call.1} parent=1 // loop_body
      %s30 = ssub.s32 %s25, 1
      %s31 = ssub.s32 %s25, 2
      %s32 = sadd.s32 %s25, 1
      %s33 = ssub.s32 %s25, %s32
      %p34 = scmp.eq.s32.totalorder %s33, 0
      %s36 = sadd.s32 %s35, 1
      %s37 = scalar_select %p34, %s35, %s36
      %p40 = pneg %p34
      %p41 = scmp.eq.s32.totalorder %s25, 1
      %p42 = por %p40, %p41
      %p43 = scmp.ne.s32.totalorder %s35, %s38
      %p44 = scmp.eq.s32.totalorder %s25, 0
      %p45 = por %p43, %p44
      %p46 = scmp.ne.s32.totalorder %s35, %s38
      %p47 = scmp.eq.s32.totalorder %s30, 1
      %p48 = por %p46, %p47
      %p49 = scmp.ne.s32.totalorder %s38, %s39
      %p50 = scmp.eq.s32.totalorder %s30, 0
      %p51 = por %p49, %p50
      %p52 = scmp.ne.s32.totalorder %s38, %s39
      %p53 = scmp.eq.s32.totalorder %s31, 1
      %p54 = por %p52, %p53
      %p56 = scmp.ne.s32.totalorder %s39, %s55
      %p57 = scmp.eq.s32.totalorder %s31, 0
      %p58 = por %p56, %p57
      %s60 = sadd.s32 %s59, 1
      %p63 = scmp.eq.s32.totalorder %s25, 1
      %p64 = scmp.ne.s32.totalorder %s59, %s61
      %p65 = scmp.eq.s32.totalorder %s25, 0
      %p66 = por %p64, %p65
      %p67 = scmp.ne.s32.totalorder %s59, %s61
      %p68 = scmp.eq.s32.totalorder %s30, 1
      %p69 = por %p67, %p68
      %p70 = scmp.ne.s32.totalorder %s61, %s62
      %p71 = scmp.eq.s32.totalorder %s30, 0
      %p72 = por %p70, %p71
      %p73 = scmp.ne.s32.totalorder %s61, %s62
      %p74 = scmp.eq.s32.totalorder %s31, 1
      %p75 = por %p73, %p74
      %p77 = scmp.ne.s32.totalorder %s62, %s76
      %p78 = scmp.eq.s32.totalorder %s31, 0
      %p79 = por %p77, %p78
      %s81 = sadd.s32 %s80, 1
      %p84 = scmp.eq.s32.totalorder %s25, 1
      %p85 = scmp.ne.s32.totalorder %s80, %s82
      %p86 = scmp.eq.s32.totalorder %s25, 0
      %p87 = por %p85, %p86
      %p88 = scmp.ne.s32.totalorder %s80, %s82
      %p89 = scmp.eq.s32.totalorder %s30, 1
      %p90 = por %p88, %p89
      %p91 = scmp.ne.s32.totalorder %s82, %s83
      %p92 = scmp.eq.s32.totalorder %s30, 0
      %p93 = por %p91, %p92
      %p94 = scmp.ne.s32.totalorder %s82, %s83
      %p95 = scmp.eq.s32.totalorder %s31, 1
      %p96 = por %p94, %p95
      %p98 = scmp.ne.s32.totalorder %s83, %s97
      %p99 = scmp.eq.s32.totalorder %s31, 0
      %p100 = por %p98, %p99
      %s102 = sadd.s32 %s101, 1
      %p105 = scmp.eq.s32.totalorder %s25, 1
      %p106 = scmp.ne.s32.totalorder %s101, %s103
      %p107 = scmp.eq.s32.totalorder %s25, 0
      %p108 = por %p106, %p107
      %p109 = scmp.ne.s32.totalorder %s101, %s103
      %p110 = scmp.eq.s32.totalorder %s30, 1
      %p111 = por %p109, %p110
      %p112 = scmp.ne.s32.totalorder %s103, %s104
      %p113 = scmp.eq.s32.totalorder %s30, 0
      %p114 = por %p112, %p113
      %p115 = scmp.ne.s32.totalorder %s103, %s104
      %p116 = scmp.eq.s32.totalorder %s31, 1
      %p117 = por %p115, %p116
      %p119 = scmp.ne.s32.totalorder %s104, %s118
      %p120 = scmp.eq.s32.totalorder %s31, 0
      %p121 = por %p119, %p120
      %s123 = sadd.s32 %s122, 1
      %p126 = scmp.eq.s32.totalorder %s25, 1
      %p127 = scmp.ne.s32.totalorder %s122, %s124
      %p128 = scmp.eq.s32.totalorder %s25, 0
      %p129 = por %p127, %p128
      %p130 = scmp.ne.s32.totalorder %s122, %s124
      %p131 = scmp.eq.s32.totalorder %s30, 1
      %p132 = por %p130, %p131
      %p133 = scmp.ne.s32.totalorder %s124, %s125
      %p134 = scmp.eq.s32.totalorder %s30, 0
      %p135 = por %p133, %p134
      %p136 = scmp.ne.s32.totalorder %s124, %s125
      %p137 = scmp.eq.s32.totalorder %s31, 1
      %p138 = por %p136, %p137
      %p140 = scmp.ne.s32.totalorder %s125, %s139
      %p141 = scmp.eq.s32.totalorder %s31, 0
      %p142 = por %p140, %p141
      %s144 = sadd.s32 %s143, 1
      %p147 = scmp.eq.s32.totalorder %s25, 1
      %p148 = scmp.ne.s32.totalorder %s143, %s145
      %p149 = scmp.eq.s32.totalorder %s25, 0
      %p150 = por %p148, %p149
      %p151 = scmp.ne.s32.totalorder %s143, %s145
      %p152 = scmp.eq.s32.totalorder %s30, 1
      %p153 = por %p151, %p152
      %p154 = scmp.ne.s32.totalorder %s145, %s146
      %p155 = scmp.eq.s32.totalorder %s30, 0
      %p156 = por %p154, %p155
      %p157 = scmp.ne.s32.totalorder %s145, %s146
      %p158 = scmp.eq.s32.totalorder %s31, 1
      %p159 = por %p157, %p158
      %p161 = scmp.ne.s32.totalorder %s146, %s160
      %p162 = scmp.eq.s32.totalorder %s31, 0
      %p163 = por %p161, %p162
      %s165 = sadd.s32 %s164, 1
      %p168 = scmp.eq.s32.totalorder %s25, 1
      %p169 = scmp.ne.s32.totalorder %s164, %s166
      %p170 = scmp.eq.s32.totalorder %s25, 0
      %p171 = por %p169, %p170
      %p172 = scmp.ne.s32.totalorder %s164, %s166
      %p173 = scmp.eq.s32.totalorder %s30, 1
      %p174 = por %p172, %p173
      %p175 = scmp.ne.s32.totalorder %s166, %s167
      %p176 = scmp.eq.s32.totalorder %s30, 0
      %p177 = por %p175, %p176
      %p178 = scmp.ne.s32.totalorder %s166, %s167
      %p179 = scmp.eq.s32.totalorder %s31, 1
      %p180 = por %p178, %p179
      %p182 = scmp.ne.s32.totalorder %s167, %s181
      %p183 = scmp.eq.s32.totalorder %s31, 0
      %p184 = por %p182, %p183
      %s186 = sadd.s32 %s185, 1
      %p189 = scmp.eq.s32.totalorder %s25, 1
      %p190 = scmp.ne.s32.totalorder %s185, %s187
      %p191 = scmp.eq.s32.totalorder %s25, 0
      %p192 = por %p190, %p191
      %p193 = scmp.ne.s32.totalorder %s185, %s187
      %p194 = scmp.eq.s32.totalorder %s30, 1
      %p195 = por %p193, %p194
      %p196 = scmp.ne.s32.totalorder %s187, %s188
      %p197 = scmp.eq.s32.totalorder %s30, 0
      %p198 = por %p196, %p197
      %p199 = scmp.ne.s32.totalorder %s187, %s188
      %p200 = scmp.eq.s32.totalorder %s31, 1
      %p201 = por %p199, %p200
      %p203 = scmp.ne.s32.totalorder %s188, %s202
      %p204 = scmp.eq.s32.totalorder %s31, 0
      %p205 = por %p203, %p204
      %s206 = ssub.s32 %s25, %s32
      %p207 = scmp.eq.s32.totalorder %s206, 0
      %s209 = sadd.s32 %s208, 1
      %s210 = scalar_select %p207, %s208, %s209
      %p213 = pneg %p207
      %p214 = scmp.eq.s32.totalorder %s25, 1
      %p215 = por %p213, %p214
      %p216 = scmp.ne.s32.totalorder %s208, %s211
      %p217 = scmp.eq.s32.totalorder %s25, 0
      %p218 = por %p216, %p217
      %p219 = scmp.ne.s32.totalorder %s208, %s211
      %p220 = scmp.eq.s32.totalorder %s30, 1
      %p221 = por %p219, %p220
      %p222 = scmp.ne.s32.totalorder %s211, %s212
      %p223 = scmp.eq.s32.totalorder %s30, 0
      %p224 = por %p222, %p223
      %p225 = scmp.ne.s32.totalorder %s211, %s212
      %p226 = scmp.eq.s32.totalorder %s31, 1
      %p227 = por %p225, %p226
      %p229 = scmp.ne.s32.totalorder %s212, %s228
      %p230 = scmp.eq.s32.totalorder %s31, 0
      %p231 = por %p229, %p230
      %p232 = scmp.le.s32.totalorder 1, %s25
      %p233 = scmp.lt.s32.totalorder %s25, 3
      %p234 = pnand %p232, %p233
      %p235 = pneg %p234
      // Predicated region
      $region9: #{tpu_custom_call.1} parent=5 // pred_check
        _
      $region10: #{tpu_custom_call.1} parent=5 // pred_check_branch
        %237 = sbr.rel (%p234) target = $region12
      $region11: #{tpu_custom_call.1} parent=5 // pred_region
        %s238 = ssub.s32 %s25, 1
        // Predicated region
        $region13: #{tpu_custom_call.1} parent=11 // pred_check
          %p239 = pneg %p72
        $region14: #{tpu_custom_call.1} parent=11 // pred_check_branch
          %241 = sbr.rel (%p239) target = $region16
        $region15: #{tpu_custom_call.1} parent=11 // pred_region
          %s243 = ssub.s32 64, 64
          %244 = vsyncadd [#allocation7], %s243
          %s246 = sshll.u32 [#allocation6], 4
          %s247 = int_to_ptr.vmem [resolvable:$true] %s246
          %249 = dma.hbm_to_vmem [thread:$0]  %s1, 64, %s247, [#allocation7]
        $region16: #{tpu_custom_call.1} parent=11 // pred_fallthru
          _
        // Predicated region
        $region17: #{tpu_custom_call.1} parent=11 // pred_check
          %p250 = pneg %p93
        $region18: #{tpu_custom_call.1} parent=11 // pred_check_branch
          %252 = sbr.rel (%p250) target = $region20
        $region19: #{tpu_custom_call.1} parent=11 // pred_region
          %s254 = ssub.s32 32, 32
          %255 = vsyncadd [#allocation7], %s254
          %s257 = sshll.u32 [#allocation8], 4
          %s258 = int_to_ptr.vmem [resolvable:$true] %s257
          %260 = dma.hbm_to_vmem [thread:$0]  %s2, 32, %s258, [#allocation7]
        $region20: #{tpu_custom_call.1} parent=11 // pred_fallthru
          _
        // Predicated region
        $region21: #{tpu_custom_call.1} parent=11 // pred_check
          %p261 = pneg %p114
        $region22: #{tpu_custom_call.1} parent=11 // pred_check_branch
          %263 = sbr.rel (%p261) target = $region24
        $region23: #{tpu_custom_call.1} parent=11 // pred_region
          %s265 = ssub.s32 64, 64
          %266 = vsyncadd [#allocation10], %s265
          %s268 = sshll.u32 [#allocation9], 4
          %s269 = int_to_ptr.vmem [resolvable:$true] %s268
          %271 = dma.hbm_to_vmem [thread:$0]  %s3, 64, %s269, [#allocation10]
        $region24: #{tpu_custom_call.1} parent=11 // pred_fallthru
          _
        // Predicated region
        $region25: #{tpu_custom_call.1} parent=11 // pred_check
          %p272 = pneg %p135
        $region26: #{tpu_custom_call.1} parent=11 // pred_check_branch
          %274 = sbr.rel (%p272) target = $region28
        $region27: #{tpu_custom_call.1} parent=11 // pred_region
          %s276 = ssub.s32 24576, 24576
          %277 = vsyncadd [#allocation10], %s276
          %s278 = sshll.u32 [#allocation11], 4
          %s279 = int_to_ptr.vmem [resolvable:$true] %s278
          %284 = dma.hbm_to_vmem [thread:$0]  %s4, 24576, %s279, [#allocation10], 128, 128, 8
        $region28: #{tpu_custom_call.1} parent=11 // pred_fallthru
          _
        // Predicated region
        $region29: #{tpu_custom_call.1} parent=11 // pred_check
          %p285 = pneg %p156
        $region30: #{tpu_custom_call.1} parent=11 // pred_check_branch
          %287 = sbr.rel (%p285) target = $region32
        $region31: #{tpu_custom_call.1} parent=11 // pred_region
          %s289 = ssub.s32 192, 192
          %290 = vsyncadd [#allocation13], %s289
          %s291 = sshll.u32 [#allocation12], 4
          %s292 = int_to_ptr.vmem [resolvable:$true] %s291
          %297 = dma.hbm_to_vmem [thread:$0]  %s5, 192, %s292, [#allocation13], 32, 32, 2
        $region32: #{tpu_custom_call.1} parent=11 // pred_fallthru
          _
        // Predicated region
        $region33: #{tpu_custom_call.1} parent=11 // pred_check
          %p298 = pneg %p177
        $region34: #{tpu_custom_call.1} parent=11 // pred_check_branch
          %300 = sbr.rel (%p298) target = $region36
        $region35: #{tpu_custom_call.1} parent=11 // pred_region
          %s302 = ssub.s32 32, 32
          %303 = vsyncadd [#allocation13], %s302
          %s305 = sshll.u32 [#allocation14], 4
          %s306 = int_to_ptr.vmem [resolvable:$true] %s305
          %308 = dma.hbm_to_vmem [thread:$0]  %s6, 32, %s306, [#allocation13]
        $region36: #{tpu_custom_call.1} parent=11 // pred_fallthru
          _
        // Predicated region
        $region37: #{tpu_custom_call.1} parent=11 // pred_check
          %p309 = pneg %p198
        $region38: #{tpu_custom_call.1} parent=11 // pred_check_branch
          %311 = sbr.rel (%p309) target = $region40
        $region39: #{tpu_custom_call.1} parent=11 // pred_region
          _
        $region40: #{tpu_custom_call.1} parent=11 // pred_fallthru
          _
      $region12: #{tpu_custom_call.1} parent=5 // pred_fallthru
        _
      %p312 = scmp.lt.s32.totalorder %s25, 2
      // Predicated region
      $region41: #{tpu_custom_call.1} parent=5 // pred_check
        %p313 = pneg %p312
      $region42: #{tpu_custom_call.1} parent=5 // pred_check_branch
        %315 = sbr.rel (%p313) target = $region44
      $region43: #{tpu_custom_call.1} parent=5 // pred_region
        // Predicated region
        $region45: #{tpu_custom_call.1} parent=43 // pred_check
          %p316 = pneg %p45
        $region46: #{tpu_custom_call.1} parent=43 // pred_check_branch
          %318 = sbr.rel (%p316) target = $region48
        $region47: #{tpu_custom_call.1} parent=43 // pred_region
          %s319 = sand.u32 %s35, 1
          %s320 = scalar_lea.sflag [#allocation4], %s319
          %s321 = sand.u32 %s35, 1
          %s322 = smul.addr %s321, 128
          %s323 = scalar_lea.vmem [#allocation3], %s322
          %s324 = smul.u32 16, %s25
          %s326 = ssub.s32 2048, 2048
          %327 = vsyncadd %s320, %s326
          %s328 = smul.addr %s324, 128
          %s329 = scalar_lea.hbm %s0, %s328
          %s330 = sshll.u32 %s323, 4
          %s331 = int_to_ptr.vmem [resolvable:$true] %s330
          %336 = dma.hbm_to_vmem [thread:$0]  %s329, 2048, %s331, %s320, 128, 128, 8
        $region48: #{tpu_custom_call.1} parent=43 // pred_fallthru
          _
      $region44: #{tpu_custom_call.1} parent=5 // pred_fallthru
        _
      %p337 = scmp.le.s32.totalorder 1, %s25
      %p338 = scmp.lt.s32.totalorder %s25, 3
      %p339 = pnand %p337, %p338
      %p340 = pneg %p339
      // Predicated region
      $region49: #{tpu_custom_call.1} parent=5 // pred_check
        _
      $region50: #{tpu_custom_call.1} parent=5 // pred_check_branch
        %342 = sbr.rel (%p339) target = $region52
      $region51: #{tpu_custom_call.1} parent=5 // pred_region
        %s343 = ssub.s32 %s25, 1
        %s344 = sand.u32 %s38, 1
        %s345 = scalar_lea.sflag [#allocation4], %s344
        %s346 = sand.u32 %s38, 1
        %s347 = smul.addr %s346, 128
        %s348 = scalar_lea.vmem [#allocation3], %s347
        // Predicated region
        $region53: #{tpu_custom_call.1} parent=51 // pred_check
          %p349 = pneg %p51
        $region54: #{tpu_custom_call.1} parent=51 // pred_check_branch
          %351 = sbr.rel (%p349) target = $region56
        $region55: #{tpu_custom_call.1} parent=51 // pred_region
          %352 = dma.done %s345, 2048
        $region56: #{tpu_custom_call.1} parent=51 // pred_fallthru
          _
        // Predicated region
        $region57: #{tpu_custom_call.1} parent=51 // pred_check
          %p353 = pneg %p72
        $region58: #{tpu_custom_call.1} parent=51 // pred_check_branch
          %355 = sbr.rel (%p353) target = $region60
        $region59: #{tpu_custom_call.1} parent=51 // pred_region
          %356 = dma.done [#allocation7], 64
        $region60: #{tpu_custom_call.1} parent=51 // pred_fallthru
          _
        // Predicated region
        $region61: #{tpu_custom_call.1} parent=51 // pred_check
          %p357 = pneg %p93
        $region62: #{tpu_custom_call.1} parent=51 // pred_check_branch
          %359 = sbr.rel (%p357) target = $region64
        $region63: #{tpu_custom_call.1} parent=51 // pred_region
          %360 = dma.done [#allocation7], 32
        $region64: #{tpu_custom_call.1} parent=51 // pred_fallthru
          _
        // Predicated region
        $region65: #{tpu_custom_call.1} parent=51 // pred_check
          %p361 = pneg %p114
        $region66: #{tpu_custom_call.1} parent=51 // pred_check_branch
          %363 = sbr.rel (%p361) target = $region68
        $region67: #{tpu_custom_call.1} parent=51 // pred_region
          %364 = dma.done [#allocation10], 64
        $region68: #{tpu_custom_call.1} parent=51 // pred_fallthru
          _
        // Predicated region
        $region69: #{tpu_custom_call.1} parent=51 // pred_check
          %p365 = pneg %p135
        $region70: #{tpu_custom_call.1} parent=51 // pred_check_branch
          %367 = sbr.rel (%p365) target = $region72
        $region71: #{tpu_custom_call.1} parent=51 // pred_region
          %368 = dma.done [#allocation10], 24576
        $region72: #{tpu_custom_call.1} parent=51 // pred_fallthru
          _
        // Predicated region
        $region73: #{tpu_custom_call.1} parent=51 // pred_check
          %p369 = pneg %p156
        $region74: #{tpu_custom_call.1} parent=51 // pred_check_branch
          %371 = sbr.rel (%p369) target = $region76
        $region75: #{tpu_custom_call.1} parent=51 // pred_region
          %372 = dma.done [#allocation13], 192
        $region76: #{tpu_custom_call.1} parent=51 // pred_fallthru
          _
        // Predicated region
        $region77: #{tpu_custom_call.1} parent=51 // pred_check
          %p373 = pneg %p177
        $region78: #{tpu_custom_call.1} parent=51 // pred_check_branch
          %375 = sbr.rel (%p373) target = $region80
        $region79: #{tpu_custom_call.1} parent=51 // pred_region
          %376 = dma.done [#allocation13], 32
        $region80: #{tpu_custom_call.1} parent=51 // pred_fallthru
          _
        %s377 = sand.u32 %s38, 1
        %s378 = scalar_lea.sflag [#allocation4], %s377
        %s379 = sand.u32 %s38, 1
        %s380 = smul.addr %s379, 128
        %s381 = scalar_lea.vmem [#allocation3], %s380
        %p382 = pneg %p51
        %p383 = pneg %p48
        %p384 = pneg %p72
        %p385 = pneg %p69
        %p386 = pneg %p93
        %p387 = pneg %p90
        %p388 = pneg %p114
        %p389 = pneg %p111
        %p390 = pneg %p135
        %p391 = pneg %p132
        %p392 = pneg %p156
        %p393 = pneg %p153
        %p394 = pneg %p177
        %p395 = pneg %p174
        %p396 = pneg %p198
        %p397 = pneg %p195
        %p398 = pneg %p224
        %p399 = pneg %p221
        %s400 = sand.u32 %s211, 1
        %s401 = scalar_lea.sflag [#allocation5], %s400
        %s402 = sand.u32 %s211, 1
        %s403 = smul.addr %s402, 128
        %s404 = scalar_lea.vmem [#allocation15], %s403
        %s405 = smul.u32 16, %s30
        %s406 = smul.u32 16, %s30
        %v407 = vld [vmem:[%s348] sm:$0xff]
        %v408 = vld [vmem:[%s348 + $0x8] sm:$0xff]
        %v409 = vld [vmem:[%s348 + $0x10] sm:$0xff]
        %v410 = vld [vmem:[%s348 + $0x18] sm:$0xff]
        %v411 = vld [vmem:[%s348 + $0x20] sm:$0xff]
        %v412 = vld [vmem:[%s348 + $0x28] sm:$0xff]
        %v413 = vld [vmem:[%s348 + $0x30] sm:$0xff]
        %v414 = vld [vmem:[%s348 + $0x38] sm:$0xff]
        %v415 = vld [vmem:[%s348 + $0x40] sm:$0xff]
        %v416 = vld [vmem:[%s348 + $0x48] sm:$0xff]
        %v417 = vld [vmem:[%s348 + $0x50] sm:$0xff]
        %v418 = vld [vmem:[%s348 + $0x58] sm:$0xff]
        %v419 = vld [vmem:[%s348 + $0x60] sm:$0xff]
        %v420 = vld [vmem:[%s348 + $0x68] sm:$0xff]
        %v421 = vld [vmem:[%s348 + $0x70] sm:$0xff]
        %v422 = vld [vmem:[%s348 + $0x78] sm:$0xff]
        %439 = vrot.lane.b32.xlu0 %v407, 125
        %v440 = vpop.permute.xlu0 %439
        %441 = vrot.lane.b32.xlu0 %v408, 125
        %v442 = vpop.permute.xlu0 %441
        %443 = vrot.lane.b32.xlu0 %v409, 125
        %v444 = vpop.permute.xlu0 %443
        %445 = vrot.lane.b32.xlu0 %v410, 125
        %v446 = vpop.permute.xlu0 %445
        %447 = vrot.lane.b32.xlu0 %v411, 125
        %v448 = vpop.permute.xlu0 %447
        %449 = vrot.lane.b32.xlu0 %v412, 125
        %v450 = vpop.permute.xlu0 %449
        %451 = vrot.lane.b32.xlu0 %v413, 125
        %v452 = vpop.permute.xlu0 %451
        %453 = vrot.lane.b32.xlu0 %v414, 125
        %v454 = vpop.permute.xlu0 %453
        %455 = vrot.lane.b32.xlu0 %v415, 125
        %v456 = vpop.permute.xlu0 %455
        %457 = vrot.lane.b32.xlu0 %v416, 125
        %v458 = vpop.permute.xlu0 %457
        %459 = vrot.lane.b32.xlu0 %v417, 125
        %v460 = vpop.permute.xlu0 %459
        %461 = vrot.lane.b32.xlu0 %v418, 125
        %v462 = vpop.permute.xlu0 %461
        %463 = vrot.lane.b32.xlu0 %v419, 125
        %v464 = vpop.permute.xlu0 %463
        %465 = vrot.lane.b32.xlu0 %v420, 125
        %v466 = vpop.permute.xlu0 %465
        %467 = vrot.lane.b32.xlu0 %v421, 125
        %v468 = vpop.permute.xlu0 %467
        %469 = vrot.lane.b32.xlu0 %v422, 125
        %v470 = vpop.permute.xlu0 %469
        %v487 = vsub.f32 %v407, %v440
        %v488 = vsub.f32 %v408, %v442
        %v489 = vsub.f32 %v409, %v444
        %v490 = vsub.f32 %v410, %v446
        %v491 = vsub.f32 %v411, %v448
        %v492 = vsub.f32 %v412, %v450
        %v493 = vsub.f32 %v413, %v452
        %v494 = vsub.f32 %v414, %v454
        %v495 = vsub.f32 %v415, %v456
        %v496 = vsub.f32 %v416, %v458
        %v497 = vsub.f32 %v417, %v460
        %v498 = vsub.f32 %v418, %v462
        %v499 = vsub.f32 %v419, %v464
        %v500 = vsub.f32 %v420, %v466
        %v501 = vsub.f32 %v421, %v468
        %v502 = vsub.f32 %v422, %v470
        %v503 = vmul.f32 %v487, %v487
        %v504 = vmul.f32 %v488, %v488
        %v505 = vmul.f32 %v489, %v489
        %v506 = vmul.f32 %v490, %v490
        %v507 = vmul.f32 %v491, %v491
        %v508 = vmul.f32 %v492, %v492
        %v509 = vmul.f32 %v493, %v493
        %v510 = vmul.f32 %v494, %v494
        %v511 = vmul.f32 %v495, %v495
        %v512 = vmul.f32 %v496, %v496
        %v513 = vmul.f32 %v497, %v497
        %v514 = vmul.f32 %v498, %v498
        %v515 = vmul.f32 %v499, %v499
        %v516 = vmul.f32 %v500, %v500
        %v517 = vmul.f32 %v501, %v501
        %v518 = vmul.f32 %v502, %v502
        %vm519 = vcmask 23552
        %v520 = vsel %vm519, %v503, 0.0
        %521 = vadd.xlane.f32.xlu0 %v520
        %v522 = vpop.xlane.xlu0 %521
        %v523 = vsel %vm519, %v504, 0.0
        %524 = vadd.xlane.f32.xlu0 %v523
        %v525 = vpop.xlane.xlu0 %524
        %v526 = vsel %vm519, %v505, 0.0
        %527 = vadd.xlane.f32.xlu0 %v526
        %v528 = vpop.xlane.xlu0 %527
        %v529 = vsel %vm519, %v506, 0.0
        %530 = vadd.xlane.f32.xlu0 %v529
        %v531 = vpop.xlane.xlu0 %530
        %v532 = vsel %vm519, %v507, 0.0
        %533 = vadd.xlane.f32.xlu0 %v532
        %v534 = vpop.xlane.xlu0 %533
        %v535 = vsel %vm519, %v508, 0.0
        %536 = vadd.xlane.f32.xlu0 %v535
        %v537 = vpop.xlane.xlu0 %536
        %v538 = vsel %vm519, %v509, 0.0
        %539 = vadd.xlane.f32.xlu0 %v538
        %v540 = vpop.xlane.xlu0 %539
        %v541 = vsel %vm519, %v510, 0.0
        %542 = vadd.xlane.f32.xlu0 %v541
        %v543 = vpop.xlane.xlu0 %542
        %v544 = vsel %vm519, %v511, 0.0
        %545 = vadd.xlane.f32.xlu0 %v544
        %v546 = vpop.xlane.xlu0 %545
        %v547 = vsel %vm519, %v512, 0.0
        %548 = vadd.xlane.f32.xlu0 %v547
        %v549 = vpop.xlane.xlu0 %548
        %v550 = vsel %vm519, %v513, 0.0
        %551 = vadd.xlane.f32.xlu0 %v550
        %v552 = vpop.xlane.xlu0 %551
        %v553 = vsel %vm519, %v514, 0.0
        %554 = vadd.xlane.f32.xlu0 %v553
        %v555 = vpop.xlane.xlu0 %554
        %v556 = vsel %vm519, %v515, 0.0
        %557 = vadd.xlane.f32.xlu0 %v556
        %v558 = vpop.xlane.xlu0 %557
        %v559 = vsel %vm519, %v516, 0.0
        %560 = vadd.xlane.f32.xlu0 %v559
        %v561 = vpop.xlane.xlu0 %560
        %v562 = vsel %vm519, %v517, 0.0
        %563 = vadd.xlane.f32.xlu0 %v562
        %v564 = vpop.xlane.xlu0 %563
        %v565 = vsel %vm519, %v518, 0.0
        %566 = vadd.xlane.f32.xlu0 %v565
        %v567 = vpop.xlane.xlu0 %566
        %v568 = vrsqrt.pop %v522
        %v569 = vmul.f32 %v522, %v568
        %vm570 = vcmp.eq.f32.partialorder %v522, inf
        %v571 = vsel %vm570, %v522, %v569
        %vm572 = vcmp.eq.f32.partialorder %v522, 0.0
        %v573 = vand.u32 %v522, 2147483648
        %v574 = vsel %vm572, %v573, %v571
        %v575 = vrsqrt.pop %v525
        %v576 = vmul.f32 %v525, %v575
        %vm577 = vcmp.eq.f32.partialorder %v525, inf
        %v578 = vsel %vm577, %v525, %v576
        %vm579 = vcmp.eq.f32.partialorder %v525, 0.0
        %v580 = vand.u32 %v525, 2147483648
        %v581 = vsel %vm579, %v580, %v578
        %v582 = vrsqrt.pop %v528
        %v583 = vmul.f32 %v528, %v582
        %vm584 = vcmp.eq.f32.partialorder %v528, inf
        %v585 = vsel %vm584, %v528, %v583
        %vm586 = vcmp.eq.f32.partialorder %v528, 0.0
        %v587 = vand.u32 %v528, 2147483648
        %v588 = vsel %vm586, %v587, %v585
        %v589 = vrsqrt.pop %v531
        %v590 = vmul.f32 %v531, %v589
        %vm591 = vcmp.eq.f32.partialorder %v531, inf
        %v592 = vsel %vm591, %v531, %v590
        %vm593 = vcmp.eq.f32.partialorder %v531, 0.0
        %v594 = vand.u32 %v531, 2147483648
        %v595 = vsel %vm593, %v594, %v592
        %v596 = vrsqrt.pop %v534
        %v597 = vmul.f32 %v534, %v596
        %vm598 = vcmp.eq.f32.partialorder %v534, inf
        %v599 = vsel %vm598, %v534, %v597
        %vm600 = vcmp.eq.f32.partialorder %v534, 0.0
        %v601 = vand.u32 %v534, 2147483648
        %v602 = vsel %vm600, %v601, %v599
        %v603 = vrsqrt.pop %v537
        %v604 = vmul.f32 %v537, %v603
        %vm605 = vcmp.eq.f32.partialorder %v537, inf
        %v606 = vsel %vm605, %v537, %v604
        %vm607 = vcmp.eq.f32.partialorder %v537, 0.0
        %v608 = vand.u32 %v537, 2147483648
        %v609 = vsel %vm607, %v608, %v606
        %v610 = vrsqrt.pop %v540
        %v611 = vmul.f32 %v540, %v610
        %vm612 = vcmp.eq.f32.partialorder %v540, inf
        %v613 = vsel %vm612, %v540, %v611
        %vm614 = vcmp.eq.f32.partialorder %v540, 0.0
        %v615 = vand.u32 %v540, 2147483648
        %v616 = vsel %vm614, %v615, %v613
        %v617 = vrsqrt.pop %v543
        %v618 = vmul.f32 %v543, %v617
        %vm619 = vcmp.eq.f32.partialorder %v543, inf
        %v620 = vsel %vm619, %v543, %v618
        %vm621 = vcmp.eq.f32.partialorder %v543, 0.0
        %v622 = vand.u32 %v543, 2147483648
        %v623 = vsel %vm621, %v622, %v620
        %v624 = vrsqrt.pop %v546
        %v625 = vmul.f32 %v546, %v624
        %vm626 = vcmp.eq.f32.partialorder %v546, inf
        %v627 = vsel %vm626, %v546, %v625
        %vm628 = vcmp.eq.f32.partialorder %v546, 0.0
        %v629 = vand.u32 %v546, 2147483648
        %v630 = vsel %vm628, %v629, %v627
        %v631 = vrsqrt.pop %v549
        %v632 = vmul.f32 %v549, %v631
        %vm633 = vcmp.eq.f32.partialorder %v549, inf
        %v634 = vsel %vm633, %v549, %v632
        %vm635 = vcmp.eq.f32.partialorder %v549, 0.0
        %v636 = vand.u32 %v549, 2147483648
        %v637 = vsel %vm635, %v636, %v634
        %v638 = vrsqrt.pop %v552
        %v639 = vmul.f32 %v552, %v638
        %vm640 = vcmp.eq.f32.partialorder %v552, inf
        %v641 = vsel %vm640, %v552, %v639
        %vm642 = vcmp.eq.f32.partialorder %v552, 0.0
        %v643 = vand.u32 %v552, 2147483648
        %v644 = vsel %vm642, %v643, %v641
        %v645 = vrsqrt.pop %v555
        %v646 = vmul.f32 %v555, %v645
        %vm647 = vcmp.eq.f32.partialorder %v555, inf
        %v648 = vsel %vm647, %v555, %v646
        %vm649 = vcmp.eq.f32.partialorder %v555, 0.0
        %v650 = vand.u32 %v555, 2147483648
        %v651 = vsel %vm649, %v650, %v648
        %v652 = vrsqrt.pop %v558
        %v653 = vmul.f32 %v558, %v652
        %vm654 = vcmp.eq.f32.partialorder %v558, inf
        %v655 = vsel %vm654, %v558, %v653
        %vm656 = vcmp.eq.f32.partialorder %v558, 0.0
        %v657 = vand.u32 %v558, 2147483648
        %v658 = vsel %vm656, %v657, %v655
        %v659 = vrsqrt.pop %v561
        %v660 = vmul.f32 %v561, %v659
        %vm661 = vcmp.eq.f32.partialorder %v561, inf
        %v662 = vsel %vm661, %v561, %v660
        %vm663 = vcmp.eq.f32.partialorder %v561, 0.0
        %v664 = vand.u32 %v561, 2147483648
        %v665 = vsel %vm663, %v664, %v662
        %v666 = vrsqrt.pop %v564
        %v667 = vmul.f32 %v564, %v666
        %vm668 = vcmp.eq.f32.partialorder %v564, inf
        %v669 = vsel %vm668, %v564, %v667
        %vm670 = vcmp.eq.f32.partialorder %v564, 0.0
        %v671 = vand.u32 %v564, 2147483648
        %v672 = vsel %vm670, %v671, %v669
        %v673 = vrsqrt.pop %v567
        %v674 = vmul.f32 %v567, %v673
        %vm675 = vcmp.eq.f32.partialorder %v567, inf
        %v676 = vsel %vm675, %v567, %v674
        %vm677 = vcmp.eq.f32.partialorder %v567, 0.0
        %v678 = vand.u32 %v567, 2147483648
        %v679 = vsel %vm677, %v678, %v676
        %v680 = vld [vmem:[#allocation9] ss:$2 sm:$0x3]
        %681 = vset.pattern.permute.xlu0 6
        %682 = vperm.xlu0 %681, %v407
        %v683 = vpop.permute.xlu0 %682
        %685 = vset.pattern.permute.xlu0 6
        %686 = vperm.xlu0 %685, %v408
        %v687 = vpop.permute.xlu0 %686
        %689 = vset.pattern.permute.xlu0 6
        %690 = vperm.xlu0 %689, %v409
        %v691 = vpop.permute.xlu0 %690
        %693 = vset.pattern.permute.xlu0 6
        %694 = vperm.xlu0 %693, %v410
        %v695 = vpop.permute.xlu0 %694
        %697 = vset.pattern.permute.xlu0 6
        %698 = vperm.xlu0 %697, %v411
        %v699 = vpop.permute.xlu0 %698
        %701 = vset.pattern.permute.xlu0 6
        %702 = vperm.xlu0 %701, %v412
        %v703 = vpop.permute.xlu0 %702
        %705 = vset.pattern.permute.xlu0 6
        %706 = vperm.xlu0 %705, %v413
        %v707 = vpop.permute.xlu0 %706
        %709 = vset.pattern.permute.xlu0 6
        %710 = vperm.xlu0 %709, %v414
        %v711 = vpop.permute.xlu0 %710
        %713 = vset.pattern.permute.xlu0 6
        %714 = vperm.xlu0 %713, %v415
        %v715 = vpop.permute.xlu0 %714
        %717 = vset.pattern.permute.xlu0 6
        %718 = vperm.xlu0 %717, %v416
        %v719 = vpop.permute.xlu0 %718
        %721 = vset.pattern.permute.xlu0 6
        %722 = vperm.xlu0 %721, %v417
        %v723 = vpop.permute.xlu0 %722
        %725 = vset.pattern.permute.xlu0 6
        %726 = vperm.xlu0 %725, %v418
        %v727 = vpop.permute.xlu0 %726
        %729 = vset.pattern.permute.xlu0 6
        %730 = vperm.xlu0 %729, %v419
        %v731 = vpop.permute.xlu0 %730
        %733 = vset.pattern.permute.xlu0 6
        %734 = vperm.xlu0 %733, %v420
        %v735 = vpop.permute.xlu0 %734
        %737 = vset.pattern.permute.xlu0 6
        %738 = vperm.xlu0 %737, %v421
        %v739 = vpop.permute.xlu0 %738
        %741 = vset.pattern.permute.xlu0 6
        %742 = vperm.xlu0 %741, %v422
        %v743 = vpop.permute.xlu0 %742
        %v746 = vlaneseq
        %v747 = vshrl.u32 %v746, 7
        %v748 = vsub.s32 0, %v747
        %v749 = vrot.slane %v680, %v748
        %v750 = vlaneseq
        %v751 = vshrl.u32 %v750, 7
        %v752 = vsub.s32 1, %v751
        %v753 = vrot.slane %v680, %v752
        %v756 = vmul.f32 %v683, %v749
        %v757 = vmul.f32 %v683, %v753
        %v758 = vmul.f32 %v687, %v749
        %v759 = vmul.f32 %v687, %v753
        %v760 = vmul.f32 %v691, %v749
        %v761 = vmul.f32 %v691, %v753
        %v762 = vmul.f32 %v695, %v749
        %v763 = vmul.f32 %v695, %v753
        %v764 = vmul.f32 %v699, %v749
        %v765 = vmul.f32 %v699, %v753
        %v766 = vmul.f32 %v703, %v749
        %v767 = vmul.f32 %v703, %v753
        %v768 = vmul.f32 %v707, %v749
        %v769 = vmul.f32 %v707, %v753
        %v770 = vmul.f32 %v711, %v749
        %v771 = vmul.f32 %v711, %v753
        %v772 = vmul.f32 %v715, %v749
        %v773 = vmul.f32 %v715, %v753
        %v774 = vmul.f32 %v719, %v749
        %v775 = vmul.f32 %v719, %v753
        %v776 = vmul.f32 %v723, %v749
        %v777 = vmul.f32 %v723, %v753
        %v778 = vmul.f32 %v727, %v749
        %v779 = vmul.f32 %v727, %v753
        %v780 = vmul.f32 %v731, %v749
        %v781 = vmul.f32 %v731, %v753
        %v782 = vmul.f32 %v735, %v749
        %v783 = vmul.f32 %v735, %v753
        %v784 = vmul.f32 %v739, %v749
        %v785 = vmul.f32 %v739, %v753
        %v786 = vmul.f32 %v743, %v749
        %v787 = vmul.f32 %v743, %v753
        %s788 = scalar_lea.vmem [#allocation9], 1
        %v789 = vld [vmem:[%s788] ss:$2 sm:$0x3]
        %v791 = vlaneseq
        %v792 = vshrl.u32 %v791, 7
        %v793 = vsub.s32 0, %v792
        %v794 = vrot.slane %v789, %v793
        %v795 = vlaneseq
        %v796 = vshrl.u32 %v795, 7
        %v797 = vsub.s32 1, %v796
        %v798 = vrot.slane %v789, %v797
        %v801 = vmul.f32 %v574, %v794
        %v802 = vmul.f32 %v574, %v798
        %v803 = vmul.f32 %v581, %v794
        %v804 = vmul.f32 %v581, %v798
        %v805 = vmul.f32 %v588, %v794
        %v806 = vmul.f32 %v588, %v798
        %v807 = vmul.f32 %v595, %v794
        %v808 = vmul.f32 %v595, %v798
        %v809 = vmul.f32 %v602, %v794
        %v810 = vmul.f32 %v602, %v798
        %v811 = vmul.f32 %v609, %v794
        %v812 = vmul.f32 %v609, %v798
        %v813 = vmul.f32 %v616, %v794
        %v814 = vmul.f32 %v616, %v798
        %v815 = vmul.f32 %v623, %v794
        %v816 = vmul.f32 %v623, %v798
        %v817 = vmul.f32 %v630, %v794
        %v818 = vmul.f32 %v630, %v798
        %v819 = vmul.f32 %v637, %v794
        %v820 = vmul.f32 %v637, %v798
        %v821 = vmul.f32 %v644, %v794
        %v822 = vmul.f32 %v644, %v798
        %v823 = vmul.f32 %v651, %v794
        %v824 = vmul.f32 %v651, %v798
        %v825 = vmul.f32 %v658, %v794
        %v826 = vmul.f32 %v658, %v798
        %v827 = vmul.f32 %v665, %v794
        %v828 = vmul.f32 %v665, %v798
        %v829 = vmul.f32 %v672, %v794
        %v830 = vmul.f32 %v672, %v798
        %v831 = vmul.f32 %v679, %v794
        %v832 = vmul.f32 %v679, %v798
        %v833 = vadd.f32 %v756, %v801
        %v834 = vadd.f32 %v757, %v802
        %v835 = vadd.f32 %v758, %v803
        %v836 = vadd.f32 %v759, %v804
        %v837 = vadd.f32 %v760, %v805
        %v838 = vadd.f32 %v761, %v806
        %v839 = vadd.f32 %v762, %v807
        %v840 = vadd.f32 %v763, %v808
        %v841 = vadd.f32 %v764, %v809
        %v842 = vadd.f32 %v765, %v810
        %v843 = vadd.f32 %v766, %v811
        %v844 = vadd.f32 %v767, %v812
        %v845 = vadd.f32 %v768, %v813
        %v846 = vadd.f32 %v769, %v814
        %v847 = vadd.f32 %v770, %v815
        %v848 = vadd.f32 %v771, %v816
        %v849 = vadd.f32 %v772, %v817
        %v850 = vadd.f32 %v773, %v818
        %v851 = vadd.f32 %v774, %v819
        %v852 = vadd.f32 %v775, %v820
        %v853 = vadd.f32 %v776, %v821
        %v854 = vadd.f32 %v777, %v822
        %v855 = vadd.f32 %v778, %v823
        %v856 = vadd.f32 %v779, %v824
        %v857 = vadd.f32 %v780, %v825
        %v858 = vadd.f32 %v781, %v826
        %v859 = vadd.f32 %v782, %v827
        %v860 = vadd.f32 %v783, %v828
        %v861 = vadd.f32 %v784, %v829
        %v862 = vadd.f32 %v785, %v830
        %v863 = vadd.f32 %v786, %v831
        %v864 = vadd.f32 %v787, %v832
        %v865 = vld [vmem:[#allocation6] ss:$2 sm:$0x3]
        %v867 = vlaneseq
        %v868 = vshrl.u32 %v867, 7
        %v869 = vsub.s32 0, %v868
        %v870 = vrot.slane %v865, %v869
        %v871 = vlaneseq
        %v872 = vshrl.u32 %v871, 7
        %v873 = vsub.s32 1, %v872
        %v874 = vrot.slane %v865, %v873
        %v877 = vmul.f32 %v683, %v870
        %v878 = vmul.f32 %v683, %v874
        %v879 = vmul.f32 %v687, %v870
        %v880 = vmul.f32 %v687, %v874
        %v881 = vmul.f32 %v691, %v870
        %v882 = vmul.f32 %v691, %v874
        %v883 = vmul.f32 %v695, %v870
        %v884 = vmul.f32 %v695, %v874
        %v885 = vmul.f32 %v699, %v870
        %v886 = vmul.f32 %v699, %v874
        %v887 = vmul.f32 %v703, %v870
        %v888 = vmul.f32 %v703, %v874
        %v889 = vmul.f32 %v707, %v870
        %v890 = vmul.f32 %v707, %v874
        %v891 = vmul.f32 %v711, %v870
        %v892 = vmul.f32 %v711, %v874
        %v893 = vmul.f32 %v715, %v870
        %v894 = vmul.f32 %v715, %v874
        %v895 = vmul.f32 %v719, %v870
        %v896 = vmul.f32 %v719, %v874
        %v897 = vmul.f32 %v723, %v870
        %v898 = vmul.f32 %v723, %v874
        %v899 = vmul.f32 %v727, %v870
        %v900 = vmul.f32 %v727, %v874
        %v901 = vmul.f32 %v731, %v870
        %v902 = vmul.f32 %v731, %v874
        %v903 = vmul.f32 %v735, %v870
        %v904 = vmul.f32 %v735, %v874
        %v905 = vmul.f32 %v739, %v870
        %v906 = vmul.f32 %v739, %v874
        %v907 = vmul.f32 %v743, %v870
        %v908 = vmul.f32 %v743, %v874
        %s909 = scalar_lea.vmem [#allocation6], 1
        %v910 = vld [vmem:[%s909] ss:$2 sm:$0x3]
        %v912 = vlaneseq
        %v913 = vshrl.u32 %v912, 7
        %v914 = vsub.s32 0, %v913
        %v915 = vrot.slane %v910, %v914
        %v916 = vlaneseq
        %v917 = vshrl.u32 %v916, 7
        %v918 = vsub.s32 1, %v917
        %v919 = vrot.slane %v910, %v918
        %v922 = vmul.f32 %v574, %v915
        %v923 = vmul.f32 %v574, %v919
        %v924 = vmul.f32 %v581, %v915
        %v925 = vmul.f32 %v581, %v919
        %v926 = vmul.f32 %v588, %v915
        %v927 = vmul.f32 %v588, %v919
        %v928 = vmul.f32 %v595, %v915
        %v929 = vmul.f32 %v595, %v919
        %v930 = vmul.f32 %v602, %v915
        %v931 = vmul.f32 %v602, %v919
        %v932 = vmul.f32 %v609, %v915
        %v933 = vmul.f32 %v609, %v919
        %v934 = vmul.f32 %v616, %v915
        %v935 = vmul.f32 %v616, %v919
        %v936 = vmul.f32 %v623, %v915
        %v937 = vmul.f32 %v623, %v919
        %v938 = vmul.f32 %v630, %v915
        %v939 = vmul.f32 %v630, %v919
        %v940 = vmul.f32 %v637, %v915
        %v941 = vmul.f32 %v637, %v919
        %v942 = vmul.f32 %v644, %v915
        %v943 = vmul.f32 %v644, %v919
        %v944 = vmul.f32 %v651, %v915
        %v945 = vmul.f32 %v651, %v919
        %v946 = vmul.f32 %v658, %v915
        %v947 = vmul.f32 %v658, %v919
        %v948 = vmul.f32 %v665, %v915
        %v949 = vmul.f32 %v665, %v919
        %v950 = vmul.f32 %v672, %v915
        %v951 = vmul.f32 %v672, %v919
        %v952 = vmul.f32 %v679, %v915
        %v953 = vmul.f32 %v679, %v919
        %v954 = vadd.f32 %v877, %v922
        %v955 = vadd.f32 %v878, %v923
        %v956 = vadd.f32 %v879, %v924
        %v957 = vadd.f32 %v880, %v925
        %v958 = vadd.f32 %v881, %v926
        %v959 = vadd.f32 %v882, %v927
        %v960 = vadd.f32 %v883, %v928
        %v961 = vadd.f32 %v884, %v929
        %v962 = vadd.f32 %v885, %v930
        %v963 = vadd.f32 %v886, %v931
        %v964 = vadd.f32 %v887, %v932
        %v965 = vadd.f32 %v888, %v933
        %v966 = vadd.f32 %v889, %v934
        %v967 = vadd.f32 %v890, %v935
        %v968 = vadd.f32 %v891, %v936
        %v969 = vadd.f32 %v892, %v937
        %v970 = vadd.f32 %v893, %v938
        %v971 = vadd.f32 %v894, %v939
        %v972 = vadd.f32 %v895, %v940
        %v973 = vadd.f32 %v896, %v941
        %v974 = vadd.f32 %v897, %v942
        %v975 = vadd.f32 %v898, %v943
        %v976 = vadd.f32 %v899, %v944
        %v977 = vadd.f32 %v900, %v945
        %v978 = vadd.f32 %v901, %v946
        %v979 = vadd.f32 %v902, %v947
        %v980 = vadd.f32 %v903, %v948
        %v981 = vadd.f32 %v904, %v949
        %v982 = vadd.f32 %v905, %v950
        %v983 = vadd.f32 %v906, %v951
        %v984 = vadd.f32 %v907, %v952
        %v985 = vadd.f32 %v908, %v953
        %v986 = vld [vmem:[#allocation8] sm:$0x3]
        %v988 = vlaneseq
        %v989 = vshrl.u32 %v988, 7
        %v990 = vsub.s32 0, %v989
        %v991 = vrot.slane %v986, %v990
        %v992 = vlaneseq
        %v993 = vshrl.u32 %v992, 7
        %v994 = vsub.s32 1, %v993
        %v995 = vrot.slane %v986, %v994
        %v998 = vadd.f32 %v954, %v991
        %v999 = vadd.f32 %v955, %v995
        %v1000 = vadd.f32 %v956, %v991
        %v1001 = vadd.f32 %v957, %v995
        %v1002 = vadd.f32 %v958, %v991
        %v1003 = vadd.f32 %v959, %v995
        %v1004 = vadd.f32 %v960, %v991
        %v1005 = vadd.f32 %v961, %v995
        %v1006 = vadd.f32 %v962, %v991
        %v1007 = vadd.f32 %v963, %v995
        %v1008 = vadd.f32 %v964, %v991
        %v1009 = vadd.f32 %v965, %v995
        %v1010 = vadd.f32 %v966, %v991
        %v1011 = vadd.f32 %v967, %v995
        %v1012 = vadd.f32 %v968, %v991
        %v1013 = vadd.f32 %v969, %v995
        %v1014 = vadd.f32 %v970, %v991
        %v1015 = vadd.f32 %v971, %v995
        %v1016 = vadd.f32 %v972, %v991
        %v1017 = vadd.f32 %v973, %v995
        %v1018 = vadd.f32 %v974, %v991
        %v1019 = vadd.f32 %v975, %v995
        %v1020 = vadd.f32 %v976, %v991
        %v1021 = vadd.f32 %v977, %v995
        %v1022 = vadd.f32 %v978, %v991
        %v1023 = vadd.f32 %v979, %v995
        %v1024 = vadd.f32 %v980, %v991
        %v1025 = vadd.f32 %v981, %v995
        %v1026 = vadd.f32 %v982, %v991
        %v1027 = vadd.f32 %v983, %v995
        %v1028 = vadd.f32 %v984, %v991
        %v1029 = vadd.f32 %v985, %v995
        %v1030 = vmul.f32 %v998, 0.01
        %v1031 = vmul.f32 %v999, 0.01
        %v1032 = vmul.f32 %v1000, 0.01
        %v1033 = vmul.f32 %v1001, 0.01
        %v1034 = vmul.f32 %v1002, 0.01
        %v1035 = vmul.f32 %v1003, 0.01
        %v1036 = vmul.f32 %v1004, 0.01
        %v1037 = vmul.f32 %v1005, 0.01
        %v1038 = vmul.f32 %v1006, 0.01
        %v1039 = vmul.f32 %v1007, 0.01
        %v1040 = vmul.f32 %v1008, 0.01
        %v1041 = vmul.f32 %v1009, 0.01
        %v1042 = vmul.f32 %v1010, 0.01
        %v1043 = vmul.f32 %v1011, 0.01
        %v1044 = vmul.f32 %v1012, 0.01
        %v1045 = vmul.f32 %v1013, 0.01
        %v1046 = vmul.f32 %v1014, 0.01
        %v1047 = vmul.f32 %v1015, 0.01
        %v1048 = vmul.f32 %v1016, 0.01
        %v1049 = vmul.f32 %v1017, 0.01
        %v1050 = vmul.f32 %v1018, 0.01
        %v1051 = vmul.f32 %v1019, 0.01
        %v1052 = vmul.f32 %v1020, 0.01
        %v1053 = vmul.f32 %v1021, 0.01
        %v1054 = vmul.f32 %v1022, 0.01
        %v1055 = vmul.f32 %v1023, 0.01
        %v1056 = vmul.f32 %v1024, 0.01
        %v1057 = vmul.f32 %v1025, 0.01
        %v1058 = vmul.f32 %v1026, 0.01
        %v1059 = vmul.f32 %v1027, 0.01
        %v1060 = vmul.f32 %v1028, 0.01
        %v1061 = vmul.f32 %v1029, 0.01
        %v1062 = vmax.f32 %v998, %v1030
        %v1063 = vmax.f32 %v999, %v1031
        %v1064 = vmax.f32 %v1000, %v1032
        %v1065 = vmax.f32 %v1001, %v1033
        %v1066 = vmax.f32 %v1002, %v1034
        %v1067 = vmax.f32 %v1003, %v1035
        %v1068 = vmax.f32 %v1004, %v1036
        %v1069 = vmax.f32 %v1005, %v1037
        %v1070 = vmax.f32 %v1006, %v1038
        %v1071 = vmax.f32 %v1007, %v1039
        %v1072 = vmax.f32 %v1008, %v1040
        %v1073 = vmax.f32 %v1009, %v1041
        %v1074 = vmax.f32 %v1010, %v1042
        %v1075 = vmax.f32 %v1011, %v1043
        %v1076 = vmax.f32 %v1012, %v1044
        %v1077 = vmax.f32 %v1013, %v1045
        %v1078 = vmax.f32 %v1014, %v1046
        %v1079 = vmax.f32 %v1015, %v1047
        %v1080 = vmax.f32 %v1016, %v1048
        %v1081 = vmax.f32 %v1017, %v1049
        %v1082 = vmax.f32 %v1018, %v1050
        %v1083 = vmax.f32 %v1019, %v1051
        %v1084 = vmax.f32 %v1020, %v1052
        %v1085 = vmax.f32 %v1021, %v1053
        %v1086 = vmax.f32 %v1022, %v1054
        %v1087 = vmax.f32 %v1023, %v1055
        %v1088 = vmax.f32 %v1024, %v1056
        %v1089 = vmax.f32 %v1025, %v1057
        %v1090 = vmax.f32 %v1026, %v1058
        %v1091 = vmax.f32 %v1027, %v1059
        %v1092 = vmax.f32 %v1028, %v1060
        %v1093 = vmax.f32 %v1029, %v1061
        %v1094 = vpack.c.bf16 %v1064, %v1062
        %v1095 = vpack.c.bf16 %v1065, %v1063
        %v1096 = vpack.c.bf16 %v1068, %v1066
        %v1097 = vpack.c.bf16 %v1069, %v1067
        %v1098 = vpack.c.bf16 %v1072, %v1070
        %v1099 = vpack.c.bf16 %v1073, %v1071
        %v1100 = vpack.c.bf16 %v1076, %v1074
        %v1101 = vpack.c.bf16 %v1077, %v1075
        %v1102 = vpack.c.bf16 %v1080, %v1078
        %v1103 = vpack.c.bf16 %v1081, %v1079
        %v1104 = vpack.c.bf16 %v1084, %v1082
        %v1105 = vpack.c.bf16 %v1085, %v1083
        %v1106 = vpack.c.bf16 %v1088, %v1086
        %v1107 = vpack.c.bf16 %v1089, %v1087
        %v1108 = vpack.c.bf16 %v1092, %v1090
        %v1109 = vpack.c.bf16 %v1093, %v1091
        %v1110 = vld [vmem:[#allocation11] sm:$0xff]
        %v1111 = vld [vmem:[#allocation11 + $0x8] sm:$0xff]
        %v1112 = vld [vmem:[#allocation11 + $0x10] sm:$0xff]
        %v1113 = vld [vmem:[#allocation11 + $0x18] sm:$0xff]
        %v1114 = vld [vmem:[#allocation11 + $0x20] sm:$0xff]
        %v1115 = vld [vmem:[#allocation11 + $0x28] sm:$0xff]
        %v1116 = vld [vmem:[#allocation11 + $0x30] sm:$0xff]
        %v1117 = vld [vmem:[#allocation11 + $0x38] sm:$0xff]
        %v1118 = vld [vmem:[#allocation11 + $0x40] sm:$0xff]
        %v1119 = vld [vmem:[#allocation11 + $0x48] sm:$0xff]
        %v1120 = vld [vmem:[#allocation11 + $0x50] sm:$0xff]
        %v1121 = vld [vmem:[#allocation11 + $0x58] sm:$0xff]
        %v1122 = vld [vmem:[#allocation11 + $0x60] sm:$0xff]
        %v1123 = vld [vmem:[#allocation11 + $0x68] sm:$0xff]
        %v1124 = vld [vmem:[#allocation11 + $0x70] sm:$0xff]
        %v1125 = vld [vmem:[#allocation11 + $0x78] sm:$0xff]
        %v1126 = vld [vmem:[#allocation11 + $0x80] sm:$0xff]
        %v1127 = vld [vmem:[#allocation11 + $0x88] sm:$0xff]
        %v1128 = vld [vmem:[#allocation11 + $0x90] sm:$0xff]
        %v1129 = vld [vmem:[#allocation11 + $0x98] sm:$0xff]
        %v1130 = vld [vmem:[#allocation11 + $0xa0] sm:$0xff]
        %v1131 = vld [vmem:[#allocation11 + $0xa8] sm:$0xff]
        %v1132 = vld [vmem:[#allocation11 + $0xb0] sm:$0xff]
        %v1133 = vld [vmem:[#allocation11 + $0xb8] sm:$0xff]
        %v1134 = vld [vmem:[#allocation11 + $0xc0] sm:$0xff]
        %v1135 = vld [vmem:[#allocation11 + $0xc8] sm:$0xff]
        %v1136 = vld [vmem:[#allocation11 + $0xd0] sm:$0xff]
        %v1137 = vld [vmem:[#allocation11 + $0xd8] sm:$0xff]
        %v1138 = vld [vmem:[#allocation11 + $0xe0] sm:$0xff]
        %v1139 = vld [vmem:[#allocation11 + $0xe8] sm:$0xff]
        %v1140 = vld [vmem:[#allocation11 + $0xf0] sm:$0xff]
        %v1141 = vld [vmem:[#allocation11 + $0xf8] sm:$0xff]
        %v1142 = vld [vmem:[#allocation12] sm:$0x3]
        %v1144 = vlaneseq
        %v1145 = vshrl.u32 %v1144, 7
        %v1146 = vsub.s32 0, %v1145
        %v1147 = vrot.slane %v1142, %v1146
        %v1148 = vlaneseq
        %v1149 = vshrl.u32 %v1148, 7
        %v1150 = vsub.s32 1, %v1149
        %v1151 = vrot.slane %v1142, %v1150
        %v1186 = vunpack.c.l.b16 %v1110
        %v1187 = vunpack.c.h.b16 %v1110
        %v1188 = vunpack.c.l.b16 %v1111
        %v1189 = vunpack.c.h.b16 %v1111
        %v1190 = vunpack.c.l.b16 %v1112
        %v1191 = vunpack.c.h.b16 %v1112
        %v1192 = vunpack.c.l.b16 %v1113
        %v1193 = vunpack.c.h.b16 %v1113
        %v1194 = vunpack.c.l.b16 %v1114
        %v1195 = vunpack.c.h.b16 %v1114
        %v1196 = vunpack.c.l.b16 %v1115
        %v1197 = vunpack.c.h.b16 %v1115
        %v1198 = vunpack.c.l.b16 %v1116
        %v1199 = vunpack.c.h.b16 %v1116
        %v1200 = vunpack.c.l.b16 %v1117
        %v1201 = vunpack.c.h.b16 %v1117
        %v1202 = vunpack.c.l.b16 %v1118
        %v1203 = vunpack.c.h.b16 %v1118
        %v1204 = vunpack.c.l.b16 %v1119
        %v1205 = vunpack.c.h.b16 %v1119
        %v1206 = vunpack.c.l.b16 %v1120
        %v1207 = vunpack.c.h.b16 %v1120
        %v1208 = vunpack.c.l.b16 %v1121
        %v1209 = vunpack.c.h.b16 %v1121
        %v1210 = vunpack.c.l.b16 %v1122
        %v1211 = vunpack.c.h.b16 %v1122
        %v1212 = vunpack.c.l.b16 %v1123
        %v1213 = vunpack.c.h.b16 %v1123
        %v1214 = vunpack.c.l.b16 %v1124
        %v1215 = vunpack.c.h.b16 %v1124
        %v1216 = vunpack.c.l.b16 %v1125
        %v1217 = vunpack.c.h.b16 %v1125
        %v1218 = vunpack.c.l.b16 %v1126
        %v1219 = vunpack.c.h.b16 %v1126
        %v1220 = vunpack.c.l.b16 %v1127
        %v1221 = vunpack.c.h.b16 %v1127
        %v1222 = vunpack.c.l.b16 %v1128
        %v1223 = vunpack.c.h.b16 %v1128
        %v1224 = vunpack.c.l.b16 %v1129
        %v1225 = vunpack.c.h.b16 %v1129
        %v1226 = vunpack.c.l.b16 %v1130
        %v1227 = vunpack.c.h.b16 %v1130
        %v1228 = vunpack.c.l.b16 %v1131
        %v1229 = vunpack.c.h.b16 %v1131
        %v1230 = vunpack.c.l.b16 %v1132
        %v1231 = vunpack.c.h.b16 %v1132
        %v1232 = vunpack.c.l.b16 %v1133
        %v1233 = vunpack.c.h.b16 %v1133
        %v1234 = vunpack.c.l.b16 %v1134
        %v1235 = vunpack.c.h.b16 %v1134
        %v1236 = vunpack.c.l.b16 %v1135
        %v1237 = vunpack.c.h.b16 %v1135
        %v1238 = vunpack.c.l.b16 %v1136
        %v1239 = vunpack.c.h.b16 %v1136
        %v1240 = vunpack.c.l.b16 %v1137
        %v1241 = vunpack.c.h.b16 %v1137
        %v1242 = vunpack.c.l.b16 %v1138
        %v1243 = vunpack.c.h.b16 %v1138
        %v1244 = vunpack.c.l.b16 %v1139
        %v1245 = vunpack.c.h.b16 %v1139
        %v1246 = vunpack.c.l.b16 %v1140
        %v1247 = vunpack.c.h.b16 %v1140
        %v1248 = vunpack.c.l.b16 %v1141
        %v1249 = vunpack.c.h.b16 %v1141
        %v1250 = vpack.c.b16 %v1188, %v1186
        %v1251 = vpack.c.b16 %v1189, %v1187
        %v1252 = vpack.c.b16 %v1192, %v1190
        %v1253 = vpack.c.b16 %v1193, %v1191
        %v1254 = vpack.c.b16 %v1196, %v1194
        %v1255 = vpack.c.b16 %v1197, %v1195
        %v1256 = vpack.c.b16 %v1200, %v1198
        %v1257 = vpack.c.b16 %v1201, %v1199
        %v1258 = vpack.c.b16 %v1204, %v1202
        %v1259 = vpack.c.b16 %v1205, %v1203
        %v1260 = vpack.c.b16 %v1208, %v1206
        %v1261 = vpack.c.b16 %v1209, %v1207
        %v1262 = vpack.c.b16 %v1212, %v1210
        %v1263 = vpack.c.b16 %v1213, %v1211
        %v1264 = vpack.c.b16 %v1216, %v1214
        %v1265 = vpack.c.b16 %v1217, %v1215
        %v1266 = vpack.c.b16 %v1220, %v1218
        %v1267 = vpack.c.b16 %v1221, %v1219
        %v1268 = vpack.c.b16 %v1224, %v1222
        %v1269 = vpack.c.b16 %v1225, %v1223
        %v1270 = vpack.c.b16 %v1228, %v1226
        %v1271 = vpack.c.b16 %v1229, %v1227
        %v1272 = vpack.c.b16 %v1232, %v1230
        %v1273 = vpack.c.b16 %v1233, %v1231
        %v1274 = vpack.c.b16 %v1236, %v1234
        %v1275 = vpack.c.b16 %v1237, %v1235
        %v1276 = vpack.c.b16 %v1240, %v1238
        %v1277 = vpack.c.b16 %v1241, %v1239
        %v1278 = vpack.c.b16 %v1244, %v1242
        %v1279 = vpack.c.b16 %v1245, %v1243
        %v1280 = vpack.c.b16 %v1248, %v1246
        %v1281 = vpack.c.b16 %v1249, %v1247
        %1314 = vmatprep.subr.bf16.mxu0 %v1251
        %1315 = vmatpush1.bf16.msra.mxu0 %v1250
        %1316 = vmatprep.subr.bf16.mxu0 %v1253
        %1317 = vmatpush1.bf16.msra.mxu0 %v1252
        %1318 = vmatprep.subr.bf16.mxu0 %v1255
        %1319 = vmatpush1.bf16.msra.mxu0 %v1254
        %1320 = vmatprep.subr.bf16.mxu0 %v1257
        %1321 = vmatpush1.bf16.msra.mxu0 %v1256
        %1322 = vmatprep.subr.bf16.mxu0 %v1259
        %1323 = vmatpush1.bf16.msra.mxu0 %v1258
        %1324 = vmatprep.subr.bf16.mxu0 %v1261
        %1325 = vmatpush1.bf16.msra.mxu0 %v1260
        %1326 = vmatprep.subr.bf16.mxu0 %v1263
        %1327 = vmatpush1.bf16.msra.mxu0 %v1262
        %1328 = vmatprep.subr.bf16.mxu0 %v1265
        %1329 = vmatpush1.bf16.msra.mxu0 %v1264
        %1330 = vmatprep.subr.bf16.mxu0 %v1267
        %1331 = vmatpush1.bf16.msra.mxu0 %v1266
        %1332 = vmatprep.subr.bf16.mxu0 %v1269
        %1333 = vmatpush1.bf16.msra.mxu0 %v1268
        %1334 = vmatprep.subr.bf16.mxu0 %v1271
        %1335 = vmatpush1.bf16.msra.mxu0 %v1270
        %1336 = vmatprep.subr.bf16.mxu0 %v1273
        %1337 = vmatpush1.bf16.msra.mxu0 %v1272
        %1338 = vmatprep.subr.bf16.mxu0 %v1275
        %1339 = vmatpush1.bf16.msra.mxu0 %v1274
        %1340 = vmatprep.subr.bf16.mxu0 %v1277
        %1341 = vmatpush1.bf16.msra.mxu0 %v1276
        %1342 = vmatprep.subr.bf16.mxu0 %v1279
        %1343 = vmatpush1.bf16.msra.mxu0 %v1278
        %1344 = vmatprep.subr.bf16.mxu0 %v1281
        %1345 = vmatpush1.bf16.msra.mxu0 %v1280
        %1346 = vmatprep.mubr.bf16.mxu0 %v1095
        %1347 = vmatmul.mubr.bf16.gmra.mrb[0].mxu0 %v1094
        %v1348 = vpop.f32.mrb[0].mxu0
        %v1349 = vadd.f32 %v1147, %v1348
        %v1350 = vpop.f32.mrb[0].mxu0
        %v1351 = vadd.f32 %v1151, %v1350
        %v1352 = vpop.f32.mrb[0].mxu0
        %v1353 = vadd.f32 %v1147, %v1352
        %v1354 = vpop.f32.mrb[0].mxu0
        %v1355 = vadd.f32 %v1151, %v1354
        %1356 = vmatprep.mubr.bf16.mxu0 %v1097
        %1357 = vmatmul.mubr.bf16.gmra.mrb[0].mxu0 %v1096
        %v1358 = vpop.f32.mrb[0].mxu0
        %v1359 = vadd.f32 %v1147, %v1358
        %v1360 = vpop.f32.mrb[0].mxu0
        %v1361 = vadd.f32 %v1151, %v1360
        %v1362 = vpop.f32.mrb[0].mxu0
        %v1363 = vadd.f32 %v1147, %v1362
        %v1364 = vpop.f32.mrb[0].mxu0
        %v1365 = vadd.f32 %v1151, %v1364
        %1366 = vmatprep.mubr.bf16.mxu0 %v1099
        %1367 = vmatmul.mubr.bf16.gmra.mrb[0].mxu0 %v1098
        %v1368 = vpop.f32.mrb[0].mxu0
        %v1369 = vadd.f32 %v1147, %v1368
        %v1370 = vpop.f32.mrb[0].mxu0
        %v1371 = vadd.f32 %v1151, %v1370
        %v1372 = vpop.f32.mrb[0].mxu0
        %v1373 = vadd.f32 %v1147, %v1372
        %v1374 = vpop.f32.mrb[0].mxu0
        %v1375 = vadd.f32 %v1151, %v1374
        %1376 = vmatprep.mubr.bf16.mxu0 %v1101
        %1377 = vmatmul.mubr.bf16.gmra.mrb[0].mxu0 %v1100
        %v1378 = vpop.f32.mrb[0].mxu0
        %v1379 = vadd.f32 %v1147, %v1378
        %v1380 = vpop.f32.mrb[0].mxu0
        %v1381 = vadd.f32 %v1151, %v1380
        %v1382 = vpop.f32.mrb[0].mxu0
        %v1383 = vadd.f32 %v1147, %v1382
        %v1384 = vpop.f32.mrb[0].mxu0
        %v1385 = vadd.f32 %v1151, %v1384
        %1386 = vmatprep.mubr.bf16.mxu0 %v1103
        %1387 = vmatmul.mubr.bf16.gmra.mrb[0].mxu0 %v1102
        %v1388 = vpop.f32.mrb[0].mxu0
        %v1389 = vadd.f32 %v1147, %v1388
        %v1390 = vpop.f32.mrb[0].mxu0
        %v1391 = vadd.f32 %v1151, %v1390
        %v1392 = vpop.f32.mrb[0].mxu0
        %v1393 = vadd.f32 %v1147, %v1392
        %v1394 = vpop.f32.mrb[0].mxu0
        %v1395 = vadd.f32 %v1151, %v1394
        %1396 = vmatprep.mubr.bf16.mxu0 %v1105
        %1397 = vmatmul.mubr.bf16.gmra.mrb[0].mxu0 %v1104
        %v1398 = vpop.f32.mrb[0].mxu0
        %v1399 = vadd.f32 %v1147, %v1398
        %v1400 = vpop.f32.mrb[0].mxu0
        %v1401 = vadd.f32 %v1151, %v1400
        %v1402 = vpop.f32.mrb[0].mxu0
        %v1403 = vadd.f32 %v1147, %v1402
        %v1404 = vpop.f32.mrb[0].mxu0
        %v1405 = vadd.f32 %v1151, %v1404
        %1406 = vmatprep.mubr.bf16.mxu0 %v1107
        %1407 = vmatmul.mubr.bf16.gmra.mrb[0].mxu0 %v1106
        %v1408 = vpop.f32.mrb[0].mxu0
        %v1409 = vadd.f32 %v1147, %v1408
        %v1410 = vpop.f32.mrb[0].mxu0
        %v1411 = vadd.f32 %v1151, %v1410
        %v1412 = vpop.f32.mrb[0].mxu0
        %v1413 = vadd.f32 %v1147, %v1412
        %v1414 = vpop.f32.mrb[0].mxu0
        %v1415 = vadd.f32 %v1151, %v1414
        %1416 = vmatprep.mubr.bf16.mxu0 %v1109
        %1417 = vmatmul.mubr.bf16.gmra.mrb[0].mxu0 %v1108
        %v1418 = vpop.f32.mrb[0].mxu0
        %v1419 = vadd.f32 %v1147, %v1418
        %v1420 = vpop.f32.mrb[0].mxu0
        %v1421 = vadd.f32 %v1151, %v1420
        %v1422 = vpop.f32.mrb[0].mxu0
        %v1423 = vadd.f32 %v1147, %v1422
        %v1424 = vpop.f32.mrb[0].mxu0
        %v1425 = vadd.f32 %v1151, %v1424
        %1426 = vdwg.mxu0
        %v1427 = vadd.f32 %v1349, %v833
        %v1428 = vadd.f32 %v1351, %v834
        %v1429 = vadd.f32 %v1353, %v835
        %v1430 = vadd.f32 %v1355, %v836
        %v1431 = vadd.f32 %v1359, %v837
        %v1432 = vadd.f32 %v1361, %v838
        %v1433 = vadd.f32 %v1363, %v839
        %v1434 = vadd.f32 %v1365, %v840
        %v1435 = vadd.f32 %v1369, %v841
        %v1436 = vadd.f32 %v1371, %v842
        %v1437 = vadd.f32 %v1373, %v843
        %v1438 = vadd.f32 %v1375, %v844
        %v1439 = vadd.f32 %v1379, %v845
        %v1440 = vadd.f32 %v1381, %v846
        %v1441 = vadd.f32 %v1383, %v847
        %v1442 = vadd.f32 %v1385, %v848
        %v1443 = vadd.f32 %v1389, %v849
        %v1444 = vadd.f32 %v1391, %v850
        %v1445 = vadd.f32 %v1393, %v851
        %v1446 = vadd.f32 %v1395, %v852
        %v1447 = vadd.f32 %v1399, %v853
        %v1448 = vadd.f32 %v1401, %v854
        %v1449 = vadd.f32 %v1403, %v855
        %v1450 = vadd.f32 %v1405, %v856
        %v1451 = vadd.f32 %v1409, %v857
        %v1452 = vadd.f32 %v1411, %v858
        %v1453 = vadd.f32 %v1413, %v859
        %v1454 = vadd.f32 %v1415, %v860
        %v1455 = vadd.f32 %v1419, %v861
        %v1456 = vadd.f32 %v1421, %v862
        %v1457 = vadd.f32 %v1423, %v863
        %v1458 = vadd.f32 %v1425, %v864
        %v1459 = vmul.f32 %v1427, 0.01
        %v1460 = vmul.f32 %v1428, 0.01
        %v1461 = vmul.f32 %v1429, 0.01
        %v1462 = vmul.f32 %v1430, 0.01
        %v1463 = vmul.f32 %v1431, 0.01
        %v1464 = vmul.f32 %v1432, 0.01
        %v1465 = vmul.f32 %v1433, 0.01
        %v1466 = vmul.f32 %v1434, 0.01
        %v1467 = vmul.f32 %v1435, 0.01
        %v1468 = vmul.f32 %v1436, 0.01
        %v1469 = vmul.f32 %v1437, 0.01
        %v1470 = vmul.f32 %v1438, 0.01
        %v1471 = vmul.f32 %v1439, 0.01
        %v1472 = vmul.f32 %v1440, 0.01
        %v1473 = vmul.f32 %v1441, 0.01
        %v1474 = vmul.f32 %v1442, 0.01
        %v1475 = vmul.f32 %v1443, 0.01
        %v1476 = vmul.f32 %v1444, 0.01
        %v1477 = vmul.f32 %v1445, 0.01
        %v1478 = vmul.f32 %v1446, 0.01
        %v1479 = vmul.f32 %v1447, 0.01
        %v1480 = vmul.f32 %v1448, 0.01
        %v1481 = vmul.f32 %v1449, 0.01
        %v1482 = vmul.f32 %v1450, 0.01
        %v1483 = vmul.f32 %v1451, 0.01
        %v1484 = vmul.f32 %v1452, 0.01
        %v1485 = vmul.f32 %v1453, 0.01
        %v1486 = vmul.f32 %v1454, 0.01
        %v1487 = vmul.f32 %v1455, 0.01
        %v1488 = vmul.f32 %v1456, 0.01
        %v1489 = vmul.f32 %v1457, 0.01
        %v1490 = vmul.f32 %v1458, 0.01
        %v1491 = vmax.f32 %v1427, %v1459
        %v1492 = vmax.f32 %v1428, %v1460
        %v1493 = vmax.f32 %v1429, %v1461
        %v1494 = vmax.f32 %v1430, %v1462
        %v1495 = vmax.f32 %v1431, %v1463
        %v1496 = vmax.f32 %v1432, %v1464
        %v1497 = vmax.f32 %v1433, %v1465
        %v1498 = vmax.f32 %v1434, %v1466
        %v1499 = vmax.f32 %v1435, %v1467
        %v1500 = vmax.f32 %v1436, %v1468
        %v1501 = vmax.f32 %v1437, %v1469
        %v1502 = vmax.f32 %v1438, %v1470
        %v1503 = vmax.f32 %v1439, %v1471
        %v1504 = vmax.f32 %v1440, %v1472
        %v1505 = vmax.f32 %v1441, %v1473
        %v1506 = vmax.f32 %v1442, %v1474
        %v1507 = vmax.f32 %v1443, %v1475
        %v1508 = vmax.f32 %v1444, %v1476
        %v1509 = vmax.f32 %v1445, %v1477
        %v1510 = vmax.f32 %v1446, %v1478
        %v1511 = vmax.f32 %v1447, %v1479
        %v1512 = vmax.f32 %v1448, %v1480
        %v1513 = vmax.f32 %v1449, %v1481
        %v1514 = vmax.f32 %v1450, %v1482
        %v1515 = vmax.f32 %v1451, %v1483
        %v1516 = vmax.f32 %v1452, %v1484
        %v1517 = vmax.f32 %v1453, %v1485
        %v1518 = vmax.f32 %v1454, %v1486
        %v1519 = vmax.f32 %v1455, %v1487
        %v1520 = vmax.f32 %v1456, %v1488
        %v1521 = vmax.f32 %v1457, %v1489
        %v1522 = vmax.f32 %v1458, %v1490
        %v1523 = vpack.c.bf16 %v1493, %v1491
        %v1524 = vpack.c.bf16 %v1494, %v1492
        %v1525 = vpack.c.bf16 %v1497, %v1495
        %v1526 = vpack.c.bf16 %v1498, %v1496
        %v1527 = vpack.c.bf16 %v1501, %v1499
        %v1528 = vpack.c.bf16 %v1502, %v1500
        %v1529 = vpack.c.bf16 %v1505, %v1503
        %v1530 = vpack.c.bf16 %v1506, %v1504
        %v1531 = vpack.c.bf16 %v1509, %v1507
        %v1532 = vpack.c.bf16 %v1510, %v1508
        %v1533 = vpack.c.bf16 %v1513, %v1511
        %v1534 = vpack.c.bf16 %v1514, %v1512
        %v1535 = vpack.c.bf16 %v1517, %v1515
        %v1536 = vpack.c.bf16 %v1518, %v1516
        %v1537 = vpack.c.bf16 %v1521, %v1519
        %v1538 = vpack.c.bf16 %v1522, %v1520
        %s1539 = scalar_lea.vmem [#allocation11], 256
        %v1540 = vld [vmem:[%s1539] sm:$0xff]
        %v1541 = vld [vmem:[%s1539 + $0x8] sm:$0xff]
        %v1542 = vld [vmem:[%s1539 + $0x10] sm:$0xff]
        %v1543 = vld [vmem:[%s1539 + $0x18] sm:$0xff]
        %v1544 = vld [vmem:[%s1539 + $0x20] sm:$0xff]
        %v1545 = vld [vmem:[%s1539 + $0x28] sm:$0xff]
        %v1546 = vld [vmem:[%s1539 + $0x30] sm:$0xff]
        %v1547 = vld [vmem:[%s1539 + $0x38] sm:$0xff]
        %v1548 = vld [vmem:[%s1539 + $0x40] sm:$0xff]
        %v1549 = vld [vmem:[%s1539 + $0x48] sm:$0xff]
        %v1550 = vld [vmem:[%s1539 + $0x50] sm:$0xff]
        %v1551 = vld [vmem:[%s1539 + $0x58] sm:$0xff]
        %v1552 = vld [vmem:[%s1539 + $0x60] sm:$0xff]
        %v1553 = vld [vmem:[%s1539 + $0x68] sm:$0xff]
        %v1554 = vld [vmem:[%s1539 + $0x70] sm:$0xff]
        %v1555 = vld [vmem:[%s1539 + $0x78] sm:$0xff]
        %v1556 = vld [vmem:[%s1539 + $0x80] sm:$0xff]
        %v1557 = vld [vmem:[%s1539 + $0x88] sm:$0xff]
        %v1558 = vld [vmem:[%s1539 + $0x90] sm:$0xff]
        %v1559 = vld [vmem:[%s1539 + $0x98] sm:$0xff]
        %v1560 = vld [vmem:[%s1539 + $0xa0] sm:$0xff]
        %v1561 = vld [vmem:[%s1539 + $0xa8] sm:$0xff]
        %v1562 = vld [vmem:[%s1539 + $0xb0] sm:$0xff]
        %v1563 = vld [vmem:[%s1539 + $0xb8] sm:$0xff]
        %v1564 = vld [vmem:[%s1539 + $0xc0] sm:$0xff]
        %v1565 = vld [vmem:[%s1539 + $0xc8] sm:$0xff]
        %v1566 = vld [vmem:[%s1539 + $0xd0] sm:$0xff]
        %v1567 = vld [vmem:[%s1539 + $0xd8] sm:$0xff]
        %v1568 = vld [vmem:[%s1539 + $0xe0] sm:$0xff]
        %v1569 = vld [vmem:[%s1539 + $0xe8] sm:$0xff]
        %v1570 = vld [vmem:[%s1539 + $0xf0] sm:$0xff]
        %v1571 = vld [vmem:[%s1539 + $0xf8] sm:$0xff]
        %s1572 = scalar_lea.vmem [#allocation12], 2
        %v1573 = vld [vmem:[%s1572] sm:$0x3]
        %v1575 = vlaneseq
        %v1576 = vshrl.u32 %v1575, 7
        %v1577 = vsub.s32 0, %v1576
        %v1578 = vrot.slane %v1573, %v1577
        %v1579 = vlaneseq
        %v1580 = vshrl.u32 %v1579, 7
        %v1581 = vsub.s32 1, %v1580
        %v1582 = vrot.slane %v1573, %v1581
        %v1617 = vunpack.c.l.b16 %v1540
        %v1618 = vunpack.c.h.b16 %v1540
        %v1619 = vunpack.c.l.b16 %v1541
        %v1620 = vunpack.c.h.b16 %v1541
        %v1621 = vunpack.c.l.b16 %v1542
        %v1622 = vunpack.c.h.b16 %v1542
        %v1623 = vunpack.c.l.b16 %v1543
        %v1624 = vunpack.c.h.b16 %v1543
        %v1625 = vunpack.c.l.b16 %v1544
        %v1626 = vunpack.c.h.b16 %v1544
        %v1627 = vunpack.c.l.b16 %v1545
        %v1628 = vunpack.c.h.b16 %v1545
        %v1629 = vunpack.c.l.b16 %v1546
        %v1630 = vunpack.c.h.b16 %v1546
        %v1631 = vunpack.c.l.b16 %v1547
        %v1632 = vunpack.c.h.b16 %v1547
        %v1633 = vunpack.c.l.b16 %v1548
        %v1634 = vunpack.c.h.b16 %v1548
        %v1635 = vunpack.c.l.b16 %v1549
        %v1636 = vunpack.c.h.b16 %v1549
        %v1637 = vunpack.c.l.b16 %v1550
        %v1638 = vunpack.c.h.b16 %v1550
        %v1639 = vunpack.c.l.b16 %v1551
        %v1640 = vunpack.c.h.b16 %v1551
        %v1641 = vunpack.c.l.b16 %v1552
        %v1642 = vunpack.c.h.b16 %v1552
        %v1643 = vunpack.c.l.b16 %v1553
        %v1644 = vunpack.c.h.b16 %v1553
        %v1645 = vunpack.c.l.b16 %v1554
        %v1646 = vunpack.c.h.b16 %v1554
        %v1647 = vunpack.c.l.b16 %v1555
        %v1648 = vunpack.c.h.b16 %v1555
        %v1649 = vunpack.c.l.b16 %v1556
        %v1650 = vunpack.c.h.b16 %v1556
        %v1651 = vunpack.c.l.b16 %v1557
        %v1652 = vunpack.c.h.b16 %v1557
        %v1653 = vunpack.c.l.b16 %v1558
        %v1654 = vunpack.c.h.b16 %v1558
        %v1655 = vunpack.c.l.b16 %v1559
        %v1656 = vunpack.c.h.b16 %v1559
        %v1657 = vunpack.c.l.b16 %v1560
        %v1658 = vunpack.c.h.b16 %v1560
        %v1659 = vunpack.c.l.b16 %v1561
        %v1660 = vunpack.c.h.b16 %v1561
        %v1661 = vunpack.c.l.b16 %v1562
        %v1662 = vunpack.c.h.b16 %v1562
        %v1663 = vunpack.c.l.b16 %v1563
        %v1664 = vunpack.c.h.b16 %v1563
        %v1665 = vunpack.c.l.b16 %v1564
        %v1666 = vunpack.c.h.b16 %v1564
        %v1667 = vunpack.c.l.b16 %v1565
        %v1668 = vunpack.c.h.b16 %v1565
        %v1669 = vunpack.c.l.b16 %v1566
        %v1670 = vunpack.c.h.b16 %v1566
        %v1671 = vunpack.c.l.b16 %v1567
        %v1672 = vunpack.c.h.b16 %v1567
        %v1673 = vunpack.c.l.b16 %v1568
        %v1674 = vunpack.c.h.b16 %v1568
        %v1675 = vunpack.c.l.b16 %v1569
        %v1676 = vunpack.c.h.b16 %v1569
        %v1677 = vunpack.c.l.b16 %v1570
        %v1678 = vunpack.c.h.b16 %v1570
        %v1679 = vunpack.c.l.b16 %v1571
        %v1680 = vunpack.c.h.b16 %v1571
        %v1681 = vpack.c.b16 %v1619, %v1617
        %v1682 = vpack.c.b16 %v1620, %v1618
        %v1683 = vpack.c.b16 %v1623, %v1621
        %v1684 = vpack.c.b16 %v1624, %v1622
        %v1685 = vpack.c.b16 %v1627, %v1625
        %v1686 = vpack.c.b16 %v1628, %v1626
        %v1687 = vpack.c.b16 %v1631, %v1629
        %v1688 = vpack.c.b16 %v1632, %v1630
        %v1689 = vpack.c.b16 %v1635, %v1633
        %v1690 = vpack.c.b16 %v1636, %v1634
        %v1691 = vpack.c.b16 %v1639, %v1637
        %v1692 = vpack.c.b16 %v1640, %v1638
        %v1693 = vpack.c.b16 %v1643, %v1641
        %v1694 = vpack.c.b16 %v1644, %v1642
        %v1695 = vpack.c.b16 %v1647, %v1645
        %v1696 = vpack.c.b16 %v1648, %v1646
        %v1697 = vpack.c.b16 %v1651, %v1649
        %v1698 = vpack.c.b16 %v1652, %v1650
        %v1699 = vpack.c.b16 %v1655, %v1653
        %v1700 = vpack.c.b16 %v1656, %v1654
        %v1701 = vpack.c.b16 %v1659, %v1657
        %v1702 = vpack.c.b16 %v1660, %v1658
        %v1703 = vpack.c.b16 %v1663, %v1661
        %v1704 = vpack.c.b16 %v1664, %v1662
        %v1705 = vpack.c.b16 %v1667, %v1665
        %v1706 = vpack.c.b16 %v1668, %v1666
        %v1707 = vpack.c.b16 %v1671, %v1669
        %v1708 = vpack.c.b16 %v1672, %v1670
        %v1709 = vpack.c.b16 %v1675, %v1673
        %v1710 = vpack.c.b16 %v1676, %v1674
        %v1711 = vpack.c.b16 %v1679, %v1677
        %v1712 = vpack.c.b16 %v1680, %v1678
        %1745 = vmatprep.subr.bf16.mxu0 %v1682
        %1746 = vmatpush1.bf16.msra.mxu0 %v1681
        %1747 = vmatprep.subr.bf16.mxu0 %v1684
        %1748 = vmatpush1.bf16.msra.mxu0 %v1683
        %1749 = vmatprep.subr.bf16.mxu0 %v1686
        %1750 = vmatpush1.bf16.msra.mxu0 %v1685
        %1751 = vmatprep.subr.bf16.mxu0 %v1688
        %1752 = vmatpush1.bf16.msra.mxu0 %v1687
        %1753 = vmatprep.subr.bf16.mxu0 %v1690
        %1754 = vmatpush1.bf16.msra.mxu0 %v1689
        %1755 = vmatprep.subr.bf16.mxu0 %v1692
        %1756 = vmatpush1.bf16.msra.mxu0 %v1691
        %1757 = vmatprep.subr.bf16.mxu0 %v1694
        %1758 = vmatpush1.bf16.msra.mxu0 %v1693
        %1759 = vmatprep.subr.bf16.mxu0 %v1696
        %1760 = vmatpush1.bf16.msra.mxu0 %v1695
        %1761 = vmatprep.subr.bf16.mxu0 %v1698
        %1762 = vmatpush1.bf16.msra.mxu0 %v1697
        %1763 = vmatprep.subr.bf16.mxu0 %v1700
        %1764 = vmatpush1.bf16.msra.mxu0 %v1699
        %1765 = vmatprep.subr.bf16.mxu0 %v1702
        %1766 = vmatpush1.bf16.msra.mxu0 %v1701
        %1767 = vmatprep.subr.bf16.mxu0 %v1704
        %1768 = vmatpush1.bf16.msra.mxu0 %v1703
        %1769 = vmatprep.subr.bf16.mxu0 %v1706
        %1770 = vmatpush1.bf16.msra.mxu0 %v1705
        %1771 = vmatprep.subr.bf16.mxu0 %v1708
        %1772 = vmatpush1.bf16.msra.mxu0 %v1707
        %1773 = vmatprep.subr.bf16.mxu0 %v1710
        %1774 = vmatpush1.bf16.msra.mxu0 %v1709
        %1775 = vmatprep.subr.bf16.mxu0 %v1712
        %1776 = vmatpush1.bf16.msra.mxu0 %v1711
        %1777 = vmatprep.mubr.bf16.mxu0 %v1524
        %1778 = vmatmul.mubr.bf16.gmra.mrb[0].mxu0 %v1523
        %v1779 = vpop.f32.mrb[0].mxu0
        %v1780 = vadd.f32 %v1578, %v1779
        %v1781 = vpop.f32.mrb[0].mxu0
        %v1782 = vadd.f32 %v1582, %v1781
        %v1783 = vpop.f32.mrb[0].mxu0
        %v1784 = vadd.f32 %v1578, %v1783
        %v1785 = vpop.f32.mrb[0].mxu0
        %v1786 = vadd.f32 %v1582, %v1785
        %1787 = vmatprep.mubr.bf16.mxu0 %v1526
        %1788 = vmatmul.mubr.bf16.gmra.mrb[0].mxu0 %v1525
        %v1789 = vpop.f32.mrb[0].mxu0
        %v1790 = vadd.f32 %v1578, %v1789
        %v1791 = vpop.f32.mrb[0].mxu0
        %v1792 = vadd.f32 %v1582, %v1791
        %v1793 = vpop.f32.mrb[0].mxu0
        %v1794 = vadd.f32 %v1578, %v1793
        %v1795 = vpop.f32.mrb[0].mxu0
        %v1796 = vadd.f32 %v1582, %v1795
        %1797 = vmatprep.mubr.bf16.mxu0 %v1528
        %1798 = vmatmul.mubr.bf16.gmra.mrb[0].mxu0 %v1527
        %v1799 = vpop.f32.mrb[0].mxu0
        %v1800 = vadd.f32 %v1578, %v1799
        %v1801 = vpop.f32.mrb[0].mxu0
        %v1802 = vadd.f32 %v1582, %v1801
        %v1803 = vpop.f32.mrb[0].mxu0
        %v1804 = vadd.f32 %v1578, %v1803
        %v1805 = vpop.f32.mrb[0].mxu0
        %v1806 = vadd.f32 %v1582, %v1805
        %1807 = vmatprep.mubr.bf16.mxu0 %v1530
        %1808 = vmatmul.mubr.bf16.gmra.mrb[0].mxu0 %v1529
        %v1809 = vpop.f32.mrb[0].mxu0
        %v1810 = vadd.f32 %v1578, %v1809
        %v1811 = vpop.f32.mrb[0].mxu0
        %v1812 = vadd.f32 %v1582, %v1811
        %v1813 = vpop.f32.mrb[0].mxu0
        %v1814 = vadd.f32 %v1578, %v1813
        %v1815 = vpop.f32.mrb[0].mxu0
        %v1816 = vadd.f32 %v1582, %v1815
        %1817 = vmatprep.mubr.bf16.mxu0 %v1532
        %1818 = vmatmul.mubr.bf16.gmra.mrb[0].mxu0 %v1531
        %v1819 = vpop.f32.mrb[0].mxu0
        %v1820 = vadd.f32 %v1578, %v1819
        %v1821 = vpop.f32.mrb[0].mxu0
        %v1822 = vadd.f32 %v1582, %v1821
        %v1823 = vpop.f32.mrb[0].mxu0
        %v1824 = vadd.f32 %v1578, %v1823
        %v1825 = vpop.f32.mrb[0].mxu0
        %v1826 = vadd.f32 %v1582, %v1825
        %1827 = vmatprep.mubr.bf16.mxu0 %v1534
        %1828 = vmatmul.mubr.bf16.gmra.mrb[0].mxu0 %v1533
        %v1829 = vpop.f32.mrb[0].mxu0
        %v1830 = vadd.f32 %v1578, %v1829
        %v1831 = vpop.f32.mrb[0].mxu0
        %v1832 = vadd.f32 %v1582, %v1831
        %v1833 = vpop.f32.mrb[0].mxu0
        %v1834 = vadd.f32 %v1578, %v1833
        %v1835 = vpop.f32.mrb[0].mxu0
        %v1836 = vadd.f32 %v1582, %v1835
        %1837 = vmatprep.mubr.bf16.mxu0 %v1536
        %1838 = vmatmul.mubr.bf16.gmra.mrb[0].mxu0 %v1535
        %v1839 = vpop.f32.mrb[0].mxu0
        %v1840 = vadd.f32 %v1578, %v1839
        %v1841 = vpop.f32.mrb[0].mxu0
        %v1842 = vadd.f32 %v1582, %v1841
        %v1843 = vpop.f32.mrb[0].mxu0
        %v1844 = vadd.f32 %v1578, %v1843
        %v1845 = vpop.f32.mrb[0].mxu0
        %v1846 = vadd.f32 %v1582, %v1845
        %1847 = vmatprep.mubr.bf16.mxu0 %v1538
        %1848 = vmatmul.mubr.bf16.gmra.mrb[0].mxu0 %v1537
        %v1849 = vpop.f32.mrb[0].mxu0
        %v1850 = vadd.f32 %v1578, %v1849
        %v1851 = vpop.f32.mrb[0].mxu0
        %v1852 = vadd.f32 %v1582, %v1851
        %v1853 = vpop.f32.mrb[0].mxu0
        %v1854 = vadd.f32 %v1578, %v1853
        %v1855 = vpop.f32.mrb[0].mxu0
        %v1856 = vadd.f32 %v1582, %v1855
        %1857 = vdwg.mxu0
        %v1858 = vmul.f32 %v1780, 0.01
        %v1859 = vmul.f32 %v1782, 0.01
        %v1860 = vmul.f32 %v1784, 0.01
        %v1861 = vmul.f32 %v1786, 0.01
        %v1862 = vmul.f32 %v1790, 0.01
        %v1863 = vmul.f32 %v1792, 0.01
        %v1864 = vmul.f32 %v1794, 0.01
        %v1865 = vmul.f32 %v1796, 0.01
        %v1866 = vmul.f32 %v1800, 0.01
        %v1867 = vmul.f32 %v1802, 0.01
        %v1868 = vmul.f32 %v1804, 0.01
        %v1869 = vmul.f32 %v1806, 0.01
        %v1870 = vmul.f32 %v1810, 0.01
        %v1871 = vmul.f32 %v1812, 0.01
        %v1872 = vmul.f32 %v1814, 0.01
        %v1873 = vmul.f32 %v1816, 0.01
        %v1874 = vmul.f32 %v1820, 0.01
        %v1875 = vmul.f32 %v1822, 0.01
        %v1876 = vmul.f32 %v1824, 0.01
        %v1877 = vmul.f32 %v1826, 0.01
        %v1878 = vmul.f32 %v1830, 0.01
        %v1879 = vmul.f32 %v1832, 0.01
        %v1880 = vmul.f32 %v1834, 0.01
        %v1881 = vmul.f32 %v1836, 0.01
        %v1882 = vmul.f32 %v1840, 0.01
        %v1883 = vmul.f32 %v1842, 0.01
        %v1884 = vmul.f32 %v1844, 0.01
        %v1885 = vmul.f32 %v1846, 0.01
        %v1886 = vmul.f32 %v1850, 0.01
        %v1887 = vmul.f32 %v1852, 0.01
        %v1888 = vmul.f32 %v1854, 0.01
        %v1889 = vmul.f32 %v1856, 0.01
        %v1890 = vmax.f32 %v1780, %v1858
        %v1891 = vmax.f32 %v1782, %v1859
        %v1892 = vmax.f32 %v1784, %v1860
        %v1893 = vmax.f32 %v1786, %v1861
        %v1894 = vmax.f32 %v1790, %v1862
        %v1895 = vmax.f32 %v1792, %v1863
        %v1896 = vmax.f32 %v1794, %v1864
        %v1897 = vmax.f32 %v1796, %v1865
        %v1898 = vmax.f32 %v1800, %v1866
        %v1899 = vmax.f32 %v1802, %v1867
        %v1900 = vmax.f32 %v1804, %v1868
        %v1901 = vmax.f32 %v1806, %v1869
        %v1902 = vmax.f32 %v1810, %v1870
        %v1903 = vmax.f32 %v1812, %v1871
        %v1904 = vmax.f32 %v1814, %v1872
        %v1905 = vmax.f32 %v1816, %v1873
        %v1906 = vmax.f32 %v1820, %v1874
        %v1907 = vmax.f32 %v1822, %v1875
        %v1908 = vmax.f32 %v1824, %v1876
        %v1909 = vmax.f32 %v1826, %v1877
        %v1910 = vmax.f32 %v1830, %v1878
        %v1911 = vmax.f32 %v1832, %v1879
        %v1912 = vmax.f32 %v1834, %v1880
        %v1913 = vmax.f32 %v1836, %v1881
        %v1914 = vmax.f32 %v1840, %v1882
        %v1915 = vmax.f32 %v1842, %v1883
        %v1916 = vmax.f32 %v1844, %v1884
        %v1917 = vmax.f32 %v1846, %v1885
        %v1918 = vmax.f32 %v1850, %v1886
        %v1919 = vmax.f32 %v1852, %v1887
        %v1920 = vmax.f32 %v1854, %v1888
        %v1921 = vmax.f32 %v1856, %v1889
        %v1922 = vpack.c.bf16 %v1892, %v1890
        %v1923 = vpack.c.bf16 %v1893, %v1891
        %v1924 = vpack.c.bf16 %v1896, %v1894
        %v1925 = vpack.c.bf16 %v1897, %v1895
        %v1926 = vpack.c.bf16 %v1900, %v1898
        %v1927 = vpack.c.bf16 %v1901, %v1899
        %v1928 = vpack.c.bf16 %v1904, %v1902
        %v1929 = vpack.c.bf16 %v1905, %v1903
        %v1930 = vpack.c.bf16 %v1908, %v1906
        %v1931 = vpack.c.bf16 %v1909, %v1907
        %v1932 = vpack.c.bf16 %v1912, %v1910
        %v1933 = vpack.c.bf16 %v1913, %v1911
        %v1934 = vpack.c.bf16 %v1916, %v1914
        %v1935 = vpack.c.bf16 %v1917, %v1915
        %v1936 = vpack.c.bf16 %v1920, %v1918
        %v1937 = vpack.c.bf16 %v1921, %v1919
        %s1938 = scalar_lea.vmem [#allocation11], 512
        %v1939 = vld [vmem:[%s1938] sm:$0xff]
        %v1940 = vld [vmem:[%s1938 + $0x8] sm:$0xff]
        %v1941 = vld [vmem:[%s1938 + $0x10] sm:$0xff]
        %v1942 = vld [vmem:[%s1938 + $0x18] sm:$0xff]
        %v1943 = vld [vmem:[%s1938 + $0x20] sm:$0xff]
        %v1944 = vld [vmem:[%s1938 + $0x28] sm:$0xff]
        %v1945 = vld [vmem:[%s1938 + $0x30] sm:$0xff]
        %v1946 = vld [vmem:[%s1938 + $0x38] sm:$0xff]
        %v1947 = vld [vmem:[%s1938 + $0x40] sm:$0xff]
        %v1948 = vld [vmem:[%s1938 + $0x48] sm:$0xff]
        %v1949 = vld [vmem:[%s1938 + $0x50] sm:$0xff]
        %v1950 = vld [vmem:[%s1938 + $0x58] sm:$0xff]
        %v1951 = vld [vmem:[%s1938 + $0x60] sm:$0xff]
        %v1952 = vld [vmem:[%s1938 + $0x68] sm:$0xff]
        %v1953 = vld [vmem:[%s1938 + $0x70] sm:$0xff]
        %v1954 = vld [vmem:[%s1938 + $0x78] sm:$0xff]
        %v1955 = vld [vmem:[%s1938 + $0x80] sm:$0xff]
        %v1956 = vld [vmem:[%s1938 + $0x88] sm:$0xff]
        %v1957 = vld [vmem:[%s1938 + $0x90] sm:$0xff]
        %v1958 = vld [vmem:[%s1938 + $0x98] sm:$0xff]
        %v1959 = vld [vmem:[%s1938 + $0xa0] sm:$0xff]
        %v1960 = vld [vmem:[%s1938 + $0xa8] sm:$0xff]
        %v1961 = vld [vmem:[%s1938 + $0xb0] sm:$0xff]
        %v1962 = vld [vmem:[%s1938 + $0xb8] sm:$0xff]
        %v1963 = vld [vmem:[%s1938 + $0xc0] sm:$0xff]
        %v1964 = vld [vmem:[%s1938 + $0xc8] sm:$0xff]
        %v1965 = vld [vmem:[%s1938 + $0xd0] sm:$0xff]
        %v1966 = vld [vmem:[%s1938 + $0xd8] sm:$0xff]
        %v1967 = vld [vmem:[%s1938 + $0xe0] sm:$0xff]
        %v1968 = vld [vmem:[%s1938 + $0xe8] sm:$0xff]
        %v1969 = vld [vmem:[%s1938 + $0xf0] sm:$0xff]
        %v1970 = vld [vmem:[%s1938 + $0xf8] sm:$0xff]
        %s1971 = scalar_lea.vmem [#allocation12], 4
        %v1972 = vld [vmem:[%s1971] sm:$0x3]
        %v1974 = vlaneseq
        %v1975 = vshrl.u32 %v1974, 7
        %v1976 = vsub.s32 0, %v1975
        %v1977 = vrot.slane %v1972, %v1976
        %v1978 = vlaneseq
        %v1979 = vshrl.u32 %v1978, 7
        %v1980 = vsub.s32 1, %v1979
        %v1981 = vrot.slane %v1972, %v1980
        %v2016 = vunpack.c.l.b16 %v1939
        %v2017 = vunpack.c.h.b16 %v1939
        %v2018 = vunpack.c.l.b16 %v1940
        %v2019 = vunpack.c.h.b16 %v1940
        %v2020 = vunpack.c.l.b16 %v1941
        %v2021 = vunpack.c.h.b16 %v1941
        %v2022 = vunpack.c.l.b16 %v1942
        %v2023 = vunpack.c.h.b16 %v1942
        %v2024 = vunpack.c.l.b16 %v1943
        %v2025 = vunpack.c.h.b16 %v1943
        %v2026 = vunpack.c.l.b16 %v1944
        %v2027 = vunpack.c.h.b16 %v1944
        %v2028 = vunpack.c.l.b16 %v1945
        %v2029 = vunpack.c.h.b16 %v1945
        %v2030 = vunpack.c.l.b16 %v1946
        %v2031 = vunpack.c.h.b16 %v1946
        %v2032 = vunpack.c.l.b16 %v1947
        %v2033 = vunpack.c.h.b16 %v1947
        %v2034 = vunpack.c.l.b16 %v1948
        %v2035 = vunpack.c.h.b16 %v1948
        %v2036 = vunpack.c.l.b16 %v1949
        %v2037 = vunpack.c.h.b16 %v1949
        %v2038 = vunpack.c.l.b16 %v1950
        %v2039 = vunpack.c.h.b16 %v1950
        %v2040 = vunpack.c.l.b16 %v1951
        %v2041 = vunpack.c.h.b16 %v1951
        %v2042 = vunpack.c.l.b16 %v1952
        %v2043 = vunpack.c.h.b16 %v1952
        %v2044 = vunpack.c.l.b16 %v1953
        %v2045 = vunpack.c.h.b16 %v1953
        %v2046 = vunpack.c.l.b16 %v1954
        %v2047 = vunpack.c.h.b16 %v1954
        %v2048 = vunpack.c.l.b16 %v1955
        %v2049 = vunpack.c.h.b16 %v1955
        %v2050 = vunpack.c.l.b16 %v1956
        %v2051 = vunpack.c.h.b16 %v1956
        %v2052 = vunpack.c.l.b16 %v1957
        %v2053 = vunpack.c.h.b16 %v1957
        %v2054 = vunpack.c.l.b16 %v1958
        %v2055 = vunpack.c.h.b16 %v1958
        %v2056 = vunpack.c.l.b16 %v1959
        %v2057 = vunpack.c.h.b16 %v1959
        %v2058 = vunpack.c.l.b16 %v1960
        %v2059 = vunpack.c.h.b16 %v1960
        %v2060 = vunpack.c.l.b16 %v1961
        %v2061 = vunpack.c.h.b16 %v1961
        %v2062 = vunpack.c.l.b16 %v1962
        %v2063 = vunpack.c.h.b16 %v1962
        %v2064 = vunpack.c.l.b16 %v1963
        %v2065 = vunpack.c.h.b16 %v1963
        %v2066 = vunpack.c.l.b16 %v1964
        %v2067 = vunpack.c.h.b16 %v1964
        %v2068 = vunpack.c.l.b16 %v1965
        %v2069 = vunpack.c.h.b16 %v1965
        %v2070 = vunpack.c.l.b16 %v1966
        %v2071 = vunpack.c.h.b16 %v1966
        %v2072 = vunpack.c.l.b16 %v1967
        %v2073 = vunpack.c.h.b16 %v1967
        %v2074 = vunpack.c.l.b16 %v1968
        %v2075 = vunpack.c.h.b16 %v1968
        %v2076 = vunpack.c.l.b16 %v1969
        %v2077 = vunpack.c.h.b16 %v1969
        %v2078 = vunpack.c.l.b16 %v1970
        %v2079 = vunpack.c.h.b16 %v1970
        %v2080 = vpack.c.b16 %v2018, %v2016
        %v2081 = vpack.c.b16 %v2019, %v2017
        %v2082 = vpack.c.b16 %v2022, %v2020
        %v2083 = vpack.c.b16 %v2023, %v2021
        %v2084 = vpack.c.b16 %v2026, %v2024
        %v2085 = vpack.c.b16 %v2027, %v2025
        %v2086 = vpack.c.b16 %v2030, %v2028
        %v2087 = vpack.c.b16 %v2031, %v2029
        %v2088 = vpack.c.b16 %v2034, %v2032
        %v2089 = vpack.c.b16 %v2035, %v2033
        %v2090 = vpack.c.b16 %v2038, %v2036
        %v2091 = vpack.c.b16 %v2039, %v2037
        %v2092 = vpack.c.b16 %v2042, %v2040
        %v2093 = vpack.c.b16 %v2043, %v2041
        %v2094 = vpack.c.b16 %v2046, %v2044
        %v2095 = vpack.c.b16 %v2047, %v2045
        %v2096 = vpack.c.b16 %v2050, %v2048
        %v2097 = vpack.c.b16 %v2051, %v2049
        %v2098 = vpack.c.b16 %v2054, %v2052
        %v2099 = vpack.c.b16 %v2055, %v2053
        %v2100 = vpack.c.b16 %v2058, %v2056
        %v2101 = vpack.c.b16 %v2059, %v2057
        %v2102 = vpack.c.b16 %v2062, %v2060
        %v2103 = vpack.c.b16 %v2063, %v2061
        %v2104 = vpack.c.b16 %v2066, %v2064
        %v2105 = vpack.c.b16 %v2067, %v2065
        %v2106 = vpack.c.b16 %v2070, %v2068
        %v2107 = vpack.c.b16 %v2071, %v2069
        %v2108 = vpack.c.b16 %v2074, %v2072
        %v2109 = vpack.c.b16 %v2075, %v2073
        %v2110 = vpack.c.b16 %v2078, %v2076
        %v2111 = vpack.c.b16 %v2079, %v2077
        %2144 = vmatprep.subr.bf16.mxu0 %v2081
        %2145 = vmatpush1.bf16.msra.mxu0 %v2080
        %2146 = vmatprep.subr.bf16.mxu0 %v2083
        %2147 = vmatpush1.bf16.msra.mxu0 %v2082
        %2148 = vmatprep.subr.bf16.mxu0 %v2085
        %2149 = vmatpush1.bf16.msra.mxu0 %v2084
        %2150 = vmatprep.subr.bf16.mxu0 %v2087
        %2151 = vmatpush1.bf16.msra.mxu0 %v2086
        %2152 = vmatprep.subr.bf16.mxu0 %v2089
        %2153 = vmatpush1.bf16.msra.mxu0 %v2088
        %2154 = vmatprep.subr.bf16.mxu0 %v2091
        %2155 = vmatpush1.bf16.msra.mxu0 %v2090
        %2156 = vmatprep.subr.bf16.mxu0 %v2093
        %2157 = vmatpush1.bf16.msra.mxu0 %v2092
        %2158 = vmatprep.subr.bf16.mxu0 %v2095
        %2159 = vmatpush1.bf16.msra.mxu0 %v2094
        %2160 = vmatprep.subr.bf16.mxu0 %v2097
        %2161 = vmatpush1.bf16.msra.mxu0 %v2096
        %2162 = vmatprep.subr.bf16.mxu0 %v2099
        %2163 = vmatpush1.bf16.msra.mxu0 %v2098
        %2164 = vmatprep.subr.bf16.mxu0 %v2101
        %2165 = vmatpush1.bf16.msra.mxu0 %v2100
        %2166 = vmatprep.subr.bf16.mxu0 %v2103
        %2167 = vmatpush1.bf16.msra.mxu0 %v2102
        %2168 = vmatprep.subr.bf16.mxu0 %v2105
        %2169 = vmatpush1.bf16.msra.mxu0 %v2104
        %2170 = vmatprep.subr.bf16.mxu0 %v2107
        %2171 = vmatpush1.bf16.msra.mxu0 %v2106
        %2172 = vmatprep.subr.bf16.mxu0 %v2109
        %2173 = vmatpush1.bf16.msra.mxu0 %v2108
        %2174 = vmatprep.subr.bf16.mxu0 %v2111
        %2175 = vmatpush1.bf16.msra.mxu0 %v2110
        %2176 = vmatprep.mubr.bf16.mxu0 %v1923
        %2177 = vmatmul.mubr.bf16.gmra.mrb[0].mxu0 %v1922
        %v2178 = vpop.f32.mrb[0].mxu0
        %v2179 = vadd.f32 %v1977, %v2178
        %v2180 = vpop.f32.mrb[0].mxu0
        %v2181 = vadd.f32 %v1981, %v2180
        %v2182 = vpop.f32.mrb[0].mxu0
        %v2183 = vadd.f32 %v1977, %v2182
        %v2184 = vpop.f32.mrb[0].mxu0
        %v2185 = vadd.f32 %v1981, %v2184
        %2186 = vmatprep.mubr.bf16.mxu0 %v1925
        %2187 = vmatmul.mubr.bf16.gmra.mrb[0].mxu0 %v1924
        %v2188 = vpop.f32.mrb[0].mxu0
        %v2189 = vadd.f32 %v1977, %v2188
        %v2190 = vpop.f32.mrb[0].mxu0
        %v2191 = vadd.f32 %v1981, %v2190
        %v2192 = vpop.f32.mrb[0].mxu0
        %v2193 = vadd.f32 %v1977, %v2192
        %v2194 = vpop.f32.mrb[0].mxu0
        %v2195 = vadd.f32 %v1981, %v2194
        %2196 = vmatprep.mubr.bf16.mxu0 %v1927
        %2197 = vmatmul.mubr.bf16.gmra.mrb[0].mxu0 %v1926
        %v2198 = vpop.f32.mrb[0].mxu0
        %v2199 = vadd.f32 %v1977, %v2198
        %v2200 = vpop.f32.mrb[0].mxu0
        %v2201 = vadd.f32 %v1981, %v2200
        %v2202 = vpop.f32.mrb[0].mxu0
        %v2203 = vadd.f32 %v1977, %v2202
        %v2204 = vpop.f32.mrb[0].mxu0
        %v2205 = vadd.f32 %v1981, %v2204
        %2206 = vmatprep.mubr.bf16.mxu0 %v1929
        %2207 = vmatmul.mubr.bf16.gmra.mrb[0].mxu0 %v1928
        %v2208 = vpop.f32.mrb[0].mxu0
        %v2209 = vadd.f32 %v1977, %v2208
        %v2210 = vpop.f32.mrb[0].mxu0
        %v2211 = vadd.f32 %v1981, %v2210
        %v2212 = vpop.f32.mrb[0].mxu0
        %v2213 = vadd.f32 %v1977, %v2212
        %v2214 = vpop.f32.mrb[0].mxu0
        %v2215 = vadd.f32 %v1981, %v2214
        %2216 = vmatprep.mubr.bf16.mxu0 %v1931
        %2217 = vmatmul.mubr.bf16.gmra.mrb[0].mxu0 %v1930
        %v2218 = vpop.f32.mrb[0].mxu0
        %v2219 = vadd.f32 %v1977, %v2218
        %v2220 = vpop.f32.mrb[0].mxu0
        %v2221 = vadd.f32 %v1981, %v2220
        %v2222 = vpop.f32.mrb[0].mxu0
        %v2223 = vadd.f32 %v1977, %v2222
        %v2224 = vpop.f32.mrb[0].mxu0
        %v2225 = vadd.f32 %v1981, %v2224
        %2226 = vmatprep.mubr.bf16.mxu0 %v1933
        %2227 = vmatmul.mubr.bf16.gmra.mrb[0].mxu0 %v1932
        %v2228 = vpop.f32.mrb[0].mxu0
        %v2229 = vadd.f32 %v1977, %v2228
        %v2230 = vpop.f32.mrb[0].mxu0
        %v2231 = vadd.f32 %v1981, %v2230
        %v2232 = vpop.f32.mrb[0].mxu0
        %v2233 = vadd.f32 %v1977, %v2232
        %v2234 = vpop.f32.mrb[0].mxu0
        %v2235 = vadd.f32 %v1981, %v2234
        %2236 = vmatprep.mubr.bf16.mxu0 %v1935
        %2237 = vmatmul.mubr.bf16.gmra.mrb[0].mxu0 %v1934
        %v2238 = vpop.f32.mrb[0].mxu0
        %v2239 = vadd.f32 %v1977, %v2238
        %v2240 = vpop.f32.mrb[0].mxu0
        %v2241 = vadd.f32 %v1981, %v2240
        %v2242 = vpop.f32.mrb[0].mxu0
        %v2243 = vadd.f32 %v1977, %v2242
        %v2244 = vpop.f32.mrb[0].mxu0
        %v2245 = vadd.f32 %v1981, %v2244
        %2246 = vmatprep.mubr.bf16.mxu0 %v1937
        %2247 = vmatmul.mubr.bf16.gmra.mrb[0].mxu0 %v1936
        %v2248 = vpop.f32.mrb[0].mxu0
        %v2249 = vadd.f32 %v1977, %v2248
        %v2250 = vpop.f32.mrb[0].mxu0
        %v2251 = vadd.f32 %v1981, %v2250
        %v2252 = vpop.f32.mrb[0].mxu0
        %v2253 = vadd.f32 %v1977, %v2252
        %v2254 = vpop.f32.mrb[0].mxu0
        %v2255 = vadd.f32 %v1981, %v2254
        %2256 = vdwg.mxu0
        %v2257 = vmul.f32 %v2179, 0.01
        %v2258 = vmul.f32 %v2181, 0.01
        %v2259 = vmul.f32 %v2183, 0.01
        %v2260 = vmul.f32 %v2185, 0.01
        %v2261 = vmul.f32 %v2189, 0.01
        %v2262 = vmul.f32 %v2191, 0.01
        %v2263 = vmul.f32 %v2193, 0.01
        %v2264 = vmul.f32 %v2195, 0.01
        %v2265 = vmul.f32 %v2199, 0.01
        %v2266 = vmul.f32 %v2201, 0.01
        %v2267 = vmul.f32 %v2203, 0.01
        %v2268 = vmul.f32 %v2205, 0.01
        %v2269 = vmul.f32 %v2209, 0.01
        %v2270 = vmul.f32 %v2211, 0.01
        %v2271 = vmul.f32 %v2213, 0.01
        %v2272 = vmul.f32 %v2215, 0.01
        %v2273 = vmul.f32 %v2219, 0.01
        %v2274 = vmul.f32 %v2221, 0.01
        %v2275 = vmul.f32 %v2223, 0.01
        %v2276 = vmul.f32 %v2225, 0.01
        %v2277 = vmul.f32 %v2229, 0.01
        %v2278 = vmul.f32 %v2231, 0.01
        %v2279 = vmul.f32 %v2233, 0.01
        %v2280 = vmul.f32 %v2235, 0.01
        %v2281 = vmul.f32 %v2239, 0.01
        %v2282 = vmul.f32 %v2241, 0.01
        %v2283 = vmul.f32 %v2243, 0.01
        %v2284 = vmul.f32 %v2245, 0.01
        %v2285 = vmul.f32 %v2249, 0.01
        %v2286 = vmul.f32 %v2251, 0.01
        %v2287 = vmul.f32 %v2253, 0.01
        %v2288 = vmul.f32 %v2255, 0.01
        %v2289 = vmax.f32 %v2179, %v2257
        %v2290 = vmax.f32 %v2181, %v2258
        %v2291 = vmax.f32 %v2183, %v2259
        %v2292 = vmax.f32 %v2185, %v2260
        %v2293 = vmax.f32 %v2189, %v2261
        %v2294 = vmax.f32 %v2191, %v2262
        %v2295 = vmax.f32 %v2193, %v2263
        %v2296 = vmax.f32 %v2195, %v2264
        %v2297 = vmax.f32 %v2199, %v2265
        %v2298 = vmax.f32 %v2201, %v2266
        %v2299 = vmax.f32 %v2203, %v2267
        %v2300 = vmax.f32 %v2205, %v2268
        %v2301 = vmax.f32 %v2209, %v2269
        %v2302 = vmax.f32 %v2211, %v2270
        %v2303 = vmax.f32 %v2213, %v2271
        %v2304 = vmax.f32 %v2215, %v2272
        %v2305 = vmax.f32 %v2219, %v2273
        %v2306 = vmax.f32 %v2221, %v2274
        %v2307 = vmax.f32 %v2223, %v2275
        %v2308 = vmax.f32 %v2225, %v2276
        %v2309 = vmax.f32 %v2229, %v2277
        %v2310 = vmax.f32 %v2231, %v2278
        %v2311 = vmax.f32 %v2233, %v2279
        %v2312 = vmax.f32 %v2235, %v2280
        %v2313 = vmax.f32 %v2239, %v2281
        %v2314 = vmax.f32 %v2241, %v2282
        %v2315 = vmax.f32 %v2243, %v2283
        %v2316 = vmax.f32 %v2245, %v2284
        %v2317 = vmax.f32 %v2249, %v2285
        %v2318 = vmax.f32 %v2251, %v2286
        %v2319 = vmax.f32 %v2253, %v2287
        %v2320 = vmax.f32 %v2255, %v2288
        %v2321 = vpack.c.bf16 %v2291, %v2289
        %v2322 = vpack.c.bf16 %v2292, %v2290
        %v2323 = vpack.c.bf16 %v2295, %v2293
        %v2324 = vpack.c.bf16 %v2296, %v2294
        %v2325 = vpack.c.bf16 %v2299, %v2297
        %v2326 = vpack.c.bf16 %v2300, %v2298
        %v2327 = vpack.c.bf16 %v2303, %v2301
        %v2328 = vpack.c.bf16 %v2304, %v2302
        %v2329 = vpack.c.bf16 %v2307, %v2305
        %v2330 = vpack.c.bf16 %v2308, %v2306
        %v2331 = vpack.c.bf16 %v2311, %v2309
        %v2332 = vpack.c.bf16 %v2312, %v2310
        %v2333 = vpack.c.bf16 %v2315, %v2313
        %v2334 = vpack.c.bf16 %v2316, %v2314
        %v2335 = vpack.c.bf16 %v2319, %v2317
        %v2336 = vpack.c.bf16 %v2320, %v2318
        %s2337 = scalar_lea.vmem [#allocation11], 768
        %v2338 = vld [vmem:[%s2337] sm:$0xff]
        %v2339 = vld [vmem:[%s2337 + $0x8] sm:$0xff]
        %v2340 = vld [vmem:[%s2337 + $0x10] sm:$0xff]
        %v2341 = vld [vmem:[%s2337 + $0x18] sm:$0xff]
        %v2342 = vld [vmem:[%s2337 + $0x20] sm:$0xff]
        %v2343 = vld [vmem:[%s2337 + $0x28] sm:$0xff]
        %v2344 = vld [vmem:[%s2337 + $0x30] sm:$0xff]
        %v2345 = vld [vmem:[%s2337 + $0x38] sm:$0xff]
        %v2346 = vld [vmem:[%s2337 + $0x40] sm:$0xff]
        %v2347 = vld [vmem:[%s2337 + $0x48] sm:$0xff]
        %v2348 = vld [vmem:[%s2337 + $0x50] sm:$0xff]
        %v2349 = vld [vmem:[%s2337 + $0x58] sm:$0xff]
        %v2350 = vld [vmem:[%s2337 + $0x60] sm:$0xff]
        %v2351 = vld [vmem:[%s2337 + $0x68] sm:$0xff]
        %v2352 = vld [vmem:[%s2337 + $0x70] sm:$0xff]
        %v2353 = vld [vmem:[%s2337 + $0x78] sm:$0xff]
        %v2354 = vld [vmem:[%s2337 + $0x80] sm:$0xff]
        %v2355 = vld [vmem:[%s2337 + $0x88] sm:$0xff]
        %v2356 = vld [vmem:[%s2337 + $0x90] sm:$0xff]
        %v2357 = vld [vmem:[%s2337 + $0x98] sm:$0xff]
        %v2358 = vld [vmem:[%s2337 + $0xa0] sm:$0xff]
        %v2359 = vld [vmem:[%s2337 + $0xa8] sm:$0xff]
        %v2360 = vld [vmem:[%s2337 + $0xb0] sm:$0xff]
        %v2361 = vld [vmem:[%s2337 + $0xb8] sm:$0xff]
        %v2362 = vld [vmem:[%s2337 + $0xc0] sm:$0xff]
        %v2363 = vld [vmem:[%s2337 + $0xc8] sm:$0xff]
        %v2364 = vld [vmem:[%s2337 + $0xd0] sm:$0xff]
        %v2365 = vld [vmem:[%s2337 + $0xd8] sm:$0xff]
        %v2366 = vld [vmem:[%s2337 + $0xe0] sm:$0xff]
        %v2367 = vld [vmem:[%s2337 + $0xe8] sm:$0xff]
        %v2368 = vld [vmem:[%s2337 + $0xf0] sm:$0xff]
        %v2369 = vld [vmem:[%s2337 + $0xf8] sm:$0xff]
        %s2370 = scalar_lea.vmem [#allocation12], 6
        %v2371 = vld [vmem:[%s2370] sm:$0x3]
        %v2373 = vlaneseq
        %v2374 = vshrl.u32 %v2373, 7
        %v2375 = vsub.s32 0, %v2374
        %v2376 = vrot.slane %v2371, %v2375
        %v2377 = vlaneseq
        %v2378 = vshrl.u32 %v2377, 7
        %v2379 = vsub.s32 1, %v2378
        %v2380 = vrot.slane %v2371, %v2379
        %v2415 = vunpack.c.l.b16 %v2338
        %v2416 = vunpack.c.h.b16 %v2338
        %v2417 = vunpack.c.l.b16 %v2339
        %v2418 = vunpack.c.h.b16 %v2339
        %v2419 = vunpack.c.l.b16 %v2340
        %v2420 = vunpack.c.h.b16 %v2340
        %v2421 = vunpack.c.l.b16 %v2341
        %v2422 = vunpack.c.h.b16 %v2341
        %v2423 = vunpack.c.l.b16 %v2342
        %v2424 = vunpack.c.h.b16 %v2342
        %v2425 = vunpack.c.l.b16 %v2343
        %v2426 = vunpack.c.h.b16 %v2343
        %v2427 = vunpack.c.l.b16 %v2344
        %v2428 = vunpack.c.h.b16 %v2344
        %v2429 = vunpack.c.l.b16 %v2345
        %v2430 = vunpack.c.h.b16 %v2345
        %v2431 = vunpack.c.l.b16 %v2346
        %v2432 = vunpack.c.h.b16 %v2346
        %v2433 = vunpack.c.l.b16 %v2347
        %v2434 = vunpack.c.h.b16 %v2347
        %v2435 = vunpack.c.l.b16 %v2348
        %v2436 = vunpack.c.h.b16 %v2348
        %v2437 = vunpack.c.l.b16 %v2349
        %v2438 = vunpack.c.h.b16 %v2349
        %v2439 = vunpack.c.l.b16 %v2350
        %v2440 = vunpack.c.h.b16 %v2350
        %v2441 = vunpack.c.l.b16 %v2351
        %v2442 = vunpack.c.h.b16 %v2351
        %v2443 = vunpack.c.l.b16 %v2352
        %v2444 = vunpack.c.h.b16 %v2352
        %v2445 = vunpack.c.l.b16 %v2353
        %v2446 = vunpack.c.h.b16 %v2353
        %v2447 = vunpack.c.l.b16 %v2354
        %v2448 = vunpack.c.h.b16 %v2354
        %v2449 = vunpack.c.l.b16 %v2355
        %v2450 = vunpack.c.h.b16 %v2355
        %v2451 = vunpack.c.l.b16 %v2356
        %v2452 = vunpack.c.h.b16 %v2356
        %v2453 = vunpack.c.l.b16 %v2357
        %v2454 = vunpack.c.h.b16 %v2357
        %v2455 = vunpack.c.l.b16 %v2358
        %v2456 = vunpack.c.h.b16 %v2358
        %v2457 = vunpack.c.l.b16 %v2359
        %v2458 = vunpack.c.h.b16 %v2359
        %v2459 = vunpack.c.l.b16 %v2360
        %v2460 = vunpack.c.h.b16 %v2360
        %v2461 = vunpack.c.l.b16 %v2361
        %v2462 = vunpack.c.h.b16 %v2361
        %v2463 = vunpack.c.l.b16 %v2362
        %v2464 = vunpack.c.h.b16 %v2362
        %v2465 = vunpack.c.l.b16 %v2363
        %v2466 = vunpack.c.h.b16 %v2363
        %v2467 = vunpack.c.l.b16 %v2364
        %v2468 = vunpack.c.h.b16 %v2364
        %v2469 = vunpack.c.l.b16 %v2365
        %v2470 = vunpack.c.h.b16 %v2365
        %v2471 = vunpack.c.l.b16 %v2366
        %v2472 = vunpack.c.h.b16 %v2366
        %v2473 = vunpack.c.l.b16 %v2367
        %v2474 = vunpack.c.h.b16 %v2367
        %v2475 = vunpack.c.l.b16 %v2368
        %v2476 = vunpack.c.h.b16 %v2368
        %v2477 = vunpack.c.l.b16 %v2369
        %v2478 = vunpack.c.h.b16 %v2369
        %v2479 = vpack.c.b16 %v2417, %v2415
        %v2480 = vpack.c.b16 %v2418, %v2416
        %v2481 = vpack.c.b16 %v2421, %v2419
        %v2482 = vpack.c.b16 %v2422, %v2420
        %v2483 = vpack.c.b16 %v2425, %v2423
        %v2484 = vpack.c.b16 %v2426, %v2424
        %v2485 = vpack.c.b16 %v2429, %v2427
        %v2486 = vpack.c.b16 %v2430, %v2428
        %v2487 = vpack.c.b16 %v2433, %v2431
        %v2488 = vpack.c.b16 %v2434, %v2432
        %v2489 = vpack.c.b16 %v2437, %v2435
        %v2490 = vpack.c.b16 %v2438, %v2436
        %v2491 = vpack.c.b16 %v2441, %v2439
        %v2492 = vpack.c.b16 %v2442, %v2440
        %v2493 = vpack.c.b16 %v2445, %v2443
        %v2494 = vpack.c.b16 %v2446, %v2444
        %v2495 = vpack.c.b16 %v2449, %v2447
        %v2496 = vpack.c.b16 %v2450, %v2448
        %v2497 = vpack.c.b16 %v2453, %v2451
        %v2498 = vpack.c.b16 %v2454, %v2452
        %v2499 = vpack.c.b16 %v2457, %v2455
        %v2500 = vpack.c.b16 %v2458, %v2456
        %v2501 = vpack.c.b16 %v2461, %v2459
        %v2502 = vpack.c.b16 %v2462, %v2460
        %v2503 = vpack.c.b16 %v2465, %v2463
        %v2504 = vpack.c.b16 %v2466, %v2464
        %v2505 = vpack.c.b16 %v2469, %v2467
        %v2506 = vpack.c.b16 %v2470, %v2468
        %v2507 = vpack.c.b16 %v2473, %v2471
        %v2508 = vpack.c.b16 %v2474, %v2472
        %v2509 = vpack.c.b16 %v2477, %v2475
        %v2510 = vpack.c.b16 %v2478, %v2476
        %2543 = vmatprep.subr.bf16.mxu0 %v2480
        %2544 = vmatpush1.bf16.msra.mxu0 %v2479
        %2545 = vmatprep.subr.bf16.mxu0 %v2482
        %2546 = vmatpush1.bf16.msra.mxu0 %v2481
        %2547 = vmatprep.subr.bf16.mxu0 %v2484
        %2548 = vmatpush1.bf16.msra.mxu0 %v2483
        %2549 = vmatprep.subr.bf16.mxu0 %v2486
        %2550 = vmatpush1.bf16.msra.mxu0 %v2485
        %2551 = vmatprep.subr.bf16.mxu0 %v2488
        %2552 = vmatpush1.bf16.msra.mxu0 %v2487
        %2553 = vmatprep.subr.bf16.mxu0 %v2490
        %2554 = vmatpush1.bf16.msra.mxu0 %v2489
        %2555 = vmatprep.subr.bf16.mxu0 %v2492
        %2556 = vmatpush1.bf16.msra.mxu0 %v2491
        %2557 = vmatprep.subr.bf16.mxu0 %v2494
        %2558 = vmatpush1.bf16.msra.mxu0 %v2493
        %2559 = vmatprep.subr.bf16.mxu0 %v2496
        %2560 = vmatpush1.bf16.msra.mxu0 %v2495
        %2561 = vmatprep.subr.bf16.mxu0 %v2498
        %2562 = vmatpush1.bf16.msra.mxu0 %v2497
        %2563 = vmatprep.subr.bf16.mxu0 %v2500
        %2564 = vmatpush1.bf16.msra.mxu0 %v2499
        %2565 = vmatprep.subr.bf16.mxu0 %v2502
        %2566 = vmatpush1.bf16.msra.mxu0 %v2501
        %2567 = vmatprep.subr.bf16.mxu0 %v2504
        %2568 = vmatpush1.bf16.msra.mxu0 %v2503
        %2569 = vmatprep.subr.bf16.mxu0 %v2506
        %2570 = vmatpush1.bf16.msra.mxu0 %v2505
        %2571 = vmatprep.subr.bf16.mxu0 %v2508
        %2572 = vmatpush1.bf16.msra.mxu0 %v2507
        %2573 = vmatprep.subr.bf16.mxu0 %v2510
        %2574 = vmatpush1.bf16.msra.mxu0 %v2509
        %2575 = vmatprep.mubr.bf16.mxu0 %v2322
        %2576 = vmatmul.mubr.bf16.gmra.mrb[0].mxu0 %v2321
        %v2577 = vpop.f32.mrb[0].mxu0
        %v2578 = vadd.f32 %v2376, %v2577
        %v2579 = vpop.f32.mrb[0].mxu0
        %v2580 = vadd.f32 %v2380, %v2579
        %v2581 = vpop.f32.mrb[0].mxu0
        %v2582 = vadd.f32 %v2376, %v2581
        %v2583 = vpop.f32.mrb[0].mxu0
        %v2584 = vadd.f32 %v2380, %v2583
        %2585 = vmatprep.mubr.bf16.mxu0 %v2324
        %2586 = vmatmul.mubr.bf16.gmra.mrb[0].mxu0 %v2323
        %v2587 = vpop.f32.mrb[0].mxu0
        %v2588 = vadd.f32 %v2376, %v2587
        %v2589 = vpop.f32.mrb[0].mxu0
        %v2590 = vadd.f32 %v2380, %v2589
        %v2591 = vpop.f32.mrb[0].mxu0
        %v2592 = vadd.f32 %v2376, %v2591
        %v2593 = vpop.f32.mrb[0].mxu0
        %v2594 = vadd.f32 %v2380, %v2593
        %2595 = vmatprep.mubr.bf16.mxu0 %v2326
        %2596 = vmatmul.mubr.bf16.gmra.mrb[0].mxu0 %v2325
        %v2597 = vpop.f32.mrb[0].mxu0
        %v2598 = vadd.f32 %v2376, %v2597
        %v2599 = vpop.f32.mrb[0].mxu0
        %v2600 = vadd.f32 %v2380, %v2599
        %v2601 = vpop.f32.mrb[0].mxu0
        %v2602 = vadd.f32 %v2376, %v2601
        %v2603 = vpop.f32.mrb[0].mxu0
        %v2604 = vadd.f32 %v2380, %v2603
        %2605 = vmatprep.mubr.bf16.mxu0 %v2328
        %2606 = vmatmul.mubr.bf16.gmra.mrb[0].mxu0 %v2327
        %v2607 = vpop.f32.mrb[0].mxu0
        %v2608 = vadd.f32 %v2376, %v2607
        %v2609 = vpop.f32.mrb[0].mxu0
        %v2610 = vadd.f32 %v2380, %v2609
        %v2611 = vpop.f32.mrb[0].mxu0
        %v2612 = vadd.f32 %v2376, %v2611
        %v2613 = vpop.f32.mrb[0].mxu0
        %v2614 = vadd.f32 %v2380, %v2613
        %2615 = vmatprep.mubr.bf16.mxu0 %v2330
        %2616 = vmatmul.mubr.bf16.gmra.mrb[0].mxu0 %v2329
        %v2617 = vpop.f32.mrb[0].mxu0
        %v2618 = vadd.f32 %v2376, %v2617
        %v2619 = vpop.f32.mrb[0].mxu0
        %v2620 = vadd.f32 %v2380, %v2619
        %v2621 = vpop.f32.mrb[0].mxu0
        %v2622 = vadd.f32 %v2376, %v2621
        %v2623 = vpop.f32.mrb[0].mxu0
        %v2624 = vadd.f32 %v2380, %v2623
        %2625 = vmatprep.mubr.bf16.mxu0 %v2332
        %2626 = vmatmul.mubr.bf16.gmra.mrb[0].mxu0 %v2331
        %v2627 = vpop.f32.mrb[0].mxu0
        %v2628 = vadd.f32 %v2376, %v2627
        %v2629 = vpop.f32.mrb[0].mxu0
        %v2630 = vadd.f32 %v2380, %v2629
        %v2631 = vpop.f32.mrb[0].mxu0
        %v2632 = vadd.f32 %v2376, %v2631
        %v2633 = vpop.f32.mrb[0].mxu0
        %v2634 = vadd.f32 %v2380, %v2633
        %2635 = vmatprep.mubr.bf16.mxu0 %v2334
        %2636 = vmatmul.mubr.bf16.gmra.mrb[0].mxu0 %v2333
        %v2637 = vpop.f32.mrb[0].mxu0
        %v2638 = vadd.f32 %v2376, %v2637
        %v2639 = vpop.f32.mrb[0].mxu0
        %v2640 = vadd.f32 %v2380, %v2639
        %v2641 = vpop.f32.mrb[0].mxu0
        %v2642 = vadd.f32 %v2376, %v2641
        %v2643 = vpop.f32.mrb[0].mxu0
        %v2644 = vadd.f32 %v2380, %v2643
        %2645 = vmatprep.mubr.bf16.mxu0 %v2336
        %2646 = vmatmul.mubr.bf16.gmra.mrb[0].mxu0 %v2335
        %v2647 = vpop.f32.mrb[0].mxu0
        %v2648 = vadd.f32 %v2376, %v2647
        %v2649 = vpop.f32.mrb[0].mxu0
        %v2650 = vadd.f32 %v2380, %v2649
        %v2651 = vpop.f32.mrb[0].mxu0
        %v2652 = vadd.f32 %v2376, %v2651
        %v2653 = vpop.f32.mrb[0].mxu0
        %v2654 = vadd.f32 %v2380, %v2653
        %2655 = vdwg.mxu0
        %v2656 = vmul.f32 %v2578, 0.01
        %v2657 = vmul.f32 %v2580, 0.01
        %v2658 = vmul.f32 %v2582, 0.01
        %v2659 = vmul.f32 %v2584, 0.01
        %v2660 = vmul.f32 %v2588, 0.01
        %v2661 = vmul.f32 %v2590, 0.01
        %v2662 = vmul.f32 %v2592, 0.01
        %v2663 = vmul.f32 %v2594, 0.01
        %v2664 = vmul.f32 %v2598, 0.01
        %v2665 = vmul.f32 %v2600, 0.01
        %v2666 = vmul.f32 %v2602, 0.01
        %v2667 = vmul.f32 %v2604, 0.01
        %v2668 = vmul.f32 %v2608, 0.01
        %v2669 = vmul.f32 %v2610, 0.01
        %v2670 = vmul.f32 %v2612, 0.01
        %v2671 = vmul.f32 %v2614, 0.01
        %v2672 = vmul.f32 %v2618, 0.01
        %v2673 = vmul.f32 %v2620, 0.01
        %v2674 = vmul.f32 %v2622, 0.01
        %v2675 = vmul.f32 %v2624, 0.01
        %v2676 = vmul.f32 %v2628, 0.01
        %v2677 = vmul.f32 %v2630, 0.01
        %v2678 = vmul.f32 %v2632, 0.01
        %v2679 = vmul.f32 %v2634, 0.01
        %v2680 = vmul.f32 %v2638, 0.01
        %v2681 = vmul.f32 %v2640, 0.01
        %v2682 = vmul.f32 %v2642, 0.01
        %v2683 = vmul.f32 %v2644, 0.01
        %v2684 = vmul.f32 %v2648, 0.01
        %v2685 = vmul.f32 %v2650, 0.01
        %v2686 = vmul.f32 %v2652, 0.01
        %v2687 = vmul.f32 %v2654, 0.01
        %v2688 = vmax.f32 %v2578, %v2656
        %v2689 = vmax.f32 %v2580, %v2657
        %v2690 = vmax.f32 %v2582, %v2658
        %v2691 = vmax.f32 %v2584, %v2659
        %v2692 = vmax.f32 %v2588, %v2660
        %v2693 = vmax.f32 %v2590, %v2661
        %v2694 = vmax.f32 %v2592, %v2662
        %v2695 = vmax.f32 %v2594, %v2663
        %v2696 = vmax.f32 %v2598, %v2664
        %v2697 = vmax.f32 %v2600, %v2665
        %v2698 = vmax.f32 %v2602, %v2666
        %v2699 = vmax.f32 %v2604, %v2667
        %v2700 = vmax.f32 %v2608, %v2668
        %v2701 = vmax.f32 %v2610, %v2669
        %v2702 = vmax.f32 %v2612, %v2670
        %v2703 = vmax.f32 %v2614, %v2671
        %v2704 = vmax.f32 %v2618, %v2672
        %v2705 = vmax.f32 %v2620, %v2673
        %v2706 = vmax.f32 %v2622, %v2674
        %v2707 = vmax.f32 %v2624, %v2675
        %v2708 = vmax.f32 %v2628, %v2676
        %v2709 = vmax.f32 %v2630, %v2677
        %v2710 = vmax.f32 %v2632, %v2678
        %v2711 = vmax.f32 %v2634, %v2679
        %v2712 = vmax.f32 %v2638, %v2680
        %v2713 = vmax.f32 %v2640, %v2681
        %v2714 = vmax.f32 %v2642, %v2682
        %v2715 = vmax.f32 %v2644, %v2683
        %v2716 = vmax.f32 %v2648, %v2684
        %v2717 = vmax.f32 %v2650, %v2685
        %v2718 = vmax.f32 %v2652, %v2686
        %v2719 = vmax.f32 %v2654, %v2687
        %v2720 = vpack.c.bf16 %v2690, %v2688
        %v2721 = vpack.c.bf16 %v2691, %v2689
        %v2722 = vpack.c.bf16 %v2694, %v2692
        %v2723 = vpack.c.bf16 %v2695, %v2693
        %v2724 = vpack.c.bf16 %v2698, %v2696
        %v2725 = vpack.c.bf16 %v2699, %v2697
        %v2726 = vpack.c.bf16 %v2702, %v2700
        %v2727 = vpack.c.bf16 %v2703, %v2701
        %v2728 = vpack.c.bf16 %v2706, %v2704
        %v2729 = vpack.c.bf16 %v2707, %v2705
        %v2730 = vpack.c.bf16 %v2710, %v2708
        %v2731 = vpack.c.bf16 %v2711, %v2709
        %v2732 = vpack.c.bf16 %v2714, %v2712
        %v2733 = vpack.c.bf16 %v2715, %v2713
        %v2734 = vpack.c.bf16 %v2718, %v2716
        %v2735 = vpack.c.bf16 %v2719, %v2717
        %s2736 = scalar_lea.vmem [#allocation11], 1024
        %v2737 = vld [vmem:[%s2736] sm:$0xff]
        %v2738 = vld [vmem:[%s2736 + $0x8] sm:$0xff]
        %v2739 = vld [vmem:[%s2736 + $0x10] sm:$0xff]
        %v2740 = vld [vmem:[%s2736 + $0x18] sm:$0xff]
        %v2741 = vld [vmem:[%s2736 + $0x20] sm:$0xff]
        %v2742 = vld [vmem:[%s2736 + $0x28] sm:$0xff]
        %v2743 = vld [vmem:[%s2736 + $0x30] sm:$0xff]
        %v2744 = vld [vmem:[%s2736 + $0x38] sm:$0xff]
        %v2745 = vld [vmem:[%s2736 + $0x40] sm:$0xff]
        %v2746 = vld [vmem:[%s2736 + $0x48] sm:$0xff]
        %v2747 = vld [vmem:[%s2736 + $0x50] sm:$0xff]
        %v2748 = vld [vmem:[%s2736 + $0x58] sm:$0xff]
        %v2749 = vld [vmem:[%s2736 + $0x60] sm:$0xff]
        %v2750 = vld [vmem:[%s2736 + $0x68] sm:$0xff]
        %v2751 = vld [vmem:[%s2736 + $0x70] sm:$0xff]
        %v2752 = vld [vmem:[%s2736 + $0x78] sm:$0xff]
        %v2753 = vld [vmem:[%s2736 + $0x80] sm:$0xff]
        %v2754 = vld [vmem:[%s2736 + $0x88] sm:$0xff]
        %v2755 = vld [vmem:[%s2736 + $0x90] sm:$0xff]
        %v2756 = vld [vmem:[%s2736 + $0x98] sm:$0xff]
        %v2757 = vld [vmem:[%s2736 + $0xa0] sm:$0xff]
        %v2758 = vld [vmem:[%s2736 + $0xa8] sm:$0xff]
        %v2759 = vld [vmem:[%s2736 + $0xb0] sm:$0xff]
        %v2760 = vld [vmem:[%s2736 + $0xb8] sm:$0xff]
        %v2761 = vld [vmem:[%s2736 + $0xc0] sm:$0xff]
        %v2762 = vld [vmem:[%s2736 + $0xc8] sm:$0xff]
        %v2763 = vld [vmem:[%s2736 + $0xd0] sm:$0xff]
        %v2764 = vld [vmem:[%s2736 + $0xd8] sm:$0xff]
        %v2765 = vld [vmem:[%s2736 + $0xe0] sm:$0xff]
        %v2766 = vld [vmem:[%s2736 + $0xe8] sm:$0xff]
        %v2767 = vld [vmem:[%s2736 + $0xf0] sm:$0xff]
        %v2768 = vld [vmem:[%s2736 + $0xf8] sm:$0xff]
        %s2769 = scalar_lea.vmem [#allocation12], 8
        %v2770 = vld [vmem:[%s2769] sm:$0x3]
        %v2772 = vlaneseq
        %v2773 = vshrl.u32 %v2772, 7
        %v2774 = vsub.s32 0, %v2773
        %v2775 = vrot.slane %v2770, %v2774
        %v2776 = vlaneseq
        %v2777 = vshrl.u32 %v2776, 7
        %v2778 = vsub.s32 1, %v2777
        %v2779 = vrot.slane %v2770, %v2778
        %v2814 = vunpack.c.l.b16 %v2737
        %v2815 = vunpack.c.h.b16 %v2737
        %v2816 = vunpack.c.l.b16 %v2738
        %v2817 = vunpack.c.h.b16 %v2738
        %v2818 = vunpack.c.l.b16 %v2739
        %v2819 = vunpack.c.h.b16 %v2739
        %v2820 = vunpack.c.l.b16 %v2740
        %v2821 = vunpack.c.h.b16 %v2740
        %v2822 = vunpack.c.l.b16 %v2741
        %v2823 = vunpack.c.h.b16 %v2741
        %v2824 = vunpack.c.l.b16 %v2742
        %v2825 = vunpack.c.h.b16 %v2742
        %v2826 = vunpack.c.l.b16 %v2743
        %v2827 = vunpack.c.h.b16 %v2743
        %v2828 = vunpack.c.l.b16 %v2744
        %v2829 = vunpack.c.h.b16 %v2744
        %v2830 = vunpack.c.l.b16 %v2745
        %v2831 = vunpack.c.h.b16 %v2745
        %v2832 = vunpack.c.l.b16 %v2746
        %v2833 = vunpack.c.h.b16 %v2746
        %v2834 = vunpack.c.l.b16 %v2747
        %v2835 = vunpack.c.h.b16 %v2747
        %v2836 = vunpack.c.l.b16 %v2748
        %v2837 = vunpack.c.h.b16 %v2748
        %v2838 = vunpack.c.l.b16 %v2749
        %v2839 = vunpack.c.h.b16 %v2749
        %v2840 = vunpack.c.l.b16 %v2750
        %v2841 = vunpack.c.h.b16 %v2750
        %v2842 = vunpack.c.l.b16 %v2751
        %v2843 = vunpack.c.h.b16 %v2751
        %v2844 = vunpack.c.l.b16 %v2752
        %v2845 = vunpack.c.h.b16 %v2752
        %v2846 = vunpack.c.l.b16 %v2753
        %v2847 = vunpack.c.h.b16 %v2753
        %v2848 = vunpack.c.l.b16 %v2754
        %v2849 = vunpack.c.h.b16 %v2754
        %v2850 = vunpack.c.l.b16 %v2755
        %v2851 = vunpack.c.h.b16 %v2755
        %v2852 = vunpack.c.l.b16 %v2756
        %v2853 = vunpack.c.h.b16 %v2756
        %v2854 = vunpack.c.l.b16 %v2757
        %v2855 = vunpack.c.h.b16 %v2757
        %v2856 = vunpack.c.l.b16 %v2758
        %v2857 = vunpack.c.h.b16 %v2758
        %v2858 = vunpack.c.l.b16 %v2759
        %v2859 = vunpack.c.h.b16 %v2759
        %v2860 = vunpack.c.l.b16 %v2760
        %v2861 = vunpack.c.h.b16 %v2760
        %v2862 = vunpack.c.l.b16 %v2761
        %v2863 = vunpack.c.h.b16 %v2761
        %v2864 = vunpack.c.l.b16 %v2762
        %v2865 = vunpack.c.h.b16 %v2762
        %v2866 = vunpack.c.l.b16 %v2763
        %v2867 = vunpack.c.h.b16 %v2763
        %v2868 = vunpack.c.l.b16 %v2764
        %v2869 = vunpack.c.h.b16 %v2764
        %v2870 = vunpack.c.l.b16 %v2765
        %v2871 = vunpack.c.h.b16 %v2765
        %v2872 = vunpack.c.l.b16 %v2766
        %v2873 = vunpack.c.h.b16 %v2766
        %v2874 = vunpack.c.l.b16 %v2767
        %v2875 = vunpack.c.h.b16 %v2767
        %v2876 = vunpack.c.l.b16 %v2768
        %v2877 = vunpack.c.h.b16 %v2768
        %v2878 = vpack.c.b16 %v2816, %v2814
        %v2879 = vpack.c.b16 %v2817, %v2815
        %v2880 = vpack.c.b16 %v2820, %v2818
        %v2881 = vpack.c.b16 %v2821, %v2819
        %v2882 = vpack.c.b16 %v2824, %v2822
        %v2883 = vpack.c.b16 %v2825, %v2823
        %v2884 = vpack.c.b16 %v2828, %v2826
        %v2885 = vpack.c.b16 %v2829, %v2827
        %v2886 = vpack.c.b16 %v2832, %v2830
        %v2887 = vpack.c.b16 %v2833, %v2831
        %v2888 = vpack.c.b16 %v2836, %v2834
        %v2889 = vpack.c.b16 %v2837, %v2835
        %v2890 = vpack.c.b16 %v2840, %v2838
        %v2891 = vpack.c.b16 %v2841, %v2839
        %v2892 = vpack.c.b16 %v2844, %v2842
        %v2893 = vpack.c.b16 %v2845, %v2843
        %v2894 = vpack.c.b16 %v2848, %v2846
        %v2895 = vpack.c.b16 %v2849, %v2847
        %v2896 = vpack.c.b16 %v2852, %v2850
        %v2897 = vpack.c.b16 %v2853, %v2851
        %v2898 = vpack.c.b16 %v2856, %v2854
        %v2899 = vpack.c.b16 %v2857, %v2855
        %v2900 = vpack.c.b16 %v2860, %v2858
        %v2901 = vpack.c.b16 %v2861, %v2859
        %v2902 = vpack.c.b16 %v2864, %v2862
        %v2903 = vpack.c.b16 %v2865, %v2863
        %v2904 = vpack.c.b16 %v2868, %v2866
        %v2905 = vpack.c.b16 %v2869, %v2867
        %v2906 = vpack.c.b16 %v2872, %v2870
        %v2907 = vpack.c.b16 %v2873, %v2871
        %v2908 = vpack.c.b16 %v2876, %v2874
        %v2909 = vpack.c.b16 %v2877, %v2875
        %2942 = vmatprep.subr.bf16.mxu0 %v2879
        %2943 = vmatpush1.bf16.msra.mxu0 %v2878
        %2944 = vmatprep.subr.bf16.mxu0 %v2881
        %2945 = vmatpush1.bf16.msra.mxu0 %v2880
        %2946 = vmatprep.subr.bf16.mxu0 %v2883
        %2947 = vmatpush1.bf16.msra.mxu0 %v2882
        %2948 = vmatprep.subr.bf16.mxu0 %v2885
        %2949 = vmatpush1.bf16.msra.mxu0 %v2884
        %2950 = vmatprep.subr.bf16.mxu0 %v2887
        %2951 = vmatpush1.bf16.msra.mxu0 %v2886
        %2952 = vmatprep.subr.bf16.mxu0 %v2889
        %2953 = vmatpush1.bf16.msra.mxu0 %v2888
        %2954 = vmatprep.subr.bf16.mxu0 %v2891
        %2955 = vmatpush1.bf16.msra.mxu0 %v2890
        %2956 = vmatprep.subr.bf16.mxu0 %v2893
        %2957 = vmatpush1.bf16.msra.mxu0 %v2892
        %2958 = vmatprep.subr.bf16.mxu0 %v2895
        %2959 = vmatpush1.bf16.msra.mxu0 %v2894
        %2960 = vmatprep.subr.bf16.mxu0 %v2897
        %2961 = vmatpush1.bf16.msra.mxu0 %v2896
        %2962 = vmatprep.subr.bf16.mxu0 %v2899
        %2963 = vmatpush1.bf16.msra.mxu0 %v2898
        %2964 = vmatprep.subr.bf16.mxu0 %v2901
        %2965 = vmatpush1.bf16.msra.mxu0 %v2900
        %2966 = vmatprep.subr.bf16.mxu0 %v2903
        %2967 = vmatpush1.bf16.msra.mxu0 %v2902
        %2968 = vmatprep.subr.bf16.mxu0 %v2905
        %2969 = vmatpush1.bf16.msra.mxu0 %v2904
        %2970 = vmatprep.subr.bf16.mxu0 %v2907
        %2971 = vmatpush1.bf16.msra.mxu0 %v2906
        %2972 = vmatprep.subr.bf16.mxu0 %v2909
        %2973 = vmatpush1.bf16.msra.mxu0 %v2908
        %2974 = vmatprep.mubr.bf16.mxu0 %v2721
        %2975 = vmatmul.mubr.bf16.gmra.mrb[0].mxu0 %v2720
        %v2976 = vpop.f32.mrb[0].mxu0
        %v2977 = vadd.f32 %v2775, %v2976
        %v2978 = vpop.f32.mrb[0].mxu0
        %v2979 = vadd.f32 %v2779, %v2978
        %v2980 = vpop.f32.mrb[0].mxu0
        %v2981 = vadd.f32 %v2775, %v2980
        %v2982 = vpop.f32.mrb[0].mxu0
        %v2983 = vadd.f32 %v2779, %v2982
        %2984 = vmatprep.mubr.bf16.mxu0 %v2723
        %2985 = vmatmul.mubr.bf16.gmra.mrb[0].mxu0 %v2722
        %v2986 = vpop.f32.mrb[0].mxu0
        %v2987 = vadd.f32 %v2775, %v2986
        %v2988 = vpop.f32.mrb[0].mxu0
        %v2989 = vadd.f32 %v2779, %v2988
        %v2990 = vpop.f32.mrb[0].mxu0
        %v2991 = vadd.f32 %v2775, %v2990
        %v2992 = vpop.f32.mrb[0].mxu0
        %v2993 = vadd.f32 %v2779, %v2992
        %2994 = vmatprep.mubr.bf16.mxu0 %v2725
        %2995 = vmatmul.mubr.bf16.gmra.mrb[0].mxu0 %v2724
        %v2996 = vpop.f32.mrb[0].mxu0
        %v2997 = vadd.f32 %v2775, %v2996
        %v2998 = vpop.f32.mrb[0].mxu0
        %v2999 = vadd.f32 %v2779, %v2998
        %v3000 = vpop.f32.mrb[0].mxu0
        %v3001 = vadd.f32 %v2775, %v3000
        %v3002 = vpop.f32.mrb[0].mxu0
        %v3003 = vadd.f32 %v2779, %v3002
        %3004 = vmatprep.mubr.bf16.mxu0 %v2727
        %3005 = vmatmul.mubr.bf16.gmra.mrb[0].mxu0 %v2726
        %v3006 = vpop.f32.mrb[0].mxu0
        %v3007 = vadd.f32 %v2775, %v3006
        %v3008 = vpop.f32.mrb[0].mxu0
        %v3009 = vadd.f32 %v2779, %v3008
        %v3010 = vpop.f32.mrb[0].mxu0
        %v3011 = vadd.f32 %v2775, %v3010
        %v3012 = vpop.f32.mrb[0].mxu0
        %v3013 = vadd.f32 %v2779, %v3012
        %3014 = vmatprep.mubr.bf16.mxu0 %v2729
        %3015 = vmatmul.mubr.bf16.gmra.mrb[0].mxu0 %v2728
        %v3016 = vpop.f32.mrb[0].mxu0
        %v3017 = vadd.f32 %v2775, %v3016
        %v3018 = vpop.f32.mrb[0].mxu0
        %v3019 = vadd.f32 %v2779, %v3018
        %v3020 = vpop.f32.mrb[0].mxu0
        %v3021 = vadd.f32 %v2775, %v3020
        %v3022 = vpop.f32.mrb[0].mxu0
        %v3023 = vadd.f32 %v2779, %v3022
        %3024 = vmatprep.mubr.bf16.mxu0 %v2731
        %3025 = vmatmul.mubr.bf16.gmra.mrb[0].mxu0 %v2730
        %v3026 = vpop.f32.mrb[0].mxu0
        %v3027 = vadd.f32 %v2775, %v3026
        %v3028 = vpop.f32.mrb[0].mxu0
        %v3029 = vadd.f32 %v2779, %v3028
        %v3030 = vpop.f32.mrb[0].mxu0
        %v3031 = vadd.f32 %v2775, %v3030
        %v3032 = vpop.f32.mrb[0].mxu0
        %v3033 = vadd.f32 %v2779, %v3032
        %3034 = vmatprep.mubr.bf16.mxu0 %v2733
        %3035 = vmatmul.mubr.bf16.gmra.mrb[0].mxu0 %v2732
        %v3036 = vpop.f32.mrb[0].mxu0
        %v3037 = vadd.f32 %v2775, %v3036
        %v3038 = vpop.f32.mrb[0].mxu0
        %v3039 = vadd.f32 %v2779, %v3038
        %v3040 = vpop.f32.mrb[0].mxu0
        %v3041 = vadd.f32 %v2775, %v3040
        %v3042 = vpop.f32.mrb[0].mxu0
        %v3043 = vadd.f32 %v2779, %v3042
        %3044 = vmatprep.mubr.bf16.mxu0 %v2735
        %3045 = vmatmul.mubr.bf16.gmra.mrb[0].mxu0 %v2734
        %v3046 = vpop.f32.mrb[0].mxu0
        %v3047 = vadd.f32 %v2775, %v3046
        %v3048 = vpop.f32.mrb[0].mxu0
        %v3049 = vadd.f32 %v2779, %v3048
        %v3050 = vpop.f32.mrb[0].mxu0
        %v3051 = vadd.f32 %v2775, %v3050
        %v3052 = vpop.f32.mrb[0].mxu0
        %v3053 = vadd.f32 %v2779, %v3052
        %3054 = vdwg.mxu0
        %v3055 = vmul.f32 %v2977, 0.01
        %v3056 = vmul.f32 %v2979, 0.01
        %v3057 = vmul.f32 %v2981, 0.01
        %v3058 = vmul.f32 %v2983, 0.01
        %v3059 = vmul.f32 %v2987, 0.01
        %v3060 = vmul.f32 %v2989, 0.01
        %v3061 = vmul.f32 %v2991, 0.01
        %v3062 = vmul.f32 %v2993, 0.01
        %v3063 = vmul.f32 %v2997, 0.01
        %v3064 = vmul.f32 %v2999, 0.01
        %v3065 = vmul.f32 %v3001, 0.01
        %v3066 = vmul.f32 %v3003, 0.01
        %v3067 = vmul.f32 %v3007, 0.01
        %v3068 = vmul.f32 %v3009, 0.01
        %v3069 = vmul.f32 %v3011, 0.01
        %v3070 = vmul.f32 %v3013, 0.01
        %v3071 = vmul.f32 %v3017, 0.01
        %v3072 = vmul.f32 %v3019, 0.01
        %v3073 = vmul.f32 %v3021, 0.01
        %v3074 = vmul.f32 %v3023, 0.01
        %v3075 = vmul.f32 %v3027, 0.01
        %v3076 = vmul.f32 %v3029, 0.01
        %v3077 = vmul.f32 %v3031, 0.01
        %v3078 = vmul.f32 %v3033, 0.01
        %v3079 = vmul.f32 %v3037, 0.01
        %v3080 = vmul.f32 %v3039, 0.01
        %v3081 = vmul.f32 %v3041, 0.01
        %v3082 = vmul.f32 %v3043, 0.01
        %v3083 = vmul.f32 %v3047, 0.01
        %v3084 = vmul.f32 %v3049, 0.01
        %v3085 = vmul.f32 %v3051, 0.01
        %v3086 = vmul.f32 %v3053, 0.01
        %v3087 = vmax.f32 %v2977, %v3055
        %v3088 = vmax.f32 %v2979, %v3056
        %v3089 = vmax.f32 %v2981, %v3057
        %v3090 = vmax.f32 %v2983, %v3058
        %v3091 = vmax.f32 %v2987, %v3059
        %v3092 = vmax.f32 %v2989, %v3060
        %v3093 = vmax.f32 %v2991, %v3061
        %v3094 = vmax.f32 %v2993, %v3062
        %v3095 = vmax.f32 %v2997, %v3063
        %v3096 = vmax.f32 %v2999, %v3064
        %v3097 = vmax.f32 %v3001, %v3065
        %v3098 = vmax.f32 %v3003, %v3066
        %v3099 = vmax.f32 %v3007, %v3067
        %v3100 = vmax.f32 %v3009, %v3068
        %v3101 = vmax.f32 %v3011, %v3069
        %v3102 = vmax.f32 %v3013, %v3070
        %v3103 = vmax.f32 %v3017, %v3071
        %v3104 = vmax.f32 %v3019, %v3072
        %v3105 = vmax.f32 %v3021, %v3073
        %v3106 = vmax.f32 %v3023, %v3074
        %v3107 = vmax.f32 %v3027, %v3075
        %v3108 = vmax.f32 %v3029, %v3076
        %v3109 = vmax.f32 %v3031, %v3077
        %v3110 = vmax.f32 %v3033, %v3078
        %v3111 = vmax.f32 %v3037, %v3079
        %v3112 = vmax.f32 %v3039, %v3080
        %v3113 = vmax.f32 %v3041, %v3081
        %v3114 = vmax.f32 %v3043, %v3082
        %v3115 = vmax.f32 %v3047, %v3083
        %v3116 = vmax.f32 %v3049, %v3084
        %v3117 = vmax.f32 %v3051, %v3085
        %v3118 = vmax.f32 %v3053, %v3086
        %v3119 = vpack.c.bf16 %v3089, %v3087
        %v3120 = vpack.c.bf16 %v3090, %v3088
        %v3121 = vpack.c.bf16 %v3093, %v3091
        %v3122 = vpack.c.bf16 %v3094, %v3092
        %v3123 = vpack.c.bf16 %v3097, %v3095
        %v3124 = vpack.c.bf16 %v3098, %v3096
        %v3125 = vpack.c.bf16 %v3101, %v3099
        %v3126 = vpack.c.bf16 %v3102, %v3100
        %v3127 = vpack.c.bf16 %v3105, %v3103
        %v3128 = vpack.c.bf16 %v3106, %v3104
        %v3129 = vpack.c.bf16 %v3109, %v3107
        %v3130 = vpack.c.bf16 %v3110, %v3108
        %v3131 = vpack.c.bf16 %v3113, %v3111
        %v3132 = vpack.c.bf16 %v3114, %v3112
        %v3133 = vpack.c.bf16 %v3117, %v3115
        %v3134 = vpack.c.bf16 %v3118, %v3116
        %s3135 = scalar_lea.vmem [#allocation11], 1280
        %v3136 = vld [vmem:[%s3135] sm:$0xff]
        %v3137 = vld [vmem:[%s3135 + $0x8] sm:$0xff]
        %v3138 = vld [vmem:[%s3135 + $0x10] sm:$0xff]
        %v3139 = vld [vmem:[%s3135 + $0x18] sm:$0xff]
        %v3140 = vld [vmem:[%s3135 + $0x20] sm:$0xff]
        %v3141 = vld [vmem:[%s3135 + $0x28] sm:$0xff]
        %v3142 = vld [vmem:[%s3135 + $0x30] sm:$0xff]
        %v3143 = vld [vmem:[%s3135 + $0x38] sm:$0xff]
        %v3144 = vld [vmem:[%s3135 + $0x40] sm:$0xff]
        %v3145 = vld [vmem:[%s3135 + $0x48] sm:$0xff]
        %v3146 = vld [vmem:[%s3135 + $0x50] sm:$0xff]
        %v3147 = vld [vmem:[%s3135 + $0x58] sm:$0xff]
        %v3148 = vld [vmem:[%s3135 + $0x60] sm:$0xff]
        %v3149 = vld [vmem:[%s3135 + $0x68] sm:$0xff]
        %v3150 = vld [vmem:[%s3135 + $0x70] sm:$0xff]
        %v3151 = vld [vmem:[%s3135 + $0x78] sm:$0xff]
        %v3152 = vld [vmem:[%s3135 + $0x80] sm:$0xff]
        %v3153 = vld [vmem:[%s3135 + $0x88] sm:$0xff]
        %v3154 = vld [vmem:[%s3135 + $0x90] sm:$0xff]
        %v3155 = vld [vmem:[%s3135 + $0x98] sm:$0xff]
        %v3156 = vld [vmem:[%s3135 + $0xa0] sm:$0xff]
        %v3157 = vld [vmem:[%s3135 + $0xa8] sm:$0xff]
        %v3158 = vld [vmem:[%s3135 + $0xb0] sm:$0xff]
        %v3159 = vld [vmem:[%s3135 + $0xb8] sm:$0xff]
        %v3160 = vld [vmem:[%s3135 + $0xc0] sm:$0xff]
        %v3161 = vld [vmem:[%s3135 + $0xc8] sm:$0xff]
        %v3162 = vld [vmem:[%s3135 + $0xd0] sm:$0xff]
        %v3163 = vld [vmem:[%s3135 + $0xd8] sm:$0xff]
        %v3164 = vld [vmem:[%s3135 + $0xe0] sm:$0xff]
        %v3165 = vld [vmem:[%s3135 + $0xe8] sm:$0xff]
        %v3166 = vld [vmem:[%s3135 + $0xf0] sm:$0xff]
        %v3167 = vld [vmem:[%s3135 + $0xf8] sm:$0xff]
        %s3168 = scalar_lea.vmem [#allocation12], 10
        %v3169 = vld [vmem:[%s3168] sm:$0x3]
        %v3171 = vlaneseq
        %v3172 = vshrl.u32 %v3171, 7
        %v3173 = vsub.s32 0, %v3172
        %v3174 = vrot.slane %v3169, %v3173
        %v3175 = vlaneseq
        %v3176 = vshrl.u32 %v3175, 7
        %v3177 = vsub.s32 1, %v3176
        %v3178 = vrot.slane %v3169, %v3177
        %v3213 = vunpack.c.l.b16 %v3136
        %v3214 = vunpack.c.h.b16 %v3136
        %v3215 = vunpack.c.l.b16 %v3137
        %v3216 = vunpack.c.h.b16 %v3137
        %v3217 = vunpack.c.l.b16 %v3138
        %v3218 = vunpack.c.h.b16 %v3138
        %v3219 = vunpack.c.l.b16 %v3139
        %v3220 = vunpack.c.h.b16 %v3139
        %v3221 = vunpack.c.l.b16 %v3140
        %v3222 = vunpack.c.h.b16 %v3140
        %v3223 = vunpack.c.l.b16 %v3141
        %v3224 = vunpack.c.h.b16 %v3141
        %v3225 = vunpack.c.l.b16 %v3142
        %v3226 = vunpack.c.h.b16 %v3142
        %v3227 = vunpack.c.l.b16 %v3143
        %v3228 = vunpack.c.h.b16 %v3143
        %v3229 = vunpack.c.l.b16 %v3144
        %v3230 = vunpack.c.h.b16 %v3144
        %v3231 = vunpack.c.l.b16 %v3145
        %v3232 = vunpack.c.h.b16 %v3145
        %v3233 = vunpack.c.l.b16 %v3146
        %v3234 = vunpack.c.h.b16 %v3146
        %v3235 = vunpack.c.l.b16 %v3147
        %v3236 = vunpack.c.h.b16 %v3147
        %v3237 = vunpack.c.l.b16 %v3148
        %v3238 = vunpack.c.h.b16 %v3148
        %v3239 = vunpack.c.l.b16 %v3149
        %v3240 = vunpack.c.h.b16 %v3149
        %v3241 = vunpack.c.l.b16 %v3150
        %v3242 = vunpack.c.h.b16 %v3150
        %v3243 = vunpack.c.l.b16 %v3151
        %v3244 = vunpack.c.h.b16 %v3151
        %v3245 = vunpack.c.l.b16 %v3152
        %v3246 = vunpack.c.h.b16 %v3152
        %v3247 = vunpack.c.l.b16 %v3153
        %v3248 = vunpack.c.h.b16 %v3153
        %v3249 = vunpack.c.l.b16 %v3154
        %v3250 = vunpack.c.h.b16 %v3154
        %v3251 = vunpack.c.l.b16 %v3155
        %v3252 = vunpack.c.h.b16 %v3155
        %v3253 = vunpack.c.l.b16 %v3156
        %v3254 = vunpack.c.h.b16 %v3156
        %v3255 = vunpack.c.l.b16 %v3157
        %v3256 = vunpack.c.h.b16 %v3157
        %v3257 = vunpack.c.l.b16 %v3158
        %v3258 = vunpack.c.h.b16 %v3158
        %v3259 = vunpack.c.l.b16 %v3159
        %v3260 = vunpack.c.h.b16 %v3159
        %v3261 = vunpack.c.l.b16 %v3160
        %v3262 = vunpack.c.h.b16 %v3160
        %v3263 = vunpack.c.l.b16 %v3161
        %v3264 = vunpack.c.h.b16 %v3161
        %v3265 = vunpack.c.l.b16 %v3162
        %v3266 = vunpack.c.h.b16 %v3162
        %v3267 = vunpack.c.l.b16 %v3163
        %v3268 = vunpack.c.h.b16 %v3163
        %v3269 = vunpack.c.l.b16 %v3164
        %v3270 = vunpack.c.h.b16 %v3164
        %v3271 = vunpack.c.l.b16 %v3165
        %v3272 = vunpack.c.h.b16 %v3165
        %v3273 = vunpack.c.l.b16 %v3166
        %v3274 = vunpack.c.h.b16 %v3166
        %v3275 = vunpack.c.l.b16 %v3167
        %v3276 = vunpack.c.h.b16 %v3167
        %v3277 = vpack.c.b16 %v3215, %v3213
        %v3278 = vpack.c.b16 %v3216, %v3214
        %v3279 = vpack.c.b16 %v3219, %v3217
        %v3280 = vpack.c.b16 %v3220, %v3218
        %v3281 = vpack.c.b16 %v3223, %v3221
        %v3282 = vpack.c.b16 %v3224, %v3222
        %v3283 = vpack.c.b16 %v3227, %v3225
        %v3284 = vpack.c.b16 %v3228, %v3226
        %v3285 = vpack.c.b16 %v3231, %v3229
        %v3286 = vpack.c.b16 %v3232, %v3230
        %v3287 = vpack.c.b16 %v3235, %v3233
        %v3288 = vpack.c.b16 %v3236, %v3234
        %v3289 = vpack.c.b16 %v3239, %v3237
        %v3290 = vpack.c.b16 %v3240, %v3238
        %v3291 = vpack.c.b16 %v3243, %v3241
        %v3292 = vpack.c.b16 %v3244, %v3242
        %v3293 = vpack.c.b16 %v3247, %v3245
        %v3294 = vpack.c.b16 %v3248, %v3246
        %v3295 = vpack.c.b16 %v3251, %v3249
        %v3296 = vpack.c.b16 %v3252, %v3250
        %v3297 = vpack.c.b16 %v3255, %v3253
        %v3298 = vpack.c.b16 %v3256, %v3254
        %v3299 = vpack.c.b16 %v3259, %v3257
        %v3300 = vpack.c.b16 %v3260, %v3258
        %v3301 = vpack.c.b16 %v3263, %v3261
        %v3302 = vpack.c.b16 %v3264, %v3262
        %v3303 = vpack.c.b16 %v3267, %v3265
        %v3304 = vpack.c.b16 %v3268, %v3266
        %v3305 = vpack.c.b16 %v3271, %v3269
        %v3306 = vpack.c.b16 %v3272, %v3270
        %v3307 = vpack.c.b16 %v3275, %v3273
        %v3308 = vpack.c.b16 %v3276, %v3274
        %3341 = vmatprep.subr.bf16.mxu0 %v3278
        %3342 = vmatpush1.bf16.msra.mxu0 %v3277
        %3343 = vmatprep.subr.bf16.mxu0 %v3280
        %3344 = vmatpush1.bf16.msra.mxu0 %v3279
        %3345 = vmatprep.subr.bf16.mxu0 %v3282
        %3346 = vmatpush1.bf16.msra.mxu0 %v3281
        %3347 = vmatprep.subr.bf16.mxu0 %v3284
        %3348 = vmatpush1.bf16.msra.mxu0 %v3283
        %3349 = vmatprep.subr.bf16.mxu0 %v3286
        %3350 = vmatpush1.bf16.msra.mxu0 %v3285
        %3351 = vmatprep.subr.bf16.mxu0 %v3288
        %3352 = vmatpush1.bf16.msra.mxu0 %v3287
        %3353 = vmatprep.subr.bf16.mxu0 %v3290
        %3354 = vmatpush1.bf16.msra.mxu0 %v3289
        %3355 = vmatprep.subr.bf16.mxu0 %v3292
        %3356 = vmatpush1.bf16.msra.mxu0 %v3291
        %3357 = vmatprep.subr.bf16.mxu0 %v3294
        %3358 = vmatpush1.bf16.msra.mxu0 %v3293
        %3359 = vmatprep.subr.bf16.mxu0 %v3296
        %3360 = vmatpush1.bf16.msra.mxu0 %v3295
        %3361 = vmatprep.subr.bf16.mxu0 %v3298
        %3362 = vmatpush1.bf16.msra.mxu0 %v3297
        %3363 = vmatprep.subr.bf16.mxu0 %v3300
        %3364 = vmatpush1.bf16.msra.mxu0 %v3299
        %3365 = vmatprep.subr.bf16.mxu0 %v3302
        %3366 = vmatpush1.bf16.msra.mxu0 %v3301
        %3367 = vmatprep.subr.bf16.mxu0 %v3304
        %3368 = vmatpush1.bf16.msra.mxu0 %v3303
        %3369 = vmatprep.subr.bf16.mxu0 %v3306
        %3370 = vmatpush1.bf16.msra.mxu0 %v3305
        %3371 = vmatprep.subr.bf16.mxu0 %v3308
        %3372 = vmatpush1.bf16.msra.mxu0 %v3307
        %3373 = vmatprep.mubr.bf16.mxu0 %v3120
        %3374 = vmatmul.mubr.bf16.gmra.mrb[0].mxu0 %v3119
        %v3375 = vpop.f32.mrb[0].mxu0
        %v3376 = vadd.f32 %v3174, %v3375
        %v3377 = vpop.f32.mrb[0].mxu0
        %v3378 = vadd.f32 %v3178, %v3377
        %v3379 = vpop.f32.mrb[0].mxu0
        %v3380 = vadd.f32 %v3174, %v3379
        %v3381 = vpop.f32.mrb[0].mxu0
        %v3382 = vadd.f32 %v3178, %v3381
        %3383 = vmatprep.mubr.bf16.mxu0 %v3122
        %3384 = vmatmul.mubr.bf16.gmra.mrb[0].mxu0 %v3121
        %v3385 = vpop.f32.mrb[0].mxu0
        %v3386 = vadd.f32 %v3174, %v3385
        %v3387 = vpop.f32.mrb[0].mxu0
        %v3388 = vadd.f32 %v3178, %v3387
        %v3389 = vpop.f32.mrb[0].mxu0
        %v3390 = vadd.f32 %v3174, %v3389
        %v3391 = vpop.f32.mrb[0].mxu0
        %v3392 = vadd.f32 %v3178, %v3391
        %3393 = vmatprep.mubr.bf16.mxu0 %v3124
        %3394 = vmatmul.mubr.bf16.gmra.mrb[0].mxu0 %v3123
        %v3395 = vpop.f32.mrb[0].mxu0
        %v3396 = vadd.f32 %v3174, %v3395
        %v3397 = vpop.f32.mrb[0].mxu0
        %v3398 = vadd.f32 %v3178, %v3397
        %v3399 = vpop.f32.mrb[0].mxu0
        %v3400 = vadd.f32 %v3174, %v3399
        %v3401 = vpop.f32.mrb[0].mxu0
        %v3402 = vadd.f32 %v3178, %v3401
        %3403 = vmatprep.mubr.bf16.mxu0 %v3126
        %3404 = vmatmul.mubr.bf16.gmra.mrb[0].mxu0 %v3125
        %v3405 = vpop.f32.mrb[0].mxu0
        %v3406 = vadd.f32 %v3174, %v3405
        %v3407 = vpop.f32.mrb[0].mxu0
        %v3408 = vadd.f32 %v3178, %v3407
        %v3409 = vpop.f32.mrb[0].mxu0
        %v3410 = vadd.f32 %v3174, %v3409
        %v3411 = vpop.f32.mrb[0].mxu0
        %v3412 = vadd.f32 %v3178, %v3411
        %3413 = vmatprep.mubr.bf16.mxu0 %v3128
        %3414 = vmatmul.mubr.bf16.gmra.mrb[0].mxu0 %v3127
        %v3415 = vpop.f32.mrb[0].mxu0
        %v3416 = vadd.f32 %v3174, %v3415
        %v3417 = vpop.f32.mrb[0].mxu0
        %v3418 = vadd.f32 %v3178, %v3417
        %v3419 = vpop.f32.mrb[0].mxu0
        %v3420 = vadd.f32 %v3174, %v3419
        %v3421 = vpop.f32.mrb[0].mxu0
        %v3422 = vadd.f32 %v3178, %v3421
        %3423 = vmatprep.mubr.bf16.mxu0 %v3130
        %3424 = vmatmul.mubr.bf16.gmra.mrb[0].mxu0 %v3129
        %v3425 = vpop.f32.mrb[0].mxu0
        %v3426 = vadd.f32 %v3174, %v3425
        %v3427 = vpop.f32.mrb[0].mxu0
        %v3428 = vadd.f32 %v3178, %v3427
        %v3429 = vpop.f32.mrb[0].mxu0
        %v3430 = vadd.f32 %v3174, %v3429
        %v3431 = vpop.f32.mrb[0].mxu0
        %v3432 = vadd.f32 %v3178, %v3431
        %3433 = vmatprep.mubr.bf16.mxu0 %v3132
        %3434 = vmatmul.mubr.bf16.gmra.mrb[0].mxu0 %v3131
        %v3435 = vpop.f32.mrb[0].mxu0
        %v3436 = vadd.f32 %v3174, %v3435
        %v3437 = vpop.f32.mrb[0].mxu0
        %v3438 = vadd.f32 %v3178, %v3437
        %v3439 = vpop.f32.mrb[0].mxu0
        %v3440 = vadd.f32 %v3174, %v3439
        %v3441 = vpop.f32.mrb[0].mxu0
        %v3442 = vadd.f32 %v3178, %v3441
        %3443 = vmatprep.mubr.bf16.mxu0 %v3134
        %3444 = vmatmul.mubr.bf16.gmra.mrb[0].mxu0 %v3133
        %v3445 = vpop.f32.mrb[0].mxu0
        %v3446 = vadd.f32 %v3174, %v3445
        %v3447 = vpop.f32.mrb[0].mxu0
        %v3448 = vadd.f32 %v3178, %v3447
        %v3449 = vpop.f32.mrb[0].mxu0
        %v3450 = vadd.f32 %v3174, %v3449
        %v3451 = vpop.f32.mrb[0].mxu0
        %v3452 = vadd.f32 %v3178, %v3451
        %3453 = vdwg.mxu0
        %v3454 = vmul.f32 %v3376, 0.01
        %v3455 = vmul.f32 %v3378, 0.01
        %v3456 = vmul.f32 %v3380, 0.01
        %v3457 = vmul.f32 %v3382, 0.01
        %v3458 = vmul.f32 %v3386, 0.01
        %v3459 = vmul.f32 %v3388, 0.01
        %v3460 = vmul.f32 %v3390, 0.01
        %v3461 = vmul.f32 %v3392, 0.01
        %v3462 = vmul.f32 %v3396, 0.01
        %v3463 = vmul.f32 %v3398, 0.01
        %v3464 = vmul.f32 %v3400, 0.01
        %v3465 = vmul.f32 %v3402, 0.01
        %v3466 = vmul.f32 %v3406, 0.01
        %v3467 = vmul.f32 %v3408, 0.01
        %v3468 = vmul.f32 %v3410, 0.01
        %v3469 = vmul.f32 %v3412, 0.01
        %v3470 = vmul.f32 %v3416, 0.01
        %v3471 = vmul.f32 %v3418, 0.01
        %v3472 = vmul.f32 %v3420, 0.01
        %v3473 = vmul.f32 %v3422, 0.01
        %v3474 = vmul.f32 %v3426, 0.01
        %v3475 = vmul.f32 %v3428, 0.01
        %v3476 = vmul.f32 %v3430, 0.01
        %v3477 = vmul.f32 %v3432, 0.01
        %v3478 = vmul.f32 %v3436, 0.01
        %v3479 = vmul.f32 %v3438, 0.01
        %v3480 = vmul.f32 %v3440, 0.01
        %v3481 = vmul.f32 %v3442, 0.01
        %v3482 = vmul.f32 %v3446, 0.01
        %v3483 = vmul.f32 %v3448, 0.01
        %v3484 = vmul.f32 %v3450, 0.01
        %v3485 = vmul.f32 %v3452, 0.01
        %v3486 = vmax.f32 %v3376, %v3454
        %v3487 = vmax.f32 %v3378, %v3455
        %v3488 = vmax.f32 %v3380, %v3456
        %v3489 = vmax.f32 %v3382, %v3457
        %v3490 = vmax.f32 %v3386, %v3458
        %v3491 = vmax.f32 %v3388, %v3459
        %v3492 = vmax.f32 %v3390, %v3460
        %v3493 = vmax.f32 %v3392, %v3461
        %v3494 = vmax.f32 %v3396, %v3462
        %v3495 = vmax.f32 %v3398, %v3463
        %v3496 = vmax.f32 %v3400, %v3464
        %v3497 = vmax.f32 %v3402, %v3465
        %v3498 = vmax.f32 %v3406, %v3466
        %v3499 = vmax.f32 %v3408, %v3467
        %v3500 = vmax.f32 %v3410, %v3468
        %v3501 = vmax.f32 %v3412, %v3469
        %v3502 = vmax.f32 %v3416, %v3470
        %v3503 = vmax.f32 %v3418, %v3471
        %v3504 = vmax.f32 %v3420, %v3472
        %v3505 = vmax.f32 %v3422, %v3473
        %v3506 = vmax.f32 %v3426, %v3474
        %v3507 = vmax.f32 %v3428, %v3475
        %v3508 = vmax.f32 %v3430, %v3476
        %v3509 = vmax.f32 %v3432, %v3477
        %v3510 = vmax.f32 %v3436, %v3478
        %v3511 = vmax.f32 %v3438, %v3479
        %v3512 = vmax.f32 %v3440, %v3480
        %v3513 = vmax.f32 %v3442, %v3481
        %v3514 = vmax.f32 %v3446, %v3482
        %v3515 = vmax.f32 %v3448, %v3483
        %v3516 = vmax.f32 %v3450, %v3484
        %v3517 = vmax.f32 %v3452, %v3485
        %v3518 = vld [vmem:[#allocation14] sm:$0x3]
        %v3520 = vlaneseq
        %v3521 = vshrl.u32 %v3520, 7
        %v3522 = vsub.s32 0, %v3521
        %v3523 = vrot.slane %v3518, %v3522
        %v3524 = vlaneseq
        %v3525 = vshrl.u32 %v3524, 7
        %v3526 = vsub.s32 1, %v3525
        %v3527 = vrot.slane %v3518, %v3526
        %v3530 = vmul.f32 %v3486, %v3523
        %v3531 = vmul.f32 %v3487, %v3527
        %v3532 = vmul.f32 %v3488, %v3523
        %v3533 = vmul.f32 %v3489, %v3527
        %v3534 = vmul.f32 %v3490, %v3523
        %v3535 = vmul.f32 %v3491, %v3527
        %v3536 = vmul.f32 %v3492, %v3523
        %v3537 = vmul.f32 %v3493, %v3527
        %v3538 = vmul.f32 %v3494, %v3523
        %v3539 = vmul.f32 %v3495, %v3527
        %v3540 = vmul.f32 %v3496, %v3523
        %v3541 = vmul.f32 %v3497, %v3527
        %v3542 = vmul.f32 %v3498, %v3523
        %v3543 = vmul.f32 %v3499, %v3527
        %v3544 = vmul.f32 %v3500, %v3523
        %v3545 = vmul.f32 %v3501, %v3527
        %v3546 = vmul.f32 %v3502, %v3523
        %v3547 = vmul.f32 %v3503, %v3527
        %v3548 = vmul.f32 %v3504, %v3523
        %v3549 = vmul.f32 %v3505, %v3527
        %v3550 = vmul.f32 %v3506, %v3523
        %v3551 = vmul.f32 %v3507, %v3527
        %v3552 = vmul.f32 %v3508, %v3523
        %v3553 = vmul.f32 %v3509, %v3527
        %v3554 = vmul.f32 %v3510, %v3523
        %v3555 = vmul.f32 %v3511, %v3527
        %v3556 = vmul.f32 %v3512, %v3523
        %v3557 = vmul.f32 %v3513, %v3527
        %v3558 = vmul.f32 %v3514, %v3523
        %v3559 = vmul.f32 %v3515, %v3527
        %v3560 = vmul.f32 %v3516, %v3523
        %v3561 = vmul.f32 %v3517, %v3527
        %v3562 = vadd.f32 %v3530, %v3531
        %3563 = vadd.xlane.f32.xlu0 %v3562
        %v3564 = vpop.xlane.xlu0 %3563
        %v3565 = vadd.f32 %v3532, %v3533
        %3566 = vadd.xlane.f32.xlu0 %v3565
        %v3567 = vpop.xlane.xlu0 %3566
        %v3568 = vadd.f32 %v3534, %v3535
        %3569 = vadd.xlane.f32.xlu0 %v3568
        %v3570 = vpop.xlane.xlu0 %3569
        %v3571 = vadd.f32 %v3536, %v3537
        %3572 = vadd.xlane.f32.xlu0 %v3571
        %v3573 = vpop.xlane.xlu0 %3572
        %v3574 = vadd.f32 %v3538, %v3539
        %3575 = vadd.xlane.f32.xlu0 %v3574
        %v3576 = vpop.xlane.xlu0 %3575
        %v3577 = vadd.f32 %v3540, %v3541
        %3578 = vadd.xlane.f32.xlu0 %v3577
        %v3579 = vpop.xlane.xlu0 %3578
        %v3580 = vadd.f32 %v3542, %v3543
        %3581 = vadd.xlane.f32.xlu0 %v3580
        %v3582 = vpop.xlane.xlu0 %3581
        %v3583 = vadd.f32 %v3544, %v3545
        %3584 = vadd.xlane.f32.xlu0 %v3583
        %v3585 = vpop.xlane.xlu0 %3584
        %v3586 = vadd.f32 %v3546, %v3547
        %3587 = vadd.xlane.f32.xlu0 %v3586
        %v3588 = vpop.xlane.xlu0 %3587
        %v3589 = vadd.f32 %v3548, %v3549
        %3590 = vadd.xlane.f32.xlu0 %v3589
        %v3591 = vpop.xlane.xlu0 %3590
        %v3592 = vadd.f32 %v3550, %v3551
        %3593 = vadd.xlane.f32.xlu0 %v3592
        %v3594 = vpop.xlane.xlu0 %3593
        %v3595 = vadd.f32 %v3552, %v3553
        %3596 = vadd.xlane.f32.xlu0 %v3595
        %v3597 = vpop.xlane.xlu0 %3596
        %v3598 = vadd.f32 %v3554, %v3555
        %3599 = vadd.xlane.f32.xlu0 %v3598
        %v3600 = vpop.xlane.xlu0 %3599
        %v3601 = vadd.f32 %v3556, %v3557
        %3602 = vadd.xlane.f32.xlu0 %v3601
        %v3603 = vpop.xlane.xlu0 %3602
        %v3604 = vadd.f32 %v3558, %v3559
        %3605 = vadd.xlane.f32.xlu0 %v3604
        %v3606 = vpop.xlane.xlu0 %3605
        %v3607 = vadd.f32 %v3560, %v3561
        %3608 = vadd.xlane.f32.xlu0 %v3607
        %v3609 = vpop.xlane.xlu0 %3608
        %v3610 = vld [vmem:[#allocation2] sm:$0x1]
        %v3612 = vlaneseq
        %v3613 = vshrl.u32 %v3612, 7
        %v3614 = vsub.s32 0, %v3613
        %v3615 = vrot.slane %v3610, %v3614
        %v3617 = vadd.f32 %v3564, %v3615
        %v3618 = vadd.f32 %v3567, %v3615
        %v3619 = vadd.f32 %v3570, %v3615
        %v3620 = vadd.f32 %v3573, %v3615
        %v3621 = vadd.f32 %v3576, %v3615
        %v3622 = vadd.f32 %v3579, %v3615
        %v3623 = vadd.f32 %v3582, %v3615
        %v3624 = vadd.f32 %v3585, %v3615
        %v3625 = vadd.f32 %v3588, %v3615
        %v3626 = vadd.f32 %v3591, %v3615
        %v3627 = vadd.f32 %v3594, %v3615
        %v3628 = vadd.f32 %v3597, %v3615
        %v3629 = vadd.f32 %v3600, %v3615
        %v3630 = vadd.f32 %v3603, %v3615
        %v3631 = vadd.f32 %v3606, %v3615
        %v3632 = vadd.f32 %v3609, %v3615
        %v3633 = vxor.u32 %v3617, 2147483648
        %v3634 = vxor.u32 %v3618, 2147483648
        %v3635 = vxor.u32 %v3619, 2147483648
        %v3636 = vxor.u32 %v3620, 2147483648
        %v3637 = vxor.u32 %v3621, 2147483648
        %v3638 = vxor.u32 %v3622, 2147483648
        %v3639 = vxor.u32 %v3623, 2147483648
        %v3640 = vxor.u32 %v3624, 2147483648
        %v3641 = vxor.u32 %v3625, 2147483648
        %v3642 = vxor.u32 %v3626, 2147483648
        %v3643 = vxor.u32 %v3627, 2147483648
        %v3644 = vxor.u32 %v3628, 2147483648
        %v3645 = vxor.u32 %v3629, 2147483648
        %v3646 = vxor.u32 %v3630, 2147483648
        %v3647 = vxor.u32 %v3631, 2147483648
        %v3648 = vxor.u32 %v3632, 2147483648
        %v3649 = vmul.f32 %v3633, 1.442695
        %v3650 = vpow.pop %v3649
        %v3651 = vmul.f32 %v3634, 1.442695
        %v3652 = vpow.pop %v3651
        %v3653 = vmul.f32 %v3635, 1.442695
        %v3654 = vpow.pop %v3653
        %v3655 = vmul.f32 %v3636, 1.442695
        %v3656 = vpow.pop %v3655
        %v3657 = vmul.f32 %v3637, 1.442695
        %v3658 = vpow.pop %v3657
        %v3659 = vmul.f32 %v3638, 1.442695
        %v3660 = vpow.pop %v3659
        %v3661 = vmul.f32 %v3639, 1.442695
        %v3662 = vpow.pop %v3661
        %v3663 = vmul.f32 %v3640, 1.442695
        %v3664 = vpow.pop %v3663
        %v3665 = vmul.f32 %v3641, 1.442695
        %v3666 = vpow.pop %v3665
        %v3667 = vmul.f32 %v3642, 1.442695
        %v3668 = vpow.pop %v3667
        %v3669 = vmul.f32 %v3643, 1.442695
        %v3670 = vpow.pop %v3669
        %v3671 = vmul.f32 %v3644, 1.442695
        %v3672 = vpow.pop %v3671
        %v3673 = vmul.f32 %v3645, 1.442695
        %v3674 = vpow.pop %v3673
        %v3675 = vmul.f32 %v3646, 1.442695
        %v3676 = vpow.pop %v3675
        %v3677 = vmul.f32 %v3647, 1.442695
        %v3678 = vpow.pop %v3677
        %v3679 = vmul.f32 %v3648, 1.442695
        %v3680 = vpow.pop %v3679
        %v3681 = vadd.f32 %v3650, 1.0
        %v3682 = vadd.f32 %v3652, 1.0
        %v3683 = vadd.f32 %v3654, 1.0
        %v3684 = vadd.f32 %v3656, 1.0
        %v3685 = vadd.f32 %v3658, 1.0
        %v3686 = vadd.f32 %v3660, 1.0
        %v3687 = vadd.f32 %v3662, 1.0
        %v3688 = vadd.f32 %v3664, 1.0
        %v3689 = vadd.f32 %v3666, 1.0
        %v3690 = vadd.f32 %v3668, 1.0
        %v3691 = vadd.f32 %v3670, 1.0
        %v3692 = vadd.f32 %v3672, 1.0
        %v3693 = vadd.f32 %v3674, 1.0
        %v3694 = vadd.f32 %v3676, 1.0
        %v3695 = vadd.f32 %v3678, 1.0
        %v3696 = vadd.f32 %v3680, 1.0
        %v3697 = vrcp.pop %v3681
        %v3698 = vmul.f32 1.0, %v3697
        %v3699 = vrcp.pop %v3682
        %v3700 = vmul.f32 1.0, %v3699
        %v3701 = vrcp.pop %v3683
        %v3702 = vmul.f32 1.0, %v3701
        %v3703 = vrcp.pop %v3684
        %v3704 = vmul.f32 1.0, %v3703
        %v3705 = vrcp.pop %v3685
        %v3706 = vmul.f32 1.0, %v3705
        %v3707 = vrcp.pop %v3686
        %v3708 = vmul.f32 1.0, %v3707
        %v3709 = vrcp.pop %v3687
        %v3710 = vmul.f32 1.0, %v3709
        %v3711 = vrcp.pop %v3688
        %v3712 = vmul.f32 1.0, %v3711
        %v3713 = vrcp.pop %v3689
        %v3714 = vmul.f32 1.0, %v3713
        %v3715 = vrcp.pop %v3690
        %v3716 = vmul.f32 1.0, %v3715
        %v3717 = vrcp.pop %v3691
        %v3718 = vmul.f32 1.0, %v3717
        %v3719 = vrcp.pop %v3692
        %v3720 = vmul.f32 1.0, %v3719
        %v3721 = vrcp.pop %v3693
        %v3722 = vmul.f32 1.0, %v3721
        %v3723 = vrcp.pop %v3694
        %v3724 = vmul.f32 1.0, %v3723
        %v3725 = vrcp.pop %v3695
        %v3726 = vmul.f32 1.0, %v3725
        %v3727 = vrcp.pop %v3696
        %v3728 = vmul.f32 1.0, %v3727
        %3730 = vset.pattern.permute.xlu0 0
        %3731 = vperm.xlu0 %3730, %v3698
        %v3732 = vpop.permute.xlu0 %3731
        %3735 = vset.pattern.permute.xlu0 0
        %3736 = vperm.xlu0 %3735, %v3700
        %v3737 = vpop.permute.xlu0 %3736
        %3740 = vset.pattern.permute.xlu0 0
        %3741 = vperm.xlu0 %3740, %v3702
        %v3742 = vpop.permute.xlu0 %3741
        %3745 = vset.pattern.permute.xlu0 0
        %3746 = vperm.xlu0 %3745, %v3704
        %v3747 = vpop.permute.xlu0 %3746
        %3750 = vset.pattern.permute.xlu0 0
        %3751 = vperm.xlu0 %3750, %v3706
        %v3752 = vpop.permute.xlu0 %3751
        %3755 = vset.pattern.permute.xlu0 0
        %3756 = vperm.xlu0 %3755, %v3708
        %v3757 = vpop.permute.xlu0 %3756
        %3760 = vset.pattern.permute.xlu0 0
        %3761 = vperm.xlu0 %3760, %v3710
        %v3762 = vpop.permute.xlu0 %3761
        %3765 = vset.pattern.permute.xlu0 0
        %3766 = vperm.xlu0 %3765, %v3712
        %v3767 = vpop.permute.xlu0 %3766
        %3770 = vset.pattern.permute.xlu0 0
        %3771 = vperm.xlu0 %3770, %v3714
        %v3772 = vpop.permute.xlu0 %3771
        %3775 = vset.pattern.permute.xlu0 0
        %3776 = vperm.xlu0 %3775, %v3716
        %v3777 = vpop.permute.xlu0 %3776
        %3780 = vset.pattern.permute.xlu0 0
        %3781 = vperm.xlu0 %3780, %v3718
        %v3782 = vpop.permute.xlu0 %3781
        %3785 = vset.pattern.permute.xlu0 0
        %3786 = vperm.xlu0 %3785, %v3720
        %v3787 = vpop.permute.xlu0 %3786
        %3790 = vset.pattern.permute.xlu0 0
        %3791 = vperm.xlu0 %3790, %v3722
        %v3792 = vpop.permute.xlu0 %3791
        %3795 = vset.pattern.permute.xlu0 0
        %3796 = vperm.xlu0 %3795, %v3724
        %v3797 = vpop.permute.xlu0 %3796
        %3800 = vset.pattern.permute.xlu0 0
        %3801 = vperm.xlu0 %3800, %v3726
        %v3802 = vpop.permute.xlu0 %3801
        %3805 = vset.pattern.permute.xlu0 0
        %3806 = vperm.xlu0 %3805, %v3728
        %v3807 = vpop.permute.xlu0 %3806
        %v3809 = vmul.f32 %v407, %v3732
        %v3810 = vmul.f32 %v408, %v3737
        %v3811 = vmul.f32 %v409, %v3742
        %v3812 = vmul.f32 %v410, %v3747
        %v3813 = vmul.f32 %v411, %v3752
        %v3814 = vmul.f32 %v412, %v3757
        %v3815 = vmul.f32 %v413, %v3762
        %v3816 = vmul.f32 %v414, %v3767
        %v3817 = vmul.f32 %v415, %v3772
        %v3818 = vmul.f32 %v416, %v3777
        %v3819 = vmul.f32 %v417, %v3782
        %v3820 = vmul.f32 %v418, %v3787
        %v3821 = vmul.f32 %v419, %v3792
        %v3822 = vmul.f32 %v420, %v3797
        %v3823 = vmul.f32 %v421, %v3802
        %v3824 = vmul.f32 %v422, %v3807
        %3841 = vrot.lane.b32.xlu0 %v3809, 121
        %v3842 = vpop.permute.xlu0 %3841
        %3843 = vrot.lane.b32.xlu0 %v3810, 121
        %v3844 = vpop.permute.xlu0 %3843
        %3845 = vrot.lane.b32.xlu0 %v3811, 121
        %v3846 = vpop.permute.xlu0 %3845
        %3847 = vrot.lane.b32.xlu0 %v3812, 121
        %v3848 = vpop.permute.xlu0 %3847
        %3849 = vrot.lane.b32.xlu0 %v3813, 121
        %v3850 = vpop.permute.xlu0 %3849
        %3851 = vrot.lane.b32.xlu0 %v3814, 121
        %v3852 = vpop.permute.xlu0 %3851
        %3853 = vrot.lane.b32.xlu0 %v3815, 121
        %v3854 = vpop.permute.xlu0 %3853
        %3855 = vrot.lane.b32.xlu0 %v3816, 121
        %v3856 = vpop.permute.xlu0 %3855
        %3857 = vrot.lane.b32.xlu0 %v3817, 121
        %v3858 = vpop.permute.xlu0 %3857
        %3859 = vrot.lane.b32.xlu0 %v3818, 121
        %v3860 = vpop.permute.xlu0 %3859
        %3861 = vrot.lane.b32.xlu0 %v3819, 121
        %v3862 = vpop.permute.xlu0 %3861
        %3863 = vrot.lane.b32.xlu0 %v3820, 121
        %v3864 = vpop.permute.xlu0 %3863
        %3865 = vrot.lane.b32.xlu0 %v3821, 121
        %v3866 = vpop.permute.xlu0 %3865
        %3867 = vrot.lane.b32.xlu0 %v3822, 121
        %v3868 = vpop.permute.xlu0 %3867
        %3869 = vrot.lane.b32.xlu0 %v3823, 121
        %v3870 = vpop.permute.xlu0 %3869
        %3871 = vrot.lane.b32.xlu0 %v3824, 121
        %v3872 = vpop.permute.xlu0 %3871
        %3889 = vst.msk [vmem:[%s404] sm:$0xff] %vm519, %v3842
        %3890 = vst.msk [vmem:[%s404 + $0x8] sm:$0xff] %vm519, %v3844
        %3891 = vst.msk [vmem:[%s404 + $0x10] sm:$0xff] %vm519, %v3846
        %3892 = vst.msk [vmem:[%s404 + $0x18] sm:$0xff] %vm519, %v3848
        %3893 = vst.msk [vmem:[%s404 + $0x20] sm:$0xff] %vm519, %v3850
        %3894 = vst.msk [vmem:[%s404 + $0x28] sm:$0xff] %vm519, %v3852
        %3895 = vst.msk [vmem:[%s404 + $0x30] sm:$0xff] %vm519, %v3854
        %3896 = vst.msk [vmem:[%s404 + $0x38] sm:$0xff] %vm519, %v3856
        %3897 = vst.msk [vmem:[%s404 + $0x40] sm:$0xff] %vm519, %v3858
        %3898 = vst.msk [vmem:[%s404 + $0x48] sm:$0xff] %vm519, %v3860
        %3899 = vst.msk [vmem:[%s404 + $0x50] sm:$0xff] %vm519, %v3862
        %3900 = vst.msk [vmem:[%s404 + $0x58] sm:$0xff] %vm519, %v3864
        %3901 = vst.msk [vmem:[%s404 + $0x60] sm:$0xff] %vm519, %v3866
        %3902 = vst.msk [vmem:[%s404 + $0x68] sm:$0xff] %vm519, %v3868
        %3903 = vst.msk [vmem:[%s404 + $0x70] sm:$0xff] %vm519, %v3870
        %3904 = vst.msk [vmem:[%s404 + $0x78] sm:$0xff] %vm519, %v3872
        %s3905 = sand.u32 %s211, 1
        %s3906 = scalar_lea.sflag [#allocation5], %s3905
        %s3907 = sand.u32 %s211, 1
        %s3908 = smul.addr %s3907, 128
        %s3909 = scalar_lea.vmem [#allocation15], %s3908
        // Predicated region
        $region81: #{tpu_custom_call.1} parent=51 // pred_check
          %p3910 = pneg %p221
        $region82: #{tpu_custom_call.1} parent=51 // pred_check_branch
          %3912 = sbr.rel (%p3910) target = $region84
        $region83: #{tpu_custom_call.1} parent=51 // pred_region
          %s3913 = smul.u32 16, %s30
          %s3915 = ssub.s32 2048, 2048
          %3916 = vsyncadd %s3906, %s3915
          %s3917 = smul.addr %s3913, 128
          %s3918 = scalar_lea.hbm %s8, %s3917
          %s3919 = sshll.u32 %s3909, 4
          %s3920 = int_to_ptr.vmem [resolvable:$true] %s3919
          %3925 = dma.vmem_to_hbm [thread:$0]  %s3920, 2048, %s3918, %s3906, 128, 128, 8
        $region84: #{tpu_custom_call.1} parent=51 // pred_fallthru
          _
      $region52: #{tpu_custom_call.1} parent=5 // pred_fallthru
        _
      %p3926 = scmp.le.s32.totalorder 2, %s25
      // Predicated region
      $region85: #{tpu_custom_call.1} parent=5 // pred_check
        %p3927 = pneg %p3926
      $region86: #{tpu_custom_call.1} parent=5 // pred_check_branch
        %3929 = sbr.rel (%p3927) target = $region88
      $region87: #{tpu_custom_call.1} parent=5 // pred_region
        %s3930 = ssub.s32 %s25, 2
        // Predicated region
        $region89: #{tpu_custom_call.1} parent=87 // pred_check
          %p3931 = pneg %p227
        $region90: #{tpu_custom_call.1} parent=87 // pred_check_branch
          %3933 = sbr.rel (%p3931) target = $region92
        $region91: #{tpu_custom_call.1} parent=87 // pred_region
          %s3934 = sand.u32 %s212, 1
          %s3935 = scalar_lea.sflag [#allocation5], %s3934
          %s3936 = sand.u32 %s212, 1
          %s3937 = smul.addr %s3936, 128
          %s3938 = scalar_lea.vmem [#allocation15], %s3937
          %3939 = dma.done %s3935, 2048
        $region92: #{tpu_custom_call.1} parent=87 // pred_fallthru
          _
      $region88: #{tpu_custom_call.1} parent=5 // pred_fallthru
        _
    $region6: #{tpu_custom_call.1} parent=1 // loop_footer
      %s29 = sadd.s32 1, %s25
    $region7: #{tpu_custom_call.1} parent=1 // loop_footer_branch
      %24 = sbr.rel target = $region3
    $region8: #{tpu_custom_call.1} parent=1 // loop_exit
      _
    %3940 = vsyncpa [#allocation4], 1
    %s3941 = scalar_lea.sflag [#allocation4], 1
    %3942 = vsyncpa %s3941, 1
    %3943 = vsyncpa [#allocation7], 1
    %3944 = vsyncpa [#allocation10], 1
    %3945 = vsyncpa [#allocation13], 1
    %3946 = vsyncpa [#allocation5], 1
    %s3947 = scalar_lea.sflag [#allocation5], 1
    %3948 = vsyncpa %s3947, 1

</llo_original>
